<compile_context>
chip_gen: v6e
topology: v6e:2x2x1
jax: 0.10.0
libtpu: 0.0.40
codegen_flags: <defaults>
</compile_context>

<pallas_src>
import functools
import math

import jax
import jax.numpy as jnp
import numpy as np
from jax.experimental import pallas as pl
from jax.experimental.pallas import tpu as pltpu


# ------------------------------ fused kernel --------------------------------


def _mctct_attention_kernel(x_ref, wq_ref, wkv_ref, band_ref, wo_ref,
                            gamma_ref, beta_ref, y_ref,
                            k_scr, v_scr, ctx_scr, *,
                            seq_len, q_tile, num_heads, head_dim, eps,
                            compute_dtype):
    S, TQ, H, d = seq_len, q_tile, num_heads, head_dim
    A = H * d
    phase = pl.program_id(1)          # 0: project K/V into scratch, 1: attend
    qi = pl.program_id(2)             # query-tile index
    row0 = pl.multiple_of(qi * TQ, TQ)

    @pl.when(phase == 0)
    def _project_kv():
        # K/V projection for this tile's rows -> persistent VMEM scratch.
        x = x_ref[...]                                               # (TQ, E) bf16
        kv = jnp.dot(x, wkv_ref[...],
                     preferred_element_type=jnp.float32).astype(compute_dtype)
        k_scr[pl.ds(row0, TQ), :] = kv[:, :A]
        v_scr[pl.ds(row0, TQ), :] = kv[:, A:]

    @pl.when(phase == 1)
    def _attend():
        x = x_ref[...]                                               # (TQ, E) bf16
        x_f32 = x.astype(jnp.float32)                                # residual / LN path
        # 1/sqrt(d) is already folded into wq_ref by the wrapper.
        q = jnp.dot(x, wq_ref[...],
                    preferred_element_type=jnp.float32).astype(compute_dtype)  # (TQ, A)
        band = band_ref[...]                                         # (2S-1, d) bf16

        # Global query-row index of each row in this tile; its bits drive the
        # barrel shifter that extracts the relative-position window.
        gq = row0 + jax.lax.broadcasted_iota(jnp.int32, (TQ, 1), 0)
        nbits = max(1, (S - 1).bit_length())
        nt_dims = (((1,), (1,)), ((), ()))        # contract last dims (no .T)

        for h in range(H):
            q_h = q[:, h * d:(h + 1) * d]                            # (TQ, d)
            k_h = k_scr[:, h * d:(h + 1) * d]                        # (S, d)
            v_h = v_scr[:, h * d:(h + 1) * d]                        # (S, d)

            s_h = jax.lax.dot_general(q_h, k_h, nt_dims,
                                      preferred_element_type=jnp.float32)  # (TQ, S)

            # Relative-position scores:
            #   rel[i, j] = q_i . pos_emb[halfpoint + j - i]
            #             = band_scores[i, (S-1) + j - i],  band_scores = q_h @ band^T
            # Extract the shifted window by circularly rolling row i right by i
            # (mod 2S-1) with a static-roll barrel shifter, then slicing columns
            # [S-1, 2S-1).
            # TODO(synk): a single pltpu.roll(..., stride=1, stride_axis=0) strided
            # rotate could replace the log2(S) barrel-shift steps.
            r_h = jax.lax.dot_general(q_h, band, nt_dims,
                                      preferred_element_type=jnp.float32)  # (TQ, 2S-1)
            for b in range(nbits):
                rolled = jnp.roll(r_h, 1 << b, axis=-1)
                r_h = jnp.where(((gq >> b) & 1) == 1, rolled, r_h)
            s_h = s_h + r_h[:, S - 1:2 * S - 1]

            # attention_mask / head_mask are None; dropout is eval-mode identity.
            # TODO(synk): on v5e, interleave exp/normalize with the PV matmul
            # (running softmax) to hide the f32-only EUP under MXU cycles.
            s_h = s_h - jnp.max(s_h, axis=-1, keepdims=True)
            p_h = jnp.exp(s_h)
            p_h = p_h * pl.reciprocal(jnp.sum(p_h, axis=-1, keepdims=True),
                                      approx=True)
            # Write the head's context straight into the (TQ, A) VMEM slab.
            ctx_scr[:, h * d:(h + 1) * d] = jnp.dot(
                p_h.astype(compute_dtype), v_h,
                preferred_element_type=jnp.float32).astype(compute_dtype)

        # Output dense (pre-transposed weight) + residual + LayerNorm (f32 stats).
        h_out = jnp.dot(ctx_scr[...], wo_ref[...],
                        preferred_element_type=jnp.float32) + x_f32
        mu = jnp.mean(h_out, axis=-1, keepdims=True)
        var = jnp.mean(jnp.square(h_out - mu), axis=-1, keepdims=True)
        y_ref[...] = ((h_out - mu) * jax.lax.rsqrt(var + eps)
                      * gamma_ref[...] + beta_ref[...]).astype(y_ref.dtype)


# ------------------------------ forward pass ---------------------------------


def mctct_attention_forward(params, hidden_states, config, *,
                            compute_dtype=jnp.bfloat16,
                            out_dtype=jnp.bfloat16,
                            q_tile=None):
    B, S, E = hidden_states.shape
    H = config["num_attention_heads"]
    d = config["attention_head_dim"]
    A = H * d
    max_pos = config["max_position_embeddings"]
    scale = 1.0 / math.sqrt(d)

    if S > max_pos:
        # TODO(synk): seq_len > max_position_embeddings would pull the zero padding
        # of the original Fortran-reshape trick into the scores; the band extraction
        # below only covers the (usual) seq_len <= max_position_embeddings case.
        raise NotImplementedError(
            "fused kernel assumes seq_len <= max_position_embeddings")

    if q_tile is None:
        q_tile = S if S <= 128 else next(
            (t for t in (128, 64, 32, 16) if S % t == 0), S)
    if S % q_tile:
        raise ValueError("seq_len must be divisible by q_tile")
    n_q = S // q_tile

    # One-time wrapper prep: pre-transpose weights, fold 1/sqrt(d) into Wq,
    # fuse K/V weights, slice the needed pos_emb band, cast to bf16.
    wq_t = (params["wq"] * scale).T.astype(compute_dtype)             # (E, A)
    wkv_t = jnp.concatenate([params["wk"], params["wv"]],
                            axis=0).T.astype(compute_dtype)           # (E, 2A)
    wo_t = params["wo"].T.astype(compute_dtype)                       # (A, E)
    hp = max_pos - 1                                                  # == (2*max_pos-1)//2
    band = params["pos_emb"][hp - (S - 1): hp + S].astype(compute_dtype)  # (2S-1, d)
    x = hidden_states.astype(compute_dtype)

    kernel = functools.partial(
        _mctct_attention_kernel,
        seq_len=S, q_tile=q_tile, num_heads=H, head_dim=d,
        eps=config["layer_norm_eps"], compute_dtype=compute_dtype)

    def build(single_buffer_weights):
        def const_spec(shape):
            index_map = lambda b, p, qi, _n=len(shape): (0,) * _n
            if single_buffer_weights:
                # Grid-invariant operands: no double buffering -> VMEM savings.
                return pl.BlockSpec(shape, index_map,
                                    pipeline_mode=pl.Buffered(1))
            return pl.BlockSpec(shape, index_map)

        in_specs = [
            pl.BlockSpec((None, q_tile, E), lambda b, p, qi: (b, qi, 0)),  # x tile
            const_spec((E, A)),              # Wq^T (scale folded)
            const_spec((E, 2 * A)),          # [Wk; Wv]^T
            const_spec((2 * S - 1, d)),      # pos_emb band
            const_spec((A, E)),              # Wo^T
            const_spec((1, E)),              # LN gamma
            const_spec((1, E)),              # LN beta
        ]
        # Pass 0 never writes y; map its steps onto block (b, 0) so nothing
        # uninitialized is ever flushed (pass 1 writes every block).
        # TODO(synk): at production E (=1536) the output is already lane-dense;
        # for lane-narrow demo E a wrapper-side (B, S*E) reshape would densify stores.
        out_spec = pl.BlockSpec((None, q_tile, E), lambda b, p, qi: (b, qi * p, 0))
        return pl.pallas_call(
            kernel,
            grid=(B, 2, n_q),
            in_specs=in_specs,
            out_specs=out_spec,
            out_shape=jax.ShapeDtypeStruct((B, S, E), out_dtype),
            scratch_shapes=[
                pltpu.VMEM((S, A), compute_dtype),        # K, whole sequence
                pltpu.VMEM((S, A), compute_dtype),        # V, whole sequence
                pltpu.VMEM((q_tile, A), compute_dtype),   # per-tile context slab
            ],
            compiler_params=pltpu.CompilerParams(
                # Scratch K/V carries state across the pass / q-tile axes, so only
                # the batch axis is parallel (megacore / v7x TC sharding).
                dimension_semantics=("parallel", "arbitrary", "arbitrary"),
                vmem_limit_bytes=64 * 1024 * 1024),
        )

    args = (x, wq_t, wkv_t, band, wo_t, params["ln_gamma"], params["ln_beta"])
    try:
        return build(hasattr(pl, "Buffered"))(*args)
    except Exception:  # pipeline_mode=pl.Buffered(1) unsupported -> default buffering
        return build(False)(*args)


# --------------------- pure-JAX reference (exact PyTorch port) ----------------


def _reshape_fortran(x, shape):
    if x.ndim > 0:
        x = jnp.transpose(x, tuple(reversed(range(x.ndim))))
    x = x.reshape(tuple(reversed(shape)))
    return jnp.transpose(x, tuple(reversed(range(len(shape)))))


def _relative_position_embedding_rotate(scores):
    # scores: (B, H, L, S) -> (B, H, S, S); exact port of the PyTorch method.
    scores = jnp.transpose(scores, (0, 2, 3, 1))  # (B, L, S, H)
    batch, hidden_state, seq_len, heads = scores.shape
    scores = jnp.concatenate(
        [scores, jnp.zeros((batch, seq_len, seq_len, heads), scores.dtype)], axis=1)
    scores = _reshape_fortran(scores, [batch, (hidden_state + seq_len) * seq_len, 1, heads])
    scores = scores[:, : (seq_len + hidden_state - 1) * seq_len]
    scores = _reshape_fortran(scores, [batch, hidden_state + seq_len - 1, seq_len, heads])
    halfpoint = hidden_state // 2
    scores = jnp.swapaxes(scores[:, halfpoint:halfpoint + seq_len], 1, 2)
    return jnp.transpose(scores, (0, 3, 1, 2))


def reference_forward(params, x, config):
    B, S, E = x.shape
    H = config["num_attention_heads"]
    d = config["attention_head_dim"]
    A = H * d
    q = (x @ params["wq"].T) / math.sqrt(d)
    k = x @ params["wk"].T
    v = x @ params["wv"].T
    q4 = q.reshape(B, S, H, d).transpose(0, 2, 1, 3)
    k4 = k.reshape(B, S, H, d).transpose(0, 2, 1, 3)
    v4 = v.reshape(B, S, H, d).transpose(0, 2, 1, 3)
    scores = jnp.einsum("bhqd,bhkd->bhqk", q4, k4)
    rel = jnp.einsum("lh,bche->bcle", params["pos_emb"], q4.transpose(0, 1, 3, 2))
    rel = _relative_position_embedding_rotate(rel)
    scores = scores + rel
    probs = jax.nn.softmax(scores, axis=-1)
    ctx = jnp.einsum("bhqk,bhkd->bhqd", probs, v4)
    ctx = ctx.transpose(0, 2, 1, 3).reshape(B, S, A)
    h = ctx @ params["wo"].T + x
    mean = jnp.mean(h, axis=-1, keepdims=True)
    var = jnp.mean((h - mean) ** 2, axis=-1, keepdims=True)
    return (h - mean) * jax.lax.rsqrt(var + config["layer_norm_eps"]) \
        * params["ln_gamma"][0] + params["ln_beta"][0]


# --------------------------------- main ---------------------------------------


if __name__ == "__main__":
    config = dict(
        hidden_size=32,
        num_attention_heads=4,
        attention_head_dim=8,        # all_head_size = 32 == hidden_size
        max_position_embeddings=32,  # L = 63
        layer_norm_eps=1e-5,
    )
    B, S = 2, 32
    E = config["hidden_size"]
    H = config["num_attention_heads"]
    d = config["attention_head_dim"]
    A = H * d
    L = 2 * config["max_position_embeddings"] - 1

    key = jax.random.PRNGKey(0)
    k0, k1, k2, k3, k4, k5 = jax.random.split(key, 6)
    params = {
        "wq": 0.05 * jax.random.normal(k0, (A, E), jnp.float32),
        "wk": 0.05 * jax.random.normal(k1, (A, E), jnp.float32),
        "wv": 0.05 * jax.random.normal(k2, (A, E), jnp.float32),
        "pos_emb": 0.05 * jax.random.normal(k3, (L, d), jnp.float32),
        "wo": 0.05 * jax.random.normal(k4, (E, A), jnp.float32),
        "ln_gamma": jnp.ones((1, E), jnp.float32),
        "ln_beta": jnp.zeros((1, E), jnp.float32),
    }
    hidden_states = jax.random.normal(k5, (B, S, E), jnp.float32)

    # q_tile=16 -> two query tiles per sequence, exercising the tiled grid.
    out = mctct_attention_forward(params, hidden_states, config, q_tile=16)
    out = jax.block_until_ready(out)

    ref = jax.block_until_ready(reference_forward(params, hidden_states, config))
    out_f32 = np.asarray(jnp.asarray(out, jnp.float32))
    # bf16 in/out + bf16 MXU inputs + approx reciprocal -> loosened tolerance
    # vs the f32 reference.
    np.testing.assert_allclose(out_f32, np.asarray(ref), atol=2e-2, rtol=2e-2)

    print("KERNEL_OK")
</pallas_src>

<mosaic_0001>
module attributes {stable_mosaic.version = 11 : i64} {
  func.func @_mctct_attention_kernel(%arg0: i32, %arg1: i32, %arg2: i32, %arg3: memref<1x16x32xbf16, #tpu.memory_space<vmem>>, %arg4: memref<32x32xbf16, #tpu.memory_space<vmem>>, %arg5: memref<32x64xbf16, #tpu.memory_space<vmem>>, %arg6: memref<63x8xbf16, #tpu.memory_space<vmem>>, %arg7: memref<32x32xbf16, #tpu.memory_space<vmem>>, %arg8: memref<1x32xf32, #tpu.memory_space<vmem>>, %arg9: memref<1x32xf32, #tpu.memory_space<vmem>>, %arg10: memref<1x16x32xbf16, #tpu.memory_space<vmem>>, %arg11: memref<32x32xbf16, #tpu.memory_space<vmem>>, %arg12: memref<32x32xbf16, #tpu.memory_space<vmem>>, %arg13: memref<16x32xbf16, #tpu.memory_space<vmem>>) attributes {dimension_semantics = [#tpu.dimension_semantics<parallel>, #tpu.dimension_semantics<arbitrary>, #tpu.dimension_semantics<arbitrary>], iteration_bounds = array<i64: 2, 2, 2>, scalar_prefetch = 0 : i64, scratch_operands = 3 : i64, tpu.core_type = #tpu.core_type<tc>, window_params = [{transform_indices = @transform_0, window_bounds = array<i64: 1, 16, 32>}, {pipeline_mode = #tpu.pipeline_mode<synchronous>, transform_indices = @transform_1, window_bounds = array<i64: 32, 32>}, {pipeline_mode = #tpu.pipeline_mode<synchronous>, transform_indices = @transform_2, window_bounds = array<i64: 32, 64>}, {pipeline_mode = #tpu.pipeline_mode<synchronous>, transform_indices = @transform_3, window_bounds = array<i64: 63, 8>}, {pipeline_mode = #tpu.pipeline_mode<synchronous>, transform_indices = @transform_4, window_bounds = array<i64: 32, 32>}, {pipeline_mode = #tpu.pipeline_mode<synchronous>, transform_indices = @transform_5, window_bounds = array<i64: 1, 32>}, {pipeline_mode = #tpu.pipeline_mode<synchronous>, transform_indices = @transform_6, window_bounds = array<i64: 1, 32>}, {transform_indices = @transform_7, window_bounds = array<i64: 1, 16, 32>}]} {
    %c16_i32 = arith.constant 16 : i32
    %0 = arith.muli %arg2, %c16_i32 : i32
    %1 = tpu.assume_multiple %0, 16 : i32
    %c0_i32 = arith.constant 0 : i32
    %2 = arith.cmpi eq, %arg1, %c0_i32 : i32
    %3 = arith.extui %2 : i1 to i32
    %c0_i32_0 = arith.constant 0 : i32
    %4 = arith.cmpi ne, %3, %c0_i32_0 : i32
    scf.if %4 {
      %c0 = arith.constant 0 : index
      %c0_2 = arith.constant 0 : index
      %c0_3 = arith.constant 0 : index
      %8 = vector.load %arg3[%c0, %c0_2, %c0_3] : memref<1x16x32xbf16, #tpu.memory_space<vmem>>, vector<1x16x32xbf16>
      %9 = vector.shape_cast %8 : vector<1x16x32xbf16> to vector<16x32xbf16>
      %c0_4 = arith.constant 0 : index
      %c0_5 = arith.constant 0 : index
      %10 = vector.load %arg5[%c0_4, %c0_5] : memref<32x64xbf16, #tpu.memory_space<vmem>>, vector<32x64xbf16>
      %cst = arith.constant dense<0.000000e+00> : vector<16x64xf32>
      %11 = tpu.matmul %9, %10, %cst {dimension_numbers = #tpu.dot_dimension_numbers<[1], [0], [0], [1], [0, 0, 1, 1], [], []>} : vector<16x32xbf16>, vector<32x64xbf16>, vector<16x64xf32> -> vector<16x64xf32>
      %12 = arith.truncf %11 : vector<16x64xf32> to vector<16x64xbf16>
      %13 = vector.extract_strided_slice %12 {offsets = [0, 0], sizes = [16, 32], strides = [1, 1]} : vector<16x64xbf16> to vector<16x32xbf16>
      %14 = arith.index_cast %1 : i32 to index
      %c0_6 = arith.constant 0 : index
      %15 = vector.load %arg11[%14, %c0_6] : memref<32x32xbf16, #tpu.memory_space<vmem>>, vector<16x32xbf16>
      tpu.vector_store %arg11[%14, %c0_6], %13 {strides = array<i32>} : memref<32x32xbf16, #tpu.memory_space<vmem>>, vector<16x32xbf16>,
      %16 = vector.extract_strided_slice %12 {offsets = [0, 32], sizes = [16, 32], strides = [1, 1]} : vector<16x64xbf16> to vector<16x32xbf16>
      %17 = arith.index_cast %1 : i32 to index
      %c0_7 = arith.constant 0 : index
      %18 = vector.load %arg12[%17, %c0_7] : memref<32x32xbf16, #tpu.memory_space<vmem>>, vector<16x32xbf16>
      tpu.vector_store %arg12[%17, %c0_7], %16 {strides = array<i32>} : memref<32x32xbf16, #tpu.memory_space<vmem>>, vector<16x32xbf16>,
    } else {
    }
    %c1_i32 = arith.constant 1 : i32
    %5 = arith.cmpi eq, %arg1, %c1_i32 : i32
    %6 = arith.extui %5 : i1 to i32
    %c0_i32_1 = arith.constant 0 : i32
    %7 = arith.cmpi ne, %6, %c0_i32_1 : i32
    scf.if %7 {
      %c0 = arith.constant 0 : index
      %c0_2 = arith.constant 0 : index
      %c0_3 = arith.constant 0 : index
      %8 = vector.load %arg3[%c0, %c0_2, %c0_3] : memref<1x16x32xbf16, #tpu.memory_space<vmem>>, vector<1x16x32xbf16>
      %9 = vector.shape_cast %8 : vector<1x16x32xbf16> to vector<16x32xbf16>
      %10 = arith.extf %9 : vector<16x32xbf16> to vector<16x32xf32>
      %c0_4 = arith.constant 0 : index
      %c0_5 = arith.constant 0 : index
      %11 = vector.load %arg4[%c0_4, %c0_5] : memref<32x32xbf16, #tpu.memory_space<vmem>>, vector<32x32xbf16>
      %cst = arith.constant dense<0.000000e+00> : vector<16x32xf32>
      %12 = tpu.matmul %9, %11, %cst {dimension_numbers = #tpu.dot_dimension_numbers<[1], [0], [0], [1], [0, 0, 1, 1], [], []>} : vector<16x32xbf16>, vector<32x32xbf16>, vector<16x32xf32> -> vector<16x32xf32>
      %13 = arith.truncf %12 : vector<16x32xf32> to vector<16x32xbf16>
      %c0_6 = arith.constant 0 : index
      %c0_7 = arith.constant 0 : index
      %14 = vector.load %arg6[%c0_6, %c0_7] : memref<63x8xbf16, #tpu.memory_space<vmem>>, vector<63x8xbf16>
      %15 = tpu.iota {dimensions = array<i32: 0>} : vector<16x1xi32>
      %16 = vector.broadcast %1 : i32 to vector<16x1xi32>
      %17 = arith.addi %16, %15 : vector<16x1xi32>
      %18 = vector.extract_strided_slice %13 {offsets = [0, 0], sizes = [16, 8], strides = [1, 1]} : vector<16x32xbf16> to vector<16x8xbf16>
      %c0_8 = arith.constant 0 : index
      %c0_9 = arith.constant 0 : index
      %19 = vector.load %arg11[%c0_8, %c0_9] : memref<32x32xbf16, #tpu.memory_space<vmem>>, vector<32x8xbf16>
      %c0_10 = arith.constant 0 : index
      %c0_11 = arith.constant 0 : index
      %20 = vector.load %arg12[%c0_10, %c0_11] : memref<32x32xbf16, #tpu.memory_space<vmem>>, vector<32x8xbf16>
      %cst_12 = arith.constant dense<0.000000e+00> : vector<16x32xf32>
      %21 = tpu.matmul %18, %19, %cst_12 {dimension_numbers = #tpu.dot_dimension_numbers<[1], [1], [0], [0], [0, 0, 1, 0], [], []>} : vector<16x8xbf16>, vector<32x8xbf16>, vector<16x32xf32> -> vector<16x32xf32>
      %cst_13 = arith.constant dense<0.000000e+00> : vector<16x63xf32>
      %22 = tpu.matmul %18, %14, %cst_13 {dimension_numbers = #tpu.dot_dimension_numbers<[1], [1], [0], [0], [0, 0, 1, 0], [], []>} : vector<16x8xbf16>, vector<63x8xbf16>, vector<16x63xf32> -> vector<16x63xf32>
      %23 = vector.extract_strided_slice %22 {offsets = [0, 62], sizes = [16, 1], strides = [1, 1]} : vector<16x63xf32> to vector<16x1xf32>
      %24 = vector.extract_strided_slice %22 {offsets = [0, 0], sizes = [16, 62], strides = [1, 1]} : vector<16x63xf32> to vector<16x62xf32>
      %25 = tpu.concatenate %23, %24 in 1 : vector<16x1xf32>, vector<16x62xf32> -> vector<16x63xf32>
      %c0_i32_14 = arith.constant 0 : i32
      %26 = vector.broadcast %c0_i32_14 : i32 to vector<16x1xi32>
      %27 = arith.shrsi %17, %26 : vector<16x1xi32>
      %c1_i32_15 = arith.constant 1 : i32
      %28 = vector.broadcast %c1_i32_15 : i32 to vector<16x1xi32>
      %29 = arith.andi %27, %28 : vector<16x1xi32>
      %c1_i32_16 = arith.constant 1 : i32
      %30 = vector.broadcast %c1_i32_16 : i32 to vector<16x1xi32>
      %31 = arith.cmpi eq, %29, %30 : vector<16x1xi32>
      %32 = vector.shape_cast %31 : vector<16x1xi1> to vector<16x1xi1>
      %33 = vector.broadcast %32 : vector<16x1xi1> to vector<16x63xi1>
      %34 = arith.select %33, %25, %22 : vector<16x63xi1>, vector<16x63xf32>
      %35 = vector.extract_strided_slice %34 {offsets = [0, 61], sizes = [16, 2], strides = [1, 1]} : vector<16x63xf32> to vector<16x2xf32>
      %36 = vector.extract_strided_slice %34 {offsets = [0, 0], sizes = [16, 61], strides = [1, 1]} : vector<16x63xf32> to vector<16x61xf32>
      %37 = tpu.concatenate %35, %36 in 1 : vector<16x2xf32>, vector<16x61xf32> -> vector<16x63xf32>
      %c1_i32_17 = arith.constant 1 : i32
      %38 = vector.broadcast %c1_i32_17 : i32 to vector<16x1xi32>
      %39 = arith.shrsi %17, %38 : vector<16x1xi32>
      %c1_i32_18 = arith.constant 1 : i32
      %40 = vector.broadcast %c1_i32_18 : i32 to vector<16x1xi32>
      %41 = arith.andi %39, %40 : vector<16x1xi32>
      %c1_i32_19 = arith.constant 1 : i32
      %42 = vector.broadcast %c1_i32_19 : i32 to vector<16x1xi32>
      %43 = arith.cmpi eq, %41, %42 : vector<16x1xi32>
      %44 = vector.shape_cast %43 : vector<16x1xi1> to vector<16x1xi1>
      %45 = vector.broadcast %44 : vector<16x1xi1> to vector<16x63xi1>
      %46 = arith.select %45, %37, %34 : vector<16x63xi1>, vector<16x63xf32>
      %47 = vector.extract_strided_slice %46 {offsets = [0, 59], sizes = [16, 4], strides = [1, 1]} : vector<16x63xf32> to vector<16x4xf32>
      %48 = vector.extract_strided_slice %46 {offsets = [0, 0], sizes = [16, 59], strides = [1, 1]} : vector<16x63xf32> to vector<16x59xf32>
      %49 = tpu.concatenate %47, %48 in 1 : vector<16x4xf32>, vector<16x59xf32> -> vector<16x63xf32>
      %c2_i32 = arith.constant 2 : i32
      %50 = vector.broadcast %c2_i32 : i32 to vector<16x1xi32>
      %51 = arith.shrsi %17, %50 : vector<16x1xi32>
      %c1_i32_20 = arith.constant 1 : i32
      %52 = vector.broadcast %c1_i32_20 : i32 to vector<16x1xi32>
      %53 = arith.andi %51, %52 : vector<16x1xi32>
      %c1_i32_21 = arith.constant 1 : i32
      %54 = vector.broadcast %c1_i32_21 : i32 to vector<16x1xi32>
      %55 = arith.cmpi eq, %53, %54 : vector<16x1xi32>
      %56 = vector.shape_cast %55 : vector<16x1xi1> to vector<16x1xi1>
      %57 = vector.broadcast %56 : vector<16x1xi1> to vector<16x63xi1>
      %58 = arith.select %57, %49, %46 : vector<16x63xi1>, vector<16x63xf32>
      %59 = vector.extract_strided_slice %58 {offsets = [0, 55], sizes = [16, 8], strides = [1, 1]} : vector<16x63xf32> to vector<16x8xf32>
      %60 = vector.extract_strided_slice %58 {offsets = [0, 0], sizes = [16, 55], strides = [1, 1]} : vector<16x63xf32> to vector<16x55xf32>
      %61 = tpu.concatenate %59, %60 in 1 : vector<16x8xf32>, vector<16x55xf32> -> vector<16x63xf32>
      %c3_i32 = arith.constant 3 : i32
      %62 = vector.broadcast %c3_i32 : i32 to vector<16x1xi32>
      %63 = arith.shrsi %17, %62 : vector<16x1xi32>
      %c1_i32_22 = arith.constant 1 : i32
      %64 = vector.broadcast %c1_i32_22 : i32 to vector<16x1xi32>
      %65 = arith.andi %63, %64 : vector<16x1xi32>
      %c1_i32_23 = arith.constant 1 : i32
      %66 = vector.broadcast %c1_i32_23 : i32 to vector<16x1xi32>
      %67 = arith.cmpi eq, %65, %66 : vector<16x1xi32>
      %68 = vector.shape_cast %67 : vector<16x1xi1> to vector<16x1xi1>
      %69 = vector.broadcast %68 : vector<16x1xi1> to vector<16x63xi1>
      %70 = arith.select %69, %61, %58 : vector<16x63xi1>, vector<16x63xf32>
      %71 = vector.extract_strided_slice %70 {offsets = [0, 47], sizes = [16, 16], strides = [1, 1]} : vector<16x63xf32> to vector<16x16xf32>
      %72 = vector.extract_strided_slice %70 {offsets = [0, 0], sizes = [16, 47], strides = [1, 1]} : vector<16x63xf32> to vector<16x47xf32>
      %73 = tpu.concatenate %71, %72 in 1 : vector<16x16xf32>, vector<16x47xf32> -> vector<16x63xf32>
      %c4_i32 = arith.constant 4 : i32
      %74 = vector.broadcast %c4_i32 : i32 to vector<16x1xi32>
      %75 = arith.shrsi %17, %74 : vector<16x1xi32>
      %c1_i32_24 = arith.constant 1 : i32
      %76 = vector.broadcast %c1_i32_24 : i32 to vector<16x1xi32>
      %77 = arith.andi %75, %76 : vector<16x1xi32>
      %c1_i32_25 = arith.constant 1 : i32
      %78 = vector.broadcast %c1_i32_25 : i32 to vector<16x1xi32>
      %79 = arith.cmpi eq, %77, %78 : vector<16x1xi32>
      %80 = vector.shape_cast %79 : vector<16x1xi1> to vector<16x1xi1>
      %81 = vector.broadcast %80 : vector<16x1xi1> to vector<16x63xi1>
      %82 = arith.select %81, %73, %70 : vector<16x63xi1>, vector<16x63xf32>
      %83 = vector.extract_strided_slice %82 {offsets = [0, 31], sizes = [16, 32], strides = [1, 1]} : vector<16x63xf32> to vector<16x32xf32>
      %84 = arith.addf %21, %83 : vector<16x32xf32>
      %cst_26 = arith.constant dense<0xFF800000> : vector<16xf32>
      %85 = vector.multi_reduction <maximumf>, %84, %cst_26 [1] : vector<16x32xf32> to vector<16xf32>
      %86 = vector.shape_cast %85 : vector<16xf32> to vector<16x1xf32>
      %87 = vector.broadcast %86 : vector<16x1xf32> to vector<16x32xf32>
      %88 = arith.subf %84, %87 : vector<16x32xf32>
      %89 = math.exp %88 : vector<16x32xf32>
      %cst_27 = arith.constant dense<0.000000e+00> : vector<16xf32>
      %90 = vector.multi_reduction <add>, %89, %cst_27 [1] : vector<16x32xf32> to vector<16xf32>
      %91 = vector.shape_cast %90 : vector<16xf32> to vector<16x1xf32>
      %92 = tpu.reciprocal %91 {approx = true} : vector<16x1xf32> -> vector<16x1xf32>
      %93 = vector.broadcast %92 : vector<16x1xf32> to vector<16x32xf32>
      %94 = arith.mulf %89, %93 : vector<16x32xf32>
      %95 = arith.truncf %94 : vector<16x32xf32> to vector<16x32xbf16>
      %cst_28 = arith.constant dense<0.000000e+00> : vector<16x8xf32>
      %96 = tpu.matmul %95, %20, %cst_28 {dimension_numbers = #tpu.dot_dimension_numbers<[1], [0], [0], [1], [0, 0, 1, 1], [], []>} : vector<16x32xbf16>, vector<32x8xbf16>, vector<16x8xf32> -> vector<16x8xf32>
      %97 = arith.truncf %96 : vector<16x8xf32> to vector<16x8xbf16>
      %c0_29 = arith.constant 0 : index
      %c0_30 = arith.constant 0 : index
      %98 = vector.load %arg13[%c0_29, %c0_30] : memref<16x32xbf16, #tpu.memory_space<vmem>>, vector<16x8xbf16>
      tpu.vector_store %arg13[%c0_29, %c0_30], %97 {strides = array<i32>} : memref<16x32xbf16, #tpu.memory_space<vmem>>, vector<16x8xbf16>,
      %99 = vector.extract_strided_slice %13 {offsets = [0, 8], sizes = [16, 8], strides = [1, 1]} : vector<16x32xbf16> to vector<16x8xbf16>
      %c0_31 = arith.constant 0 : index
      %c8 = arith.constant 8 : index
      %100 = vector.load %arg11[%c0_31, %c8] : memref<32x32xbf16, #tpu.memory_space<vmem>>, vector<32x8xbf16>
      %c0_32 = arith.constant 0 : index
      %c8_33 = arith.constant 8 : index
      %101 = vector.load %arg12[%c0_32, %c8_33] : memref<32x32xbf16, #tpu.memory_space<vmem>>, vector<32x8xbf16>
      %cst_34 = arith.constant dense<0.000000e+00> : vector<16x32xf32>
      %102 = tpu.matmul %99, %100, %cst_34 {dimension_numbers = #tpu.dot_dimension_numbers<[1], [1], [0], [0], [0, 0, 1, 0], [], []>} : vector<16x8xbf16>, vector<32x8xbf16>, vector<16x32xf32> -> vector<16x32xf32>
      %cst_35 = arith.constant dense<0.000000e+00> : vector<16x63xf32>
      %103 = tpu.matmul %99, %14, %cst_35 {dimension_numbers = #tpu.dot_dimension_numbers<[1], [1], [0], [0], [0, 0, 1, 0], [], []>} : vector<16x8xbf16>, vector<63x8xbf16>, vector<16x63xf32> -> vector<16x63xf32>
      %104 = vector.extract_strided_slice %103 {offsets = [0, 62], sizes = [16, 1], strides = [1, 1]} : vector<16x63xf32> to vector<16x1xf32>
      %105 = vector.extract_strided_slice %103 {offsets = [0, 0], sizes = [16, 62], strides = [1, 1]} : vector<16x63xf32> to vector<16x62xf32>
      %106 = tpu.concatenate %104, %105 in 1 : vector<16x1xf32>, vector<16x62xf32> -> vector<16x63xf32>
      %c0_i32_36 = arith.constant 0 : i32
      %107 = vector.broadcast %c0_i32_36 : i32 to vector<16x1xi32>
      %108 = arith.shrsi %17, %107 : vector<16x1xi32>
      %c1_i32_37 = arith.constant 1 : i32
      %109 = vector.broadcast %c1_i32_37 : i32 to vector<16x1xi32>
      %110 = arith.andi %108, %109 : vector<16x1xi32>
      %c1_i32_38 = arith.constant 1 : i32
      %111 = vector.broadcast %c1_i32_38 : i32 to vector<16x1xi32>
      %112 = arith.cmpi eq, %110, %111 : vector<16x1xi32>
      %113 = vector.shape_cast %112 : vector<16x1xi1> to vector<16x1xi1>
      %114 = vector.broadcast %113 : vector<16x1xi1> to vector<16x63xi1>
      %115 = arith.select %114, %106, %103 : vector<16x63xi1>, vector<16x63xf32>
      %116 = vector.extract_strided_slice %115 {offsets = [0, 61], sizes = [16, 2], strides = [1, 1]} : vector<16x63xf32> to vector<16x2xf32>
      %117 = vector.extract_strided_slice %115 {offsets = [0, 0], sizes = [16, 61], strides = [1, 1]} : vector<16x63xf32> to vector<16x61xf32>
      %118 = tpu.concatenate %116, %117 in 1 : vector<16x2xf32>, vector<16x61xf32> -> vector<16x63xf32>
      %c1_i32_39 = arith.constant 1 : i32
      %119 = vector.broadcast %c1_i32_39 : i32 to vector<16x1xi32>
      %120 = arith.shrsi %17, %119 : vector<16x1xi32>
      %c1_i32_40 = arith.constant 1 : i32
      %121 = vector.broadcast %c1_i32_40 : i32 to vector<16x1xi32>
      %122 = arith.andi %120, %121 : vector<16x1xi32>
      %c1_i32_41 = arith.constant 1 : i32
      %123 = vector.broadcast %c1_i32_41 : i32 to vector<16x1xi32>
      %124 = arith.cmpi eq, %122, %123 : vector<16x1xi32>
      %125 = vector.shape_cast %124 : vector<16x1xi1> to vector<16x1xi1>
      %126 = vector.broadcast %125 : vector<16x1xi1> to vector<16x63xi1>
      %127 = arith.select %126, %118, %115 : vector<16x63xi1>, vector<16x63xf32>
      %128 = vector.extract_strided_slice %127 {offsets = [0, 59], sizes = [16, 4], strides = [1, 1]} : vector<16x63xf32> to vector<16x4xf32>
      %129 = vector.extract_strided_slice %127 {offsets = [0, 0], sizes = [16, 59], strides = [1, 1]} : vector<16x63xf32> to vector<16x59xf32>
      %130 = tpu.concatenate %128, %129 in 1 : vector<16x4xf32>, vector<16x59xf32> -> vector<16x63xf32>
      %c2_i32_42 = arith.constant 2 : i32
      %131 = vector.broadcast %c2_i32_42 : i32 to vector<16x1xi32>
      %132 = arith.shrsi %17, %131 : vector<16x1xi32>
      %c1_i32_43 = arith.constant 1 : i32
      %133 = vector.broadcast %c1_i32_43 : i32 to vector<16x1xi32>
      %134 = arith.andi %132, %133 : vector<16x1xi32>
      %c1_i32_44 = arith.constant 1 : i32
      %135 = vector.broadcast %c1_i32_44 : i32 to vector<16x1xi32>
      %136 = arith.cmpi eq, %134, %135 : vector<16x1xi32>
      %137 = vector.shape_cast %136 : vector<16x1xi1> to vector<16x1xi1>
      %138 = vector.broadcast %137 : vector<16x1xi1> to vector<16x63xi1>
      %139 = arith.select %138, %130, %127 : vector<16x63xi1>, vector<16x63xf32>
      %140 = vector.extract_strided_slice %139 {offsets = [0, 55], sizes = [16, 8], strides = [1, 1]} : vector<16x63xf32> to vector<16x8xf32>
      %141 = vector.extract_strided_slice %139 {offsets = [0, 0], sizes = [16, 55], strides = [1, 1]} : vector<16x63xf32> to vector<16x55xf32>
      %142 = tpu.concatenate %140, %141 in 1 : vector<16x8xf32>, vector<16x55xf32> -> vector<16x63xf32>
      %c3_i32_45 = arith.constant 3 : i32
      %143 = vector.broadcast %c3_i32_45 : i32 to vector<16x1xi32>
      %144 = arith.shrsi %17, %143 : vector<16x1xi32>
      %c1_i32_46 = arith.constant 1 : i32
      %145 = vector.broadcast %c1_i32_46 : i32 to vector<16x1xi32>
      %146 = arith.andi %144, %145 : vector<16x1xi32>
      %c1_i32_47 = arith.constant 1 : i32
      %147 = vector.broadcast %c1_i32_47 : i32 to vector<16x1xi32>
      %148 = arith.cmpi eq, %146, %147 : vector<16x1xi32>
      %149 = vector.shape_cast %148 : vector<16x1xi1> to vector<16x1xi1>
      %150 = vector.broadcast %149 : vector<16x1xi1> to vector<16x63xi1>
      %151 = arith.select %150, %142, %139 : vector<16x63xi1>, vector<16x63xf32>
      %152 = vector.extract_strided_slice %151 {offsets = [0, 47], sizes = [16, 16], strides = [1, 1]} : vector<16x63xf32> to vector<16x16xf32>
      %153 = vector.extract_strided_slice %151 {offsets = [0, 0], sizes = [16, 47], strides = [1, 1]} : vector<16x63xf32> to vector<16x47xf32>
      %154 = tpu.concatenate %152, %153 in 1 : vector<16x16xf32>, vector<16x47xf32> -> vector<16x63xf32>
      %c4_i32_48 = arith.constant 4 : i32
      %155 = vector.broadcast %c4_i32_48 : i32 to vector<16x1xi32>
      %156 = arith.shrsi %17, %155 : vector<16x1xi32>
      %c1_i32_49 = arith.constant 1 : i32
      %157 = vector.broadcast %c1_i32_49 : i32 to vector<16x1xi32>
      %158 = arith.andi %156, %157 : vector<16x1xi32>
      %c1_i32_50 = arith.constant 1 : i32
      %159 = vector.broadcast %c1_i32_50 : i32 to vector<16x1xi32>
      %160 = arith.cmpi eq, %158, %159 : vector<16x1xi32>
      %161 = vector.shape_cast %160 : vector<16x1xi1> to vector<16x1xi1>
      %162 = vector.broadcast %161 : vector<16x1xi1> to vector<16x63xi1>
      %163 = arith.select %162, %154, %151 : vector<16x63xi1>, vector<16x63xf32>
      %164 = vector.extract_strided_slice %163 {offsets = [0, 31], sizes = [16, 32], strides = [1, 1]} : vector<16x63xf32> to vector<16x32xf32>
      %165 = arith.addf %102, %164 : vector<16x32xf32>
      %cst_51 = arith.constant dense<0xFF800000> : vector<16xf32>
      %166 = vector.multi_reduction <maximumf>, %165, %cst_51 [1] : vector<16x32xf32> to vector<16xf32>
      %167 = vector.shape_cast %166 : vector<16xf32> to vector<16x1xf32>
      %168 = vector.broadcast %167 : vector<16x1xf32> to vector<16x32xf32>
      %169 = arith.subf %165, %168 : vector<16x32xf32>
      %170 = math.exp %169 : vector<16x32xf32>
      %cst_52 = arith.constant dense<0.000000e+00> : vector<16xf32>
      %171 = vector.multi_reduction <add>, %170, %cst_52 [1] : vector<16x32xf32> to vector<16xf32>
      %172 = vector.shape_cast %171 : vector<16xf32> to vector<16x1xf32>
      %173 = tpu.reciprocal %172 {approx = true} : vector<16x1xf32> -> vector<16x1xf32>
      %174 = vector.broadcast %173 : vector<16x1xf32> to vector<16x32xf32>
      %175 = arith.mulf %170, %174 : vector<16x32xf32>
      %176 = arith.truncf %175 : vector<16x32xf32> to vector<16x32xbf16>
      %cst_53 = arith.constant dense<0.000000e+00> : vector<16x8xf32>
      %177 = tpu.matmul %176, %101, %cst_53 {dimension_numbers = #tpu.dot_dimension_numbers<[1], [0], [0], [1], [0, 0, 1, 1], [], []>} : vector<16x32xbf16>, vector<32x8xbf16>, vector<16x8xf32> -> vector<16x8xf32>
      %178 = arith.truncf %177 : vector<16x8xf32> to vector<16x8xbf16>
      %c0_54 = arith.constant 0 : index
      %c8_55 = arith.constant 8 : index
      %179 = vector.load %arg13[%c0_54, %c8_55] : memref<16x32xbf16, #tpu.memory_space<vmem>>, vector<16x8xbf16>
      tpu.vector_store %arg13[%c0_54, %c8_55], %178 {strides = array<i32>} : memref<16x32xbf16, #tpu.memory_space<vmem>>, vector<16x8xbf16>,
      %180 = vector.extract_strided_slice %13 {offsets = [0, 16], sizes = [16, 8], strides = [1, 1]} : vector<16x32xbf16> to vector<16x8xbf16>
      %c0_56 = arith.constant 0 : index
      %c16 = arith.constant 16 : index
      %181 = vector.load %arg11[%c0_56, %c16] : memref<32x32xbf16, #tpu.memory_space<vmem>>, vector<32x8xbf16>
      %c0_57 = arith.constant 0 : index
      %c16_58 = arith.constant 16 : index
      %182 = vector.load %arg12[%c0_57, %c16_58] : memref<32x32xbf16, #tpu.memory_space<vmem>>, vector<32x8xbf16>
      %cst_59 = arith.constant dense<0.000000e+00> : vector<16x32xf32>
      %183 = tpu.matmul %180, %181, %cst_59 {dimension_numbers = #tpu.dot_dimension_numbers<[1], [1], [0], [0], [0, 0, 1, 0], [], []>} : vector<16x8xbf16>, vector<32x8xbf16>, vector<16x32xf32> -> vector<16x32xf32>
      %cst_60 = arith.constant dense<0.000000e+00> : vector<16x63xf32>
      %184 = tpu.matmul %180, %14, %cst_60 {dimension_numbers = #tpu.dot_dimension_numbers<[1], [1], [0], [0], [0, 0, 1, 0], [], []>} : vector<16x8xbf16>, vector<63x8xbf16>, vector<16x63xf32> -> vector<16x63xf32>
      %185 = vector.extract_strided_slice %184 {offsets = [0, 62], sizes = [16, 1], strides = [1, 1]} : vector<16x63xf32> to vector<16x1xf32>
      %186 = vector.extract_strided_slice %184 {offsets = [0, 0], sizes = [16, 62], strides = [1, 1]} : vector<16x63xf32> to vector<16x62xf32>
      %187 = tpu.concatenate %185, %186 in 1 : vector<16x1xf32>, vector<16x62xf32> -> vector<16x63xf32>
      %c0_i32_61 = arith.constant 0 : i32
      %188 = vector.broadcast %c0_i32_61 : i32 to vector<16x1xi32>
      %189 = arith.shrsi %17, %188 : vector<16x1xi32>
      %c1_i32_62 = arith.constant 1 : i32
      %190 = vector.broadcast %c1_i32_62 : i32 to vector<16x1xi32>
      %191 = arith.andi %189, %190 : vector<16x1xi32>
      %c1_i32_63 = arith.constant 1 : i32
      %192 = vector.broadcast %c1_i32_63 : i32 to vector<16x1xi32>
      %193 = arith.cmpi eq, %191, %192 : vector<16x1xi32>
      %194 = vector.shape_cast %193 : vector<16x1xi1> to vector<16x1xi1>
      %195 = vector.broadcast %194 : vector<16x1xi1> to vector<16x63xi1>
      %196 = arith.select %195, %187, %184 : vector<16x63xi1>, vector<16x63xf32>
      %197 = vector.extract_strided_slice %196 {offsets = [0, 61], sizes = [16, 2], strides = [1, 1]} : vector<16x63xf32> to vector<16x2xf32>
      %198 = vector.extract_strided_slice %196 {offsets = [0, 0], sizes = [16, 61], strides = [1, 1]} : vector<16x63xf32> to vector<16x61xf32>
      %199 = tpu.concatenate %197, %198 in 1 : vector<16x2xf32>, vector<16x61xf32> -> vector<16x63xf32>
      %c1_i32_64 = arith.constant 1 : i32
      %200 = vector.broadcast %c1_i32_64 : i32 to vector<16x1xi32>
      %201 = arith.shrsi %17, %200 : vector<16x1xi32>
      %c1_i32_65 = arith.constant 1 : i32
      %202 = vector.broadcast %c1_i32_65 : i32 to vector<16x1xi32>
      %203 = arith.andi %201, %202 : vector<16x1xi32>
      %c1_i32_66 = arith.constant 1 : i32
      %204 = vector.broadcast %c1_i32_66 : i32 to vector<16x1xi32>
      %205 = arith.cmpi eq, %203, %204 : vector<16x1xi32>
      %206 = vector.shape_cast %205 : vector<16x1xi1> to vector<16x1xi1>
      %207 = vector.broadcast %206 : vector<16x1xi1> to vector<16x63xi1>
      %208 = arith.select %207, %199, %196 : vector<16x63xi1>, vector<16x63xf32>
      %209 = vector.extract_strided_slice %208 {offsets = [0, 59], sizes = [16, 4], strides = [1, 1]} : vector<16x63xf32> to vector<16x4xf32>
      %210 = vector.extract_strided_slice %208 {offsets = [0, 0], sizes = [16, 59], strides = [1, 1]} : vector<16x63xf32> to vector<16x59xf32>
      %211 = tpu.concatenate %209, %210 in 1 : vector<16x4xf32>, vector<16x59xf32> -> vector<16x63xf32>
      %c2_i32_67 = arith.constant 2 : i32
      %212 = vector.broadcast %c2_i32_67 : i32 to vector<16x1xi32>
      %213 = arith.shrsi %17, %212 : vector<16x1xi32>
      %c1_i32_68 = arith.constant 1 : i32
      %214 = vector.broadcast %c1_i32_68 : i32 to vector<16x1xi32>
      %215 = arith.andi %213, %214 : vector<16x1xi32>
      %c1_i32_69 = arith.constant 1 : i32
      %216 = vector.broadcast %c1_i32_69 : i32 to vector<16x1xi32>
      %217 = arith.cmpi eq, %215, %216 : vector<16x1xi32>
      %218 = vector.shape_cast %217 : vector<16x1xi1> to vector<16x1xi1>
      %219 = vector.broadcast %218 : vector<16x1xi1> to vector<16x63xi1>
      %220 = arith.select %219, %211, %208 : vector<16x63xi1>, vector<16x63xf32>
      %221 = vector.extract_strided_slice %220 {offsets = [0, 55], sizes = [16, 8], strides = [1, 1]} : vector<16x63xf32> to vector<16x8xf32>
      %222 = vector.extract_strided_slice %220 {offsets = [0, 0], sizes = [16, 55], strides = [1, 1]} : vector<16x63xf32> to vector<16x55xf32>
      %223 = tpu.concatenate %221, %222 in 1 : vector<16x8xf32>, vector<16x55xf32> -> vector<16x63xf32>
      %c3_i32_70 = arith.constant 3 : i32
      %224 = vector.broadcast %c3_i32_70 : i32 to vector<16x1xi32>
      %225 = arith.shrsi %17, %224 : vector<16x1xi32>
      %c1_i32_71 = arith.constant 1 : i32
      %226 = vector.broadcast %c1_i32_71 : i32 to vector<16x1xi32>
      %227 = arith.andi %225, %226 : vector<16x1xi32>
      %c1_i32_72 = arith.constant 1 : i32
      %228 = vector.broadcast %c1_i32_72 : i32 to vector<16x1xi32>
      %229 = arith.cmpi eq, %227, %228 : vector<16x1xi32>
      %230 = vector.shape_cast %229 : vector<16x1xi1> to vector<16x1xi1>
      %231 = vector.broadcast %230 : vector<16x1xi1> to vector<16x63xi1>
      %232 = arith.select %231, %223, %220 : vector<16x63xi1>, vector<16x63xf32>
      %233 = vector.extract_strided_slice %232 {offsets = [0, 47], sizes = [16, 16], strides = [1, 1]} : vector<16x63xf32> to vector<16x16xf32>
      %234 = vector.extract_strided_slice %232 {offsets = [0, 0], sizes = [16, 47], strides = [1, 1]} : vector<16x63xf32> to vector<16x47xf32>
      %235 = tpu.concatenate %233, %234 in 1 : vector<16x16xf32>, vector<16x47xf32> -> vector<16x63xf32>
      %c4_i32_73 = arith.constant 4 : i32
      %236 = vector.broadcast %c4_i32_73 : i32 to vector<16x1xi32>
      %237 = arith.shrsi %17, %236 : vector<16x1xi32>
      %c1_i32_74 = arith.constant 1 : i32
      %238 = vector.broadcast %c1_i32_74 : i32 to vector<16x1xi32>
      %239 = arith.andi %237, %238 : vector<16x1xi32>
      %c1_i32_75 = arith.constant 1 : i32
      %240 = vector.broadcast %c1_i32_75 : i32 to vector<16x1xi32>
      %241 = arith.cmpi eq, %239, %240 : vector<16x1xi32>
      %242 = vector.shape_cast %241 : vector<16x1xi1> to vector<16x1xi1>
      %243 = vector.broadcast %242 : vector<16x1xi1> to vector<16x63xi1>
      %244 = arith.select %243, %235, %232 : vector<16x63xi1>, vector<16x63xf32>
      %245 = vector.extract_strided_slice %244 {offsets = [0, 31], sizes = [16, 32], strides = [1, 1]} : vector<16x63xf32> to vector<16x32xf32>
      %246 = arith.addf %183, %245 : vector<16x32xf32>
      %cst_76 = arith.constant dense<0xFF800000> : vector<16xf32>
      %247 = vector.multi_reduction <maximumf>, %246, %cst_76 [1] : vector<16x32xf32> to vector<16xf32>
      %248 = vector.shape_cast %247 : vector<16xf32> to vector<16x1xf32>
      %249 = vector.broadcast %248 : vector<16x1xf32> to vector<16x32xf32>
      %250 = arith.subf %246, %249 : vector<16x32xf32>
      %251 = math.exp %250 : vector<16x32xf32>
      %cst_77 = arith.constant dense<0.000000e+00> : vector<16xf32>
      %252 = vector.multi_reduction <add>, %251, %cst_77 [1] : vector<16x32xf32> to vector<16xf32>
      %253 = vector.shape_cast %252 : vector<16xf32> to vector<16x1xf32>
      %254 = tpu.reciprocal %253 {approx = true} : vector<16x1xf32> -> vector<16x1xf32>
      %255 = vector.broadcast %254 : vector<16x1xf32> to vector<16x32xf32>
      %256 = arith.mulf %251, %255 : vector<16x32xf32>
      %257 = arith.truncf %256 : vector<16x32xf32> to vector<16x32xbf16>
      %cst_78 = arith.constant dense<0.000000e+00> : vector<16x8xf32>
      %258 = tpu.matmul %257, %182, %cst_78 {dimension_numbers = #tpu.dot_dimension_numbers<[1], [0], [0], [1], [0, 0, 1, 1], [], []>} : vector<16x32xbf16>, vector<32x8xbf16>, vector<16x8xf32> -> vector<16x8xf32>
      %259 = arith.truncf %258 : vector<16x8xf32> to vector<16x8xbf16>
      %c0_79 = arith.constant 0 : index
      %c16_80 = arith.constant 16 : index
      %260 = vector.load %arg13[%c0_79, %c16_80] : memref<16x32xbf16, #tpu.memory_space<vmem>>, vector<16x8xbf16>
      tpu.vector_store %arg13[%c0_79, %c16_80], %259 {strides = array<i32>} : memref<16x32xbf16, #tpu.memory_space<vmem>>, vector<16x8xbf16>,
      %261 = vector.extract_strided_slice %13 {offsets = [0, 24], sizes = [16, 8], strides = [1, 1]} : vector<16x32xbf16> to vector<16x8xbf16>
      %c0_81 = arith.constant 0 : index
      %c24 = arith.constant 24 : index
      %262 = vector.load %arg11[%c0_81, %c24] : memref<32x32xbf16, #tpu.memory_space<vmem>>, vector<32x8xbf16>
      %c0_82 = arith.constant 0 : index
      %c24_83 = arith.constant 24 : index
      %263 = vector.load %arg12[%c0_82, %c24_83] : memref<32x32xbf16, #tpu.memory_space<vmem>>, vector<32x8xbf16>
      %cst_84 = arith.constant dense<0.000000e+00> : vector<16x32xf32>
      %264 = tpu.matmul %261, %262, %cst_84 {dimension_numbers = #tpu.dot_dimension_numbers<[1], [1], [0], [0], [0, 0, 1, 0], [], []>} : vector<16x8xbf16>, vector<32x8xbf16>, vector<16x32xf32> -> vector<16x32xf32>
      %cst_85 = arith.constant dense<0.000000e+00> : vector<16x63xf32>
      %265 = tpu.matmul %261, %14, %cst_85 {dimension_numbers = #tpu.dot_dimension_numbers<[1], [1], [0], [0], [0, 0, 1, 0], [], []>} : vector<16x8xbf16>, vector<63x8xbf16>, vector<16x63xf32> -> vector<16x63xf32>
      %266 = vector.extract_strided_slice %265 {offsets = [0, 62], sizes = [16, 1], strides = [1, 1]} : vector<16x63xf32> to vector<16x1xf32>
      %267 = vector.extract_strided_slice %265 {offsets = [0, 0], sizes = [16, 62], strides = [1, 1]} : vector<16x63xf32> to vector<16x62xf32>
      %268 = tpu.concatenate %266, %267 in 1 : vector<16x1xf32>, vector<16x62xf32> -> vector<16x63xf32>
      %c0_i32_86 = arith.constant 0 : i32
      %269 = vector.broadcast %c0_i32_86 : i32 to vector<16x1xi32>
      %270 = arith.shrsi %17, %269 : vector<16x1xi32>
      %c1_i32_87 = arith.constant 1 : i32
      %271 = vector.broadcast %c1_i32_87 : i32 to vector<16x1xi32>
      %272 = arith.andi %270, %271 : vector<16x1xi32>
      %c1_i32_88 = arith.constant 1 : i32
      %273 = vector.broadcast %c1_i32_88 : i32 to vector<16x1xi32>
      %274 = arith.cmpi eq, %272, %273 : vector<16x1xi32>
      %275 = vector.shape_cast %274 : vector<16x1xi1> to vector<16x1xi1>
      %276 = vector.broadcast %275 : vector<16x1xi1> to vector<16x63xi1>
      %277 = arith.select %276, %268, %265 : vector<16x63xi1>, vector<16x63xf32>
      %278 = vector.extract_strided_slice %277 {offsets = [0, 61], sizes = [16, 2], strides = [1, 1]} : vector<16x63xf32> to vector<16x2xf32>
      %279 = vector.extract_strided_slice %277 {offsets = [0, 0], sizes = [16, 61], strides = [1, 1]} : vector<16x63xf32> to vector<16x61xf32>
      %280 = tpu.concatenate %278, %279 in 1 : vector<16x2xf32>, vector<16x61xf32> -> vector<16x63xf32>
      %c1_i32_89 = arith.constant 1 : i32
      %281 = vector.broadcast %c1_i32_89 : i32 to vector<16x1xi32>
      %282 = arith.shrsi %17, %281 : vector<16x1xi32>
      %c1_i32_90 = arith.constant 1 : i32
      %283 = vector.broadcast %c1_i32_90 : i32 to vector<16x1xi32>
      %284 = arith.andi %282, %283 : vector<16x1xi32>
      %c1_i32_91 = arith.constant 1 : i32
      %285 = vector.broadcast %c1_i32_91 : i32 to vector<16x1xi32>
      %286 = arith.cmpi eq, %284, %285 : vector<16x1xi32>
      %287 = vector.shape_cast %286 : vector<16x1xi1> to vector<16x1xi1>
      %288 = vector.broadcast %287 : vector<16x1xi1> to vector<16x63xi1>
      %289 = arith.select %288, %280, %277 : vector<16x63xi1>, vector<16x63xf32>
      %290 = vector.extract_strided_slice %289 {offsets = [0, 59], sizes = [16, 4], strides = [1, 1]} : vector<16x63xf32> to vector<16x4xf32>
      %291 = vector.extract_strided_slice %289 {offsets = [0, 0], sizes = [16, 59], strides = [1, 1]} : vector<16x63xf32> to vector<16x59xf32>
      %292 = tpu.concatenate %290, %291 in 1 : vector<16x4xf32>, vector<16x59xf32> -> vector<16x63xf32>
      %c2_i32_92 = arith.constant 2 : i32
      %293 = vector.broadcast %c2_i32_92 : i32 to vector<16x1xi32>
      %294 = arith.shrsi %17, %293 : vector<16x1xi32>
      %c1_i32_93 = arith.constant 1 : i32
      %295 = vector.broadcast %c1_i32_93 : i32 to vector<16x1xi32>
      %296 = arith.andi %294, %295 : vector<16x1xi32>
      %c1_i32_94 = arith.constant 1 : i32
      %297 = vector.broadcast %c1_i32_94 : i32 to vector<16x1xi32>
      %298 = arith.cmpi eq, %296, %297 : vector<16x1xi32>
      %299 = vector.shape_cast %298 : vector<16x1xi1> to vector<16x1xi1>
      %300 = vector.broadcast %299 : vector<16x1xi1> to vector<16x63xi1>
      %301 = arith.select %300, %292, %289 : vector<16x63xi1>, vector<16x63xf32>
      %302 = vector.extract_strided_slice %301 {offsets = [0, 55], sizes = [16, 8], strides = [1, 1]} : vector<16x63xf32> to vector<16x8xf32>
      %303 = vector.extract_strided_slice %301 {offsets = [0, 0], sizes = [16, 55], strides = [1, 1]} : vector<16x63xf32> to vector<16x55xf32>
      %304 = tpu.concatenate %302, %303 in 1 : vector<16x8xf32>, vector<16x55xf32> -> vector<16x63xf32>
      %c3_i32_95 = arith.constant 3 : i32
      %305 = vector.broadcast %c3_i32_95 : i32 to vector<16x1xi32>
      %306 = arith.shrsi %17, %305 : vector<16x1xi32>
      %c1_i32_96 = arith.constant 1 : i32
      %307 = vector.broadcast %c1_i32_96 : i32 to vector<16x1xi32>
      %308 = arith.andi %306, %307 : vector<16x1xi32>
      %c1_i32_97 = arith.constant 1 : i32
      %309 = vector.broadcast %c1_i32_97 : i32 to vector<16x1xi32>
      %310 = arith.cmpi eq, %308, %309 : vector<16x1xi32>
      %311 = vector.shape_cast %310 : vector<16x1xi1> to vector<16x1xi1>
      %312 = vector.broadcast %311 : vector<16x1xi1> to vector<16x63xi1>
      %313 = arith.select %312, %304, %301 : vector<16x63xi1>, vector<16x63xf32>
      %314 = vector.extract_strided_slice %313 {offsets = [0, 47], sizes = [16, 16], strides = [1, 1]} : vector<16x63xf32> to vector<16x16xf32>
      %315 = vector.extract_strided_slice %313 {offsets = [0, 0], sizes = [16, 47], strides = [1, 1]} : vector<16x63xf32> to vector<16x47xf32>
      %316 = tpu.concatenate %314, %315 in 1 : vector<16x16xf32>, vector<16x47xf32> -> vector<16x63xf32>
      %c4_i32_98 = arith.constant 4 : i32
      %317 = vector.broadcast %c4_i32_98 : i32 to vector<16x1xi32>
      %318 = arith.shrsi %17, %317 : vector<16x1xi32>
      %c1_i32_99 = arith.constant 1 : i32
      %319 = vector.broadcast %c1_i32_99 : i32 to vector<16x1xi32>
      %320 = arith.andi %318, %319 : vector<16x1xi32>
      %c1_i32_100 = arith.constant 1 : i32
      %321 = vector.broadcast %c1_i32_100 : i32 to vector<16x1xi32>
      %322 = arith.cmpi eq, %320, %321 : vector<16x1xi32>
      %323 = vector.shape_cast %322 : vector<16x1xi1> to vector<16x1xi1>
      %324 = vector.broadcast %323 : vector<16x1xi1> to vector<16x63xi1>
      %325 = arith.select %324, %316, %313 : vector<16x63xi1>, vector<16x63xf32>
      %326 = vector.extract_strided_slice %325 {offsets = [0, 31], sizes = [16, 32], strides = [1, 1]} : vector<16x63xf32> to vector<16x32xf32>
      %327 = arith.addf %264, %326 : vector<16x32xf32>
      %cst_101 = arith.constant dense<0xFF800000> : vector<16xf32>
      %328 = vector.multi_reduction <maximumf>, %327, %cst_101 [1] : vector<16x32xf32> to vector<16xf32>
      %329 = vector.shape_cast %328 : vector<16xf32> to vector<16x1xf32>
      %330 = vector.broadcast %329 : vector<16x1xf32> to vector<16x32xf32>
      %331 = arith.subf %327, %330 : vector<16x32xf32>
      %332 = math.exp %331 : vector<16x32xf32>
      %cst_102 = arith.constant dense<0.000000e+00> : vector<16xf32>
      %333 = vector.multi_reduction <add>, %332, %cst_102 [1] : vector<16x32xf32> to vector<16xf32>
      %334 = vector.shape_cast %333 : vector<16xf32> to vector<16x1xf32>
      %335 = tpu.reciprocal %334 {approx = true} : vector<16x1xf32> -> vector<16x1xf32>
      %336 = vector.broadcast %335 : vector<16x1xf32> to vector<16x32xf32>
      %337 = arith.mulf %332, %336 : vector<16x32xf32>
      %338 = arith.truncf %337 : vector<16x32xf32> to vector<16x32xbf16>
      %cst_103 = arith.constant dense<0.000000e+00> : vector<16x8xf32>
      %339 = tpu.matmul %338, %263, %cst_103 {dimension_numbers = #tpu.dot_dimension_numbers<[1], [0], [0], [1], [0, 0, 1, 1], [], []>} : vector<16x32xbf16>, vector<32x8xbf16>, vector<16x8xf32> -> vector<16x8xf32>
      %340 = arith.truncf %339 : vector<16x8xf32> to vector<16x8xbf16>
      %c0_104 = arith.constant 0 : index
      %c24_105 = arith.constant 24 : index
      %341 = vector.load %arg13[%c0_104, %c24_105] : memref<16x32xbf16, #tpu.memory_space<vmem>>, vector<16x8xbf16>
      tpu.vector_store %arg13[%c0_104, %c24_105], %340 {strides = array<i32>} : memref<16x32xbf16, #tpu.memory_space<vmem>>, vector<16x8xbf16>,
      %c0_106 = arith.constant 0 : index
      %c0_107 = arith.constant 0 : index
      %342 = vector.load %arg13[%c0_106, %c0_107] : memref<16x32xbf16, #tpu.memory_space<vmem>>, vector<16x32xbf16>
      %c0_108 = arith.constant 0 : index
      %c0_109 = arith.constant 0 : index
      %343 = vector.load %arg7[%c0_108, %c0_109] : memref<32x32xbf16, #tpu.memory_space<vmem>>, vector<32x32xbf16>
      %cst_110 = arith.constant dense<0.000000e+00> : vector<16x32xf32>
      %344 = tpu.matmul %342, %343, %cst_110 {dimension_numbers = #tpu.dot_dimension_numbers<[1], [0], [0], [1], [0, 0, 1, 1], [], []>} : vector<16x32xbf16>, vector<32x32xbf16>, vector<16x32xf32> -> vector<16x32xf32>
      %345 = arith.addf %344, %10 : vector<16x32xf32>
      %cst_111 = arith.constant dense<0.000000e+00> : vector<16xf32>
      %346 = vector.multi_reduction <add>, %345, %cst_111 [1] : vector<16x32xf32> to vector<16xf32>
      %347 = vector.shape_cast %346 : vector<16xf32> to vector<16x1xf32>
      %cst_112 = arith.constant 3.200000e+01 : f32
      %348 = vector.broadcast %cst_112 : f32 to vector<16x1xf32>
      %349 = arith.divf %347, %348 : vector<16x1xf32>
      %350 = vector.broadcast %349 : vector<16x1xf32> to vector<16x32xf32>
      %351 = arith.subf %345, %350 : vector<16x32xf32>
      %352 = arith.mulf %351, %351 : vector<16x32xf32>
      %cst_113 = arith.constant dense<0.000000e+00> : vector<16xf32>
      %353 = vector.multi_reduction <add>, %352, %cst_113 [1] : vector<16x32xf32> to vector<16xf32>
      %354 = vector.shape_cast %353 : vector<16xf32> to vector<16x1xf32>
      %cst_114 = arith.constant 3.200000e+01 : f32
      %355 = vector.broadcast %cst_114 : f32 to vector<16x1xf32>
      %356 = arith.divf %354, %355 : vector<16x1xf32>
      %357 = vector.broadcast %349 : vector<16x1xf32> to vector<16x32xf32>
      %358 = arith.subf %345, %357 : vector<16x32xf32>
      %cst_115 = arith.constant 9.99999974E-6 : f32
      %359 = vector.broadcast %cst_115 : f32 to vector<16x1xf32>
      %360 = arith.addf %356, %359 : vector<16x1xf32>
      %361 = math.rsqrt %360 : vector<16x1xf32>
      %362 = vector.broadcast %361 : vector<16x1xf32> to vector<16x32xf32>
      %363 = arith.mulf %358, %362 : vector<16x32xf32>
      %c0_116 = arith.constant 0 : index
      %c0_117 = arith.constant 0 : index
      %364 = vector.load %arg8[%c0_116, %c0_117] : memref<1x32xf32, #tpu.memory_space<vmem>>, vector<1x32xf32>
      %365 = vector.broadcast %364 : vector<1x32xf32> to vector<16x32xf32>
      %366 = arith.mulf %363, %365 : vector<16x32xf32>
      %c0_118 = arith.constant 0 : index
      %c0_119 = arith.constant 0 : index
      %367 = vector.load %arg9[%c0_118, %c0_119] : memref<1x32xf32, #tpu.memory_space<vmem>>, vector<1x32xf32>
      %368 = vector.broadcast %367 : vector<1x32xf32> to vector<16x32xf32>
      %369 = arith.addf %366, %368 : vector<16x32xf32>
      %370 = arith.truncf %369 : vector<16x32xf32> to vector<16x32xbf16>
      %c0_120 = arith.constant 0 : index
      %c0_121 = arith.constant 0 : index
      %c0_122 = arith.constant 0 : index
      %371 = vector.load %arg10[%c0_120, %c0_121, %c0_122] : memref<1x16x32xbf16, #tpu.memory_space<vmem>>, vector<1x16x32xbf16>
      %372 = vector.shape_cast %371 : vector<1x16x32xbf16> to vector<16x32xbf16>
      %373 = vector.shape_cast %370 : vector<16x32xbf16> to vector<1x16x32xbf16>
      tpu.vector_store %arg10[%c0_120, %c0_121, %c0_122], %373 {strides = array<i32>} : memref<1x16x32xbf16, #tpu.memory_space<vmem>>, vector<1x16x32xbf16>,
    } else {
    }
    return
  }
  func.func @transform_0(%arg0: i32, %arg1: i32, %arg2: i32) -> (i32, i32, i32) {
    %c0_i32 = arith.constant 0 : i32
    %c0_i32_0 = arith.constant 0 : i32
    return %arg0, %arg2, %c0_i32 : i32, i32, i32
  }
  func.func @transform_1(%arg0: i32, %arg1: i32, %arg2: i32) -> (i32, i32) {
    %c0_i32 = arith.constant 0 : i32
    %c0_i32_0 = arith.constant 0 : i32
    %c0_i32_1 = arith.constant 0 : i32
    return %c0_i32, %c0_i32_0 : i32, i32
  }
  func.func @transform_2(%arg0: i32, %arg1: i32, %arg2: i32) -> (i32, i32) {
    %c0_i32 = arith.constant 0 : i32
    %c0_i32_0 = arith.constant 0 : i32
    %c0_i32_1 = arith.constant 0 : i32
    return %c0_i32, %c0_i32_0 : i32, i32
  }
  func.func @transform_3(%arg0: i32, %arg1: i32, %arg2: i32) -> (i32, i32) {
    %c0_i32 = arith.constant 0 : i32
    %c0_i32_0 = arith.constant 0 : i32
    %c0_i32_1 = arith.constant 0 : i32
    return %c0_i32, %c0_i32_0 : i32, i32
  }
  func.func @transform_4(%arg0: i32, %arg1: i32, %arg2: i32) -> (i32, i32) {
    %c0_i32 = arith.constant 0 : i32
    %c0_i32_0 = arith.constant 0 : i32
    %c0_i32_1 = arith.constant 0 : i32
    return %c0_i32, %c0_i32_0 : i32, i32
  }
  func.func @transform_5(%arg0: i32, %arg1: i32, %arg2: i32) -> (i32, i32) {
    %c0_i32 = arith.constant 0 : i32
    %c0_i32_0 = arith.constant 0 : i32
    %c0_i32_1 = arith.constant 0 : i32
    return %c0_i32, %c0_i32_0 : i32, i32
  }
  func.func @transform_6(%arg0: i32, %arg1: i32, %arg2: i32) -> (i32, i32) {
    %c0_i32 = arith.constant 0 : i32
    %c0_i32_0 = arith.constant 0 : i32
    %c0_i32_1 = arith.constant 0 : i32
    return %c0_i32, %c0_i32_0 : i32, i32
  }
  func.func @transform_7(%arg0: i32, %arg1: i32, %arg2: i32) -> (i32, i32, i32) {
    %0 = arith.muli %arg2, %arg1 : i32
    %c0_i32 = arith.constant 0 : i32
    %c0_i32_0 = arith.constant 0 : i32
    return %arg0, %0, %c0_i32 : i32, i32, i32
  }
}

module attributes {stable_mosaic.version = 11 : i64} {
  func.func @_mctct_attention_kernel(%arg0: i32, %arg1: i32, %arg2: i32, %arg3: memref<1x16x32xbf16, #tpu.memory_space<vmem>>, %arg4: memref<32x32xbf16, #tpu.memory_space<vmem>>, %arg5: memref<32x64xbf16, #tpu.memory_space<vmem>>, %arg6: memref<63x8xbf16, #tpu.memory_space<vmem>>, %arg7: memref<32x32xbf16, #tpu.memory_space<vmem>>, %arg8: memref<1x32xf32, #tpu.memory_space<vmem>>, %arg9: memref<1x32xf32, #tpu.memory_space<vmem>>, %arg10: memref<1x16x32xbf16, #tpu.memory_space<vmem>>, %arg11: memref<32x32xbf16, #tpu.memory_space<vmem>>, %arg12: memref<32x32xbf16, #tpu.memory_space<vmem>>, %arg13: memref<16x32xbf16, #tpu.memory_space<vmem>>) attributes {dimension_semantics = [#tpu.dimension_semantics<parallel>, #tpu.dimension_semantics<arbitrary>, #tpu.dimension_semantics<arbitrary>], iteration_bounds = array<i64: 2, 2, 2>, scalar_prefetch = 0 : i64, scratch_operands = 3 : i64, tpu.core_type = #tpu.core_type<tc>, window_params = [{transform_indices = @transform_0, window_bounds = array<i64: 1, 16, 32>}, {pipeline_mode = #tpu.pipeline_mode<synchronous>, transform_indices = @transform_1, window_bounds = array<i64: 32, 32>}, {pipeline_mode = #tpu.pipeline_mode<synchronous>, transform_indices = @transform_2, window_bounds = array<i64: 32, 64>}, {pipeline_mode = #tpu.pipeline_mode<synchronous>, transform_indices = @transform_3, window_bounds = array<i64: 63, 8>}, {pipeline_mode = #tpu.pipeline_mode<synchronous>, transform_indices = @transform_4, window_bounds = array<i64: 32, 32>}, {pipeline_mode = #tpu.pipeline_mode<synchronous>, transform_indices = @transform_5, window_bounds = array<i64: 1, 32>}, {pipeline_mode = #tpu.pipeline_mode<synchronous>, transform_indices = @transform_6, window_bounds = array<i64: 1, 32>}, {transform_indices = @transform_7, window_bounds = array<i64: 1, 16, 32>}]} {
    %c16_i32 = arith.constant 16 : i32
    %0 = arith.muli %arg2, %c16_i32 : i32
    %1 = tpu.assume_multiple %0, 16 : i32
    %c0_i32 = arith.constant 0 : i32
    %2 = arith.cmpi eq, %arg1, %c0_i32 : i32
    %3 = arith.extui %2 : i1 to i32
    %c0_i32_0 = arith.constant 0 : i32
    %4 = arith.cmpi ne, %3, %c0_i32_0 : i32
    scf.if %4 {
      %c0 = arith.constant 0 : index
      %c0_2 = arith.constant 0 : index
      %c0_3 = arith.constant 0 : index
      %8 = vector.load %arg3[%c0, %c0_2, %c0_3] : memref<1x16x32xbf16, #tpu.memory_space<vmem>>, vector<1x16x32xbf16>
      %9 = vector.shape_cast %8 : vector<1x16x32xbf16> to vector<16x32xbf16>
      %c0_4 = arith.constant 0 : index
      %c0_5 = arith.constant 0 : index
      %10 = vector.load %arg5[%c0_4, %c0_5] : memref<32x64xbf16, #tpu.memory_space<vmem>>, vector<32x64xbf16>
      %cst = arith.constant dense<0.000000e+00> : vector<16x64xf32>
      %11 = tpu.matmul %9, %10, %cst {dimension_numbers = #tpu.dot_dimension_numbers<[1], [0], [0], [1], [0, 0, 1, 1], [], []>} : vector<16x32xbf16>, vector<32x64xbf16>, vector<16x64xf32> -> vector<16x64xf32>
      %12 = arith.truncf %11 : vector<16x64xf32> to vector<16x64xbf16>
      %13 = vector.extract_strided_slice %12 {offsets = [0, 0], sizes = [16, 32], strides = [1, 1]} : vector<16x64xbf16> to vector<16x32xbf16>
      %14 = arith.index_cast %1 : i32 to index
      %c0_6 = arith.constant 0 : index
      %15 = vector.load %arg11[%14, %c0_6] : memref<32x32xbf16, #tpu.memory_space<vmem>>, vector<16x32xbf16>
      tpu.vector_store %arg11[%14, %c0_6], %13 {strides = array<i32>} : memref<32x32xbf16, #tpu.memory_space<vmem>>, vector<16x32xbf16>,
      %16 = vector.extract_strided_slice %12 {offsets = [0, 32], sizes = [16, 32], strides = [1, 1]} : vector<16x64xbf16> to vector<16x32xbf16>
      %17 = arith.index_cast %1 : i32 to index
      %c0_7 = arith.constant 0 : index
      %18 = vector.load %arg12[%17, %c0_7] : memref<32x32xbf16, #tpu.memory_space<vmem>>, vector<16x32xbf16>
      tpu.vector_store %arg12[%17, %c0_7], %16 {strides = array<i32>} : memref<32x32xbf16, #tpu.memory_space<vmem>>, vector<16x32xbf16>,
    } else {
    }
    %c1_i32 = arith.constant 1 : i32
    %5 = arith.cmpi eq, %arg1, %c1_i32 : i32
    %6 = arith.extui %5 : i1 to i32
    %c0_i32_1 = arith.constant 0 : i32
    %7 = arith.cmpi ne, %6, %c0_i32_1 : i32
    scf.if %7 {
      %c0 = arith.constant 0 : index
      %c0_2 = arith.constant 0 : index
      %c0_3 = arith.constant 0 : index
      %8 = vector.load %arg3[%c0, %c0_2, %c0_3] : memref<1x16x32xbf16, #tpu.memory_space<vmem>>, vector<1x16x32xbf16>
      %9 = vector.shape_cast %8 : vector<1x16x32xbf16> to vector<16x32xbf16>
      %10 = arith.extf %9 : vector<16x32xbf16> to vector<16x32xf32>
      %c0_4 = arith.constant 0 : index
      %c0_5 = arith.constant 0 : index
      %11 = vector.load %arg4[%c0_4, %c0_5] : memref<32x32xbf16, #tpu.memory_space<vmem>>, vector<32x32xbf16>
      %cst = arith.constant dense<0.000000e+00> : vector<16x32xf32>
      %12 = tpu.matmul %9, %11, %cst {dimension_numbers = #tpu.dot_dimension_numbers<[1], [0], [0], [1], [0, 0, 1, 1], [], []>} : vector<16x32xbf16>, vector<32x32xbf16>, vector<16x32xf32> -> vector<16x32xf32>
      %13 = arith.truncf %12 : vector<16x32xf32> to vector<16x32xbf16>
      %c0_6 = arith.constant 0 : index
      %c0_7 = arith.constant 0 : index
      %14 = vector.load %arg6[%c0_6, %c0_7] : memref<63x8xbf16, #tpu.memory_space<vmem>>, vector<63x8xbf16>
      %15 = tpu.iota {dimensions = array<i32: 0>} : vector<16x1xi32>
      %16 = vector.broadcast %1 : i32 to vector<16x1xi32>
      %17 = arith.addi %16, %15 : vector<16x1xi32>
      %18 = vector.extract_strided_slice %13 {offsets = [0, 0], sizes = [16, 8], strides = [1, 1]} : vector<16x32xbf16> to vector<16x8xbf16>
      %c0_8 = arith.constant 0 : index
      %c0_9 = arith.constant 0 : index
      %19 = vector.load %arg11[%c0_8, %c0_9] : memref<32x32xbf16, #tpu.memory_space<vmem>>, vector<32x8xbf16>
      %c0_10 = arith.constant 0 : index
      %c0_11 = arith.constant 0 : index
      %20 = vector.load %arg12[%c0_10, %c0_11] : memref<32x32xbf16, #tpu.memory_space<vmem>>, vector<32x8xbf16>
      %cst_12 = arith.constant dense<0.000000e+00> : vector<16x32xf32>
      %21 = tpu.matmul %18, %19, %cst_12 {dimension_numbers = #tpu.dot_dimension_numbers<[1], [1], [0], [0], [0, 0, 1, 0], [], []>} : vector<16x8xbf16>, vector<32x8xbf16>, vector<16x32xf32> -> vector<16x32xf32>
      %cst_13 = arith.constant dense<0.000000e+00> : vector<16x63xf32>
      %22 = tpu.matmul %18, %14, %cst_13 {dimension_numbers = #tpu.dot_dimension_numbers<[1], [1], [0], [0], [0, 0, 1, 0], [], []>} : vector<16x8xbf16>, vector<63x8xbf16>, vector<16x63xf32> -> vector<16x63xf32>
      %23 = vector.extract_strided_slice %22 {offsets = [0, 62], sizes = [16, 1], strides = [1, 1]} : vector<16x63xf32> to vector<16x1xf32>
      %24 = vector.extract_strided_slice %22 {offsets = [0, 0], sizes = [16, 62], strides = [1, 1]} : vector<16x63xf32> to vector<16x62xf32>
      %25 = tpu.concatenate %23, %24 in 1 : vector<16x1xf32>, vector<16x62xf32> -> vector<16x63xf32>
      %c0_i32_14 = arith.constant 0 : i32
      %26 = vector.broadcast %c0_i32_14 : i32 to vector<16x1xi32>
      %27 = arith.shrsi %17, %26 : vector<16x1xi32>
      %c1_i32_15 = arith.constant 1 : i32
      %28 = vector.broadcast %c1_i32_15 : i32 to vector<16x1xi32>
      %29 = arith.andi %27, %28 : vector<16x1xi32>
      %c1_i32_16 = arith.constant 1 : i32
      %30 = vector.broadcast %c1_i32_16 : i32 to vector<16x1xi32>
      %31 = arith.cmpi eq, %29, %30 : vector<16x1xi32>
      %32 = vector.shape_cast %31 : vector<16x1xi1> to vector<16x1xi1>
      %33 = vector.broadcast %32 : vector<16x1xi1> to vector<16x63xi1>
      %34 = arith.select %33, %25, %22 : vector<16x63xi1>, vector<16x63xf32>
      %35 = vector.extract_strided_slice %34 {offsets = [0, 61], sizes = [16, 2], strides = [1, 1]} : vector<16x63xf32> to vector<16x2xf32>
      %36 = vector.extract_strided_slice %34 {offsets = [0, 0], sizes = [16, 61], strides = [1, 1]} : vector<16x63xf32> to vector<16x61xf32>
      %37 = tpu.concatenate %35, %36 in 1 : vector<16x2xf32>, vector<16x61xf32> -> vector<16x63xf32>
      %c1_i32_17 = arith.constant 1 : i32
      %38 = vector.broadcast %c1_i32_17 : i32 to vector<16x1xi32>
      %39 = arith.shrsi %17, %38 : vector<16x1xi32>
      %c1_i32_18 = arith.constant 1 : i32
      %40 = vector.broadcast %c1_i32_18 : i32 to vector<16x1xi32>
      %41 = arith.andi %39, %40 : vector<16x1xi32>
      %c1_i32_19 = arith.constant 1 : i32
      %42 = vector.broadcast %c1_i32_19 : i32 to vector<16x1xi32>
      %43 = arith.cmpi eq, %41, %42 : vector<16x1xi32>
      %44 = vector.shape_cast %43 : vector<16x1xi1> to vector<16x1xi1>
      %45 = vector.broadcast %44 : vector<16x1xi1> to vector<16x63xi1>
      %46 = arith.select %45, %37, %34 : vector<16x63xi1>, vector<16x63xf32>
      %47 = vector.extract_strided_slice %46 {offsets = [0, 59], sizes = [16, 4], strides = [1, 1]} : vector<16x63xf32> to vector<16x4xf32>
      %48 = vector.extract_strided_slice %46 {offsets = [0, 0], sizes = [16, 59], strides = [1, 1]} : vector<16x63xf32> to vector<16x59xf32>
      %49 = tpu.concatenate %47, %48 in 1 : vector<16x4xf32>, vector<16x59xf32> -> vector<16x63xf32>
      %c2_i32 = arith.constant 2 : i32
      %50 = vector.broadcast %c2_i32 : i32 to vector<16x1xi32>
      %51 = arith.shrsi %17, %50 : vector<16x1xi32>
      %c1_i32_20 = arith.constant 1 : i32
      %52 = vector.broadcast %c1_i32_20 : i32 to vector<16x1xi32>
      %53 = arith.andi %51, %52 : vector<16x1xi32>
      %c1_i32_21 = arith.constant 1 : i32
      %54 = vector.broadcast %c1_i32_21 : i32 to vector<16x1xi32>
      %55 = arith.cmpi eq, %53, %54 : vector<16x1xi32>
      %56 = vector.shape_cast %55 : vector<16x1xi1> to vector<16x1xi1>
      %57 = vector.broadcast %56 : vector<16x1xi1> to vector<16x63xi1>
      %58 = arith.select %57, %49, %46 : vector<16x63xi1>, vector<16x63xf32>
      %59 = vector.extract_strided_slice %58 {offsets = [0, 55], sizes = [16, 8], strides = [1, 1]} : vector<16x63xf32> to vector<16x8xf32>
      %60 = vector.extract_strided_slice %58 {offsets = [0, 0], sizes = [16, 55], strides = [1, 1]} : vector<16x63xf32> to vector<16x55xf32>
      %61 = tpu.concatenate %59, %60 in 1 : vector<16x8xf32>, vector<16x55xf32> -> vector<16x63xf32>
      %c3_i32 = arith.constant 3 : i32
      %62 = vector.broadcast %c3_i32 : i32 to vector<16x1xi32>
      %63 = arith.shrsi %17, %62 : vector<16x1xi32>
      %c1_i32_22 = arith.constant 1 : i32
      %64 = vector.broadcast %c1_i32_22 : i32 to vector<16x1xi32>
      %65 = arith.andi %63, %64 : vector<16x1xi32>
      %c1_i32_23 = arith.constant 1 : i32
      %66 = vector.broadcast %c1_i32_23 : i32 to vector<16x1xi32>
      %67 = arith.cmpi eq, %65, %66 : vector<16x1xi32>
      %68 = vector.shape_cast %67 : vector<16x1xi1> to vector<16x1xi1>
      %69 = vector.broadcast %68 : vector<16x1xi1> to vector<16x63xi1>
      %70 = arith.select %69, %61, %58 : vector<16x63xi1>, vector<16x63xf32>
      %71 = vector.extract_strided_slice %70 {offsets = [0, 47], sizes = [16, 16], strides = [1, 1]} : vector<16x63xf32> to vector<16x16xf32>
      %72 = vector.extract_strided_slice %70 {offsets = [0, 0], sizes = [16, 47], strides = [1, 1]} : vector<16x63xf32> to vector<16x47xf32>
      %73 = tpu.concatenate %71, %72 in 1 : vector<16x16xf32>, vector<16x47xf32> -> vector<16x63xf32>
      %c4_i32 = arith.constant 4 : i32
      %74 = vector.broadcast %c4_i32 : i32 to vector<16x1xi32>
      %75 = arith.shrsi %17, %74 : vector<16x1xi32>
      %c1_i32_24 = arith.constant 1 : i32
      %76 = vector.broadcast %c1_i32_24 : i32 to vector<16x1xi32>
      %77 = arith.andi %75, %76 : vector<16x1xi32>
      %c1_i32_25 = arith.constant 1 : i32
      %78 = vector.broadcast %c1_i32_25 : i32 to vector<16x1xi32>
      %79 = arith.cmpi eq, %77, %78 : vector<16x1xi32>
      %80 = vector.shape_cast %79 : vector<16x1xi1> to vector<16x1xi1>
      %81 = vector.broadcast %80 : vector<16x1xi1> to vector<16x63xi1>
      %82 = arith.select %81, %73, %70 : vector<16x63xi1>, vector<16x63xf32>
      %83 = vector.extract_strided_slice %82 {offsets = [0, 31], sizes = [16, 32], strides = [1, 1]} : vector<16x63xf32> to vector<16x32xf32>
      %84 = arith.addf %21, %83 : vector<16x32xf32>
      %cst_26 = arith.constant dense<0xFF800000> : vector<16xf32>
      %85 = vector.multi_reduction <maximumf>, %84, %cst_26 [1] : vector<16x32xf32> to vector<16xf32>
      %86 = vector.shape_cast %85 : vector<16xf32> to vector<16x1xf32>
      %87 = vector.broadcast %86 : vector<16x1xf32> to vector<16x32xf32>
      %88 = arith.subf %84, %87 : vector<16x32xf32>
      %89 = math.exp %88 : vector<16x32xf32>
      %cst_27 = arith.constant dense<0.000000e+00> : vector<16xf32>
      %90 = vector.multi_reduction <add>, %89, %cst_27 [1] : vector<16x32xf32> to vector<16xf32>
      %91 = vector.shape_cast %90 : vector<16xf32> to vector<16x1xf32>
      %92 = tpu.reciprocal %91 {approx = true} : vector<16x1xf32> -> vector<16x1xf32>
      %93 = vector.broadcast %92 : vector<16x1xf32> to vector<16x32xf32>
      %94 = arith.mulf %89, %93 : vector<16x32xf32>
      %95 = arith.truncf %94 : vector<16x32xf32> to vector<16x32xbf16>
      %cst_28 = arith.constant dense<0.000000e+00> : vector<16x8xf32>
      %96 = tpu.matmul %95, %20, %cst_28 {dimension_numbers = #tpu.dot_dimension_numbers<[1], [0], [0], [1], [0, 0, 1, 1], [], []>} : vector<16x32xbf16>, vector<32x8xbf16>, vector<16x8xf32> -> vector<16x8xf32>
      %97 = arith.truncf %96 : vector<16x8xf32> to vector<16x8xbf16>
      %c0_29 = arith.constant 0 : index
      %c0_30 = arith.constant 0 : index
      %98 = vector.load %arg13[%c0_29, %c0_30] : memref<16x32xbf16, #tpu.memory_space<vmem>>, vector<16x8xbf16>
      tpu.vector_store %arg13[%c0_29, %c0_30], %97 {strides = array<i32>} : memref<16x32xbf16, #tpu.memory_space<vmem>>, vector<16x8xbf16>,
      %99 = vector.extract_strided_slice %13 {offsets = [0, 8], sizes = [16, 8], strides = [1, 1]} : vector<16x32xbf16> to vector<16x8xbf16>
      %c0_31 = arith.constant 0 : index
      %c8 = arith.constant 8 : index
      %100 = vector.load %arg11[%c0_31, %c8] : memref<32x32xbf16, #tpu.memory_space<vmem>>, vector<32x8xbf16>
      %c0_32 = arith.constant 0 : index
      %c8_33 = arith.constant 8 : index
      %101 = vector.load %arg12[%c0_32, %c8_33] : memref<32x32xbf16, #tpu.memory_space<vmem>>, vector<32x8xbf16>
      %cst_34 = arith.constant dense<0.000000e+00> : vector<16x32xf32>
      %102 = tpu.matmul %99, %100, %cst_34 {dimension_numbers = #tpu.dot_dimension_numbers<[1], [1], [0], [0], [0, 0, 1, 0], [], []>} : vector<16x8xbf16>, vector<32x8xbf16>, vector<16x32xf32> -> vector<16x32xf32>
      %cst_35 = arith.constant dense<0.000000e+00> : vector<16x63xf32>
      %103 = tpu.matmul %99, %14, %cst_35 {dimension_numbers = #tpu.dot_dimension_numbers<[1], [1], [0], [0], [0, 0, 1, 0], [], []>} : vector<16x8xbf16>, vector<63x8xbf16>, vector<16x63xf32> -> vector<16x63xf32>
      %104 = vector.extract_strided_slice %103 {offsets = [0, 62], sizes = [16, 1], strides = [1, 1]} : vector<16x63xf32> to vector<16x1xf32>
      %105 = vector.extract_strided_slice %103 {offsets = [0, 0], sizes = [16, 62], strides = [1, 1]} : vector<16x63xf32> to vector<16x62xf32>
      %106 = tpu.concatenate %104, %105 in 1 : vector<16x1xf32>, vector<16x62xf32> -> vector<16x63xf32>
      %c0_i32_36 = arith.constant 0 : i32
      %107 = vector.broadcast %c0_i32_36 : i32 to vector<16x1xi32>
      %108 = arith.shrsi %17, %107 : vector<16x1xi32>
      %c1_i32_37 = arith.constant 1 : i32
      %109 = vector.broadcast %c1_i32_37 : i32 to vector<16x1xi32>
      %110 = arith.andi %108, %109 : vector<16x1xi32>
      %c1_i32_38 = arith.constant 1 : i32
      %111 = vector.broadcast %c1_i32_38 : i32 to vector<16x1xi32>
      %112 = arith.cmpi eq, %110, %111 : vector<16x1xi32>
      %113 = vector.shape_cast %112 : vector<16x1xi1> to vector<16x1xi1>
      %114 = vector.broadcast %113 : vector<16x1xi1> to vector<16x63xi1>
      %115 = arith.select %114, %106, %103 : vector<16x63xi1>, vector<16x63xf32>
      %116 = vector.extract_strided_slice %115 {offsets = [0, 61], sizes = [16, 2], strides = [1, 1]} : vector<16x63xf32> to vector<16x2xf32>
      %117 = vector.extract_strided_slice %115 {offsets = [0, 0], sizes = [16, 61], strides = [1, 1]} : vector<16x63xf32> to vector<16x61xf32>
      %118 = tpu.concatenate %116, %117 in 1 : vector<16x2xf32>, vector<16x61xf32> -> vector<16x63xf32>
      %c1_i32_39 = arith.constant 1 : i32
      %119 = vector.broadcast %c1_i32_39 : i32 to vector<16x1xi32>
      %120 = arith.shrsi %17, %119 : vector<16x1xi32>
      %c1_i32_40 = arith.constant 1 : i32
      %121 = vector.broadcast %c1_i32_40 : i32 to vector<16x1xi32>
      %122 = arith.andi %120, %121 : vector<16x1xi32>
      %c1_i32_41 = arith.constant 1 : i32
      %123 = vector.broadcast %c1_i32_41 : i32 to vector<16x1xi32>
      %124 = arith.cmpi eq, %122, %123 : vector<16x1xi32>
      %125 = vector.shape_cast %124 : vector<16x1xi1> to vector<16x1xi1>
      %126 = vector.broadcast %125 : vector<16x1xi1> to vector<16x63xi1>
      %127 = arith.select %126, %118, %115 : vector<16x63xi1>, vector<16x63xf32>
      %128 = vector.extract_strided_slice %127 {offsets = [0, 59], sizes = [16, 4], strides = [1, 1]} : vector<16x63xf32> to vector<16x4xf32>
      %129 = vector.extract_strided_slice %127 {offsets = [0, 0], sizes = [16, 59], strides = [1, 1]} : vector<16x63xf32> to vector<16x59xf32>
      %130 = tpu.concatenate %128, %129 in 1 : vector<16x4xf32>, vector<16x59xf32> -> vector<16x63xf32>
      %c2_i32_42 = arith.constant 2 : i32
      %131 = vector.broadcast %c2_i32_42 : i32 to vector<16x1xi32>
      %132 = arith.shrsi %17, %131 : vector<16x1xi32>
      %c1_i32_43 = arith.constant 1 : i32
      %133 = vector.broadcast %c1_i32_43 : i32 to vector<16x1xi32>
      %134 = arith.andi %132, %133 : vector<16x1xi32>
      %c1_i32_44 = arith.constant 1 : i32
      %135 = vector.broadcast %c1_i32_44 : i32 to vector<16x1xi32>
      %136 = arith.cmpi eq, %134, %135 : vector<16x1xi32>
      %137 = vector.shape_cast %136 : vector<16x1xi1> to vector<16x1xi1>
      %138 = vector.broadcast %137 : vector<16x1xi1> to vector<16x63xi1>
      %139 = arith.select %138, %130, %127 : vector<16x63xi1>, vector<16x63xf32>
      %140 = vector.extract_strided_slice %139 {offsets = [0, 55], sizes = [16, 8], strides = [1, 1]} : vector<16x63xf32> to vector<16x8xf32>
      %141 = vector.extract_strided_slice %139 {offsets = [0, 0], sizes = [16, 55], strides = [1, 1]} : vector<16x63xf32> to vector<16x55xf32>
      %142 = tpu.concatenate %140, %141 in 1 : vector<16x8xf32>, vector<16x55xf32> -> vector<16x63xf32>
      %c3_i32_45 = arith.constant 3 : i32
      %143 = vector.broadcast %c3_i32_45 : i32 to vector<16x1xi32>
      %144 = arith.shrsi %17, %143 : vector<16x1xi32>
      %c1_i32_46 = arith.constant 1 : i32
      %145 = vector.broadcast %c1_i32_46 : i32 to vector<16x1xi32>
      %146 = arith.andi %144, %145 : vector<16x1xi32>
      %c1_i32_47 = arith.constant 1 : i32
      %147 = vector.broadcast %c1_i32_47 : i32 to vector<16x1xi32>
      %148 = arith.cmpi eq, %146, %147 : vector<16x1xi32>
      %149 = vector.shape_cast %148 : vector<16x1xi1> to vector<16x1xi1>
      %150 = vector.broadcast %149 : vector<16x1xi1> to vector<16x63xi1>
      %151 = arith.select %150, %142, %139 : vector<16x63xi1>, vector<16x63xf32>
      %152 = vector.extract_strided_slice %151 {offsets = [0, 47], sizes = [16, 16], strides = [1, 1]} : vector<16x63xf32> to vector<16x16xf32>
      %153 = vector.extract_strided_slice %151 {offsets = [0, 0], sizes = [16, 47], strides = [1, 1]} : vector<16x63xf32> to vector<16x47xf32>
      %154 = tpu.concatenate %152, %153 in 1 : vector<16x16xf32>, vector<16x47xf32> -> vector<16x63xf32>
      %c4_i32_48 = arith.constant 4 : i32
      %155 = vector.broadcast %c4_i32_48 : i32 to vector<16x1xi32>
      %156 = arith.shrsi %17, %155 : vector<16x1xi32>
      %c1_i32_49 = arith.constant 1 : i32
      %157 = vector.broadcast %c1_i32_49 : i32 to vector<16x1xi32>
      %158 = arith.andi %156, %157 : vector<16x1xi32>
      %c1_i32_50 = arith.constant 1 : i32
      %159 = vector.broadcast %c1_i32_50 : i32 to vector<16x1xi32>
      %160 = arith.cmpi eq, %158, %159 : vector<16x1xi32>
      %161 = vector.shape_cast %160 : vector<16x1xi1> to vector<16x1xi1>
      %162 = vector.broadcast %161 : vector<16x1xi1> to vector<16x63xi1>
      %163 = arith.select %162, %154, %151 : vector<16x63xi1>, vector<16x63xf32>
      %164 = vector.extract_strided_slice %163 {offsets = [0, 31], sizes = [16, 32], strides = [1, 1]} : vector<16x63xf32> to vector<16x32xf32>
      %165 = arith.addf %102, %164 : vector<16x32xf32>
      %cst_51 = arith.constant dense<0xFF800000> : vector<16xf32>
      %166 = vector.multi_reduction <maximumf>, %165, %cst_51 [1] : vector<16x32xf32> to vector<16xf32>
      %167 = vector.shape_cast %166 : vector<16xf32> to vector<16x1xf32>
      %168 = vector.broadcast %167 : vector<16x1xf32> to vector<16x32xf32>
      %169 = arith.subf %165, %168 : vector<16x32xf32>
      %170 = math.exp %169 : vector<16x32xf32>
      %cst_52 = arith.constant dense<0.000000e+00> : vector<16xf32>
      %171 = vector.multi_reduction <add>, %170, %cst_52 [1] : vector<16x32xf32> to vector<16xf32>
      %172 = vector.shape_cast %171 : vector<16xf32> to vector<16x1xf32>
      %173 = tpu.reciprocal %172 {approx = true} : vector<16x1xf32> -> vector<16x1xf32>
      %174 = vector.broadcast %173 : vector<16x1xf32> to vector<16x32xf32>
      %175 = arith.mulf %170, %174 : vector<16x32xf32>
      %176 = arith.truncf %175 : vector<16x32xf32> to vector<16x32xbf16>
      %cst_53 = arith.constant dense<0.000000e+00> : vector<16x8xf32>
      %177 = tpu.matmul %176, %101, %cst_53 {dimension_numbers = #tpu.dot_dimension_numbers<[1], [0], [0], [1], [0, 0, 1, 1], [], []>} : vector<16x32xbf16>, vector<32x8xbf16>, vector<16x8xf32> -> vector<16x8xf32>
      %178 = arith.truncf %177 : vector<16x8xf32> to vector<16x8xbf16>
      %c0_54 = arith.constant 0 : index
      %c8_55 = arith.constant 8 : index
      %179 = vector.load %arg13[%c0_54, %c8_55] : memref<16x32xbf16, #tpu.memory_space<vmem>>, vector<16x8xbf16>
      tpu.vector_store %arg13[%c0_54, %c8_55], %178 {strides = array<i32>} : memref<16x32xbf16, #tpu.memory_space<vmem>>, vector<16x8xbf16>,
      %180 = vector.extract_strided_slice %13 {offsets = [0, 16], sizes = [16, 8], strides = [1, 1]} : vector<16x32xbf16> to vector<16x8xbf16>
      %c0_56 = arith.constant 0 : index
      %c16 = arith.constant 16 : index
      %181 = vector.load %arg11[%c0_56, %c16] : memref<32x32xbf16, #tpu.memory_space<vmem>>, vector<32x8xbf16>
      %c0_57 = arith.constant 0 : index
      %c16_58 = arith.constant 16 : index
      %182 = vector.load %arg12[%c0_57, %c16_58] : memref<32x32xbf16, #tpu.memory_space<vmem>>, vector<32x8xbf16>
      %cst_59 = arith.constant dense<0.000000e+00> : vector<16x32xf32>
      %183 = tpu.matmul %180, %181, %cst_59 {dimension_numbers = #tpu.dot_dimension_numbers<[1], [1], [0], [0], [0, 0, 1, 0], [], []>} : vector<16x8xbf16>, vector<32x8xbf16>, vector<16x32xf32> -> vector<16x32xf32>
      %cst_60 = arith.constant dense<0.000000e+00> : vector<16x63xf32>
      %184 = tpu.matmul %180, %14, %cst_60 {dimension_numbers = #tpu.dot_dimension_numbers<[1], [1], [0], [0], [0, 0, 1, 0], [], []>} : vector<16x8xbf16>, vector<63x8xbf16>, vector<16x63xf32> -> vector<16x63xf32>
      %185 = vector.extract_strided_slice %184 {offsets = [0, 62], sizes = [16, 1], strides = [1, 1]} : vector<16x63xf32> to vector<16x1xf32>
      %186 = vector.extract_strided_slice %184 {offsets = [0, 0], sizes = [16, 62], strides = [1, 1]} : vector<16x63xf32> to vector<16x62xf32>
      %187 = tpu.concatenate %185, %186 in 1 : vector<16x1xf32>, vector<16x62xf32> -> vector<16x63xf32>
      %c0_i32_61 = arith.constant 0 : i32
      %188 = vector.broadcast %c0_i32_61 : i32 to vector<16x1xi32>
      %189 = arith.shrsi %17, %188 : vector<16x1xi32>
      %c1_i32_62 = arith.constant 1 : i32
      %190 = vector.broadcast %c1_i32_62 : i32 to vector<16x1xi32>
      %191 = arith.andi %189, %190 : vector<16x1xi32>
      %c1_i32_63 = arith.constant 1 : i32
      %192 = vector.broadcast %c1_i32_63 : i32 to vector<16x1xi32>
      %193 = arith.cmpi eq, %191, %192 : vector<16x1xi32>
      %194 = vector.shape_cast %193 : vector<16x1xi1> to vector<16x1xi1>
      %195 = vector.broadcast %194 : vector<16x1xi1> to vector<16x63xi1>
      %196 = arith.select %195, %187, %184 : vector<16x63xi1>, vector<16x63xf32>
      %197 = vector.extract_strided_slice %196 {offsets = [0, 61], sizes = [16, 2], strides = [1, 1]} : vector<16x63xf32> to vector<16x2xf32>
      %198 = vector.extract_strided_slice %196 {offsets = [0, 0], sizes = [16, 61], strides = [1, 1]} : vector<16x63xf32> to vector<16x61xf32>
      %199 = tpu.concatenate %197, %198 in 1 : vector<16x2xf32>, vector<16x61xf32> -> vector<16x63xf32>
      %c1_i32_64 = arith.constant 1 : i32
      %200 = vector.broadcast %c1_i32_64 : i32 to vector<16x1xi32>
      %201 = arith.shrsi %17, %200 : vector<16x1xi32>
      %c1_i32_65 = arith.constant 1 : i32
      %202 = vector.broadcast %c1_i32_65 : i32 to vector<16x1xi32>
      %203 = arith.andi %201, %202 : vector<16x1xi32>
      %c1_i32_66 = arith.constant 1 : i32
      %204 = vector.broadcast %c1_i32_66 : i32 to vector<16x1xi32>
      %205 = arith.cmpi eq, %203, %204 : vector<16x1xi32>
      %206 = vector.shape_cast %205 : vector<16x1xi1> to vector<16x1xi1>
      %207 = vector.broadcast %206 : vector<16x1xi1> to vector<16x63xi1>
      %208 = arith.select %207, %199, %196 : vector<16x63xi1>, vector<16x63xf32>
      %209 = vector.extract_strided_slice %208 {offsets = [0, 59], sizes = [16, 4], strides = [1, 1]} : vector<16x63xf32> to vector<16x4xf32>
      %210 = vector.extract_strided_slice %208 {offsets = [0, 0], sizes = [16, 59], strides = [1, 1]} : vector<16x63xf32> to vector<16x59xf32>
      %211 = tpu.concatenate %209, %210 in 1 : vector<16x4xf32>, vector<16x59xf32> -> vector<16x63xf32>
      %c2_i32_67 = arith.constant 2 : i32
      %212 = vector.broadcast %c2_i32_67 : i32 to vector<16x1xi32>
      %213 = arith.shrsi %17, %212 : vector<16x1xi32>
      %c1_i32_68 = arith.constant 1 : i32
      %214 = vector.broadcast %c1_i32_68 : i32 to vector<16x1xi32>
      %215 = arith.andi %213, %214 : vector<16x1xi32>
      %c1_i32_69 = arith.constant 1 : i32
      %216 = vector.broadcast %c1_i32_69 : i32 to vector<16x1xi32>
      %217 = arith.cmpi eq, %215, %216 : vector<16x1xi32>
      %218 = vector.shape_cast %217 : vector<16x1xi1> to vector<16x1xi1>
      %219 = vector.broadcast %218 : vector<16x1xi1> to vector<16x63xi1>
      %220 = arith.select %219, %211, %208 : vector<16x63xi1>, vector<16x63xf32>
      %221 = vector.extract_strided_slice %220 {offsets = [0, 55], sizes = [16, 8], strides = [1, 1]} : vector<16x63xf32> to vector<16x8xf32>
      %222 = vector.extract_strided_slice %220 {offsets = [0, 0], sizes = [16, 55], strides = [1, 1]} : vector<16x63xf32> to vector<16x55xf32>
      %223 = tpu.concatenate %221, %222 in 1 : vector<16x8xf32>, vector<16x55xf32> -> vector<16x63xf32>
      %c3_i32_70 = arith.constant 3 : i32
      %224 = vector.broadcast %c3_i32_70 : i32 to vector<16x1xi32>
      %225 = arith.shrsi %17, %224 : vector<16x1xi32>
      %c1_i32_71 = arith.constant 1 : i32
      %226 = vector.broadcast %c1_i32_71 : i32 to vector<16x1xi32>
      %227 = arith.andi %225, %226 : vector<16x1xi32>
      %c1_i32_72 = arith.constant 1 : i32
      %228 = vector.broadcast %c1_i32_72 : i32 to vector<16x1xi32>
      %229 = arith.cmpi eq, %227, %228 : vector<16x1xi32>
      %230 = vector.shape_cast %229 : vector<16x1xi1> to vector<16x1xi1>
      %231 = vector.broadcast %230 : vector<16x1xi1> to vector<16x63xi1>
      %232 = arith.select %231, %223, %220 : vector<16x63xi1>, vector<16x63xf32>
      %233 = vector.extract_strided_slice %232 {offsets = [0, 47], sizes = [16, 16], strides = [1, 1]} : vector<16x63xf32> to vector<16x16xf32>
      %234 = vector.extract_strided_slice %232 {offsets = [0, 0], sizes = [16, 47], strides = [1, 1]} : vector<16x63xf32> to vector<16x47xf32>
      %235 = tpu.concatenate %233, %234 in 1 : vector<16x16xf32>, vector<16x47xf32> -> vector<16x63xf32>
      %c4_i32_73 = arith.constant 4 : i32
      %236 = vector.broadcast %c4_i32_73 : i32 to vector<16x1xi32>
      %237 = arith.shrsi %17, %236 : vector<16x1xi32>
      %c1_i32_74 = arith.constant 1 : i32
      %238 = vector.broadcast %c1_i32_74 : i32 to vector<16x1xi32>
      %239 = arith.andi %237, %238 : vector<16x1xi32>
      %c1_i32_75 = arith.constant 1 : i32
      %240 = vector.broadcast %c1_i32_75 : i32 to vector<16x1xi32>
      %241 = arith.cmpi eq, %239, %240 : vector<16x1xi32>
      %242 = vector.shape_cast %241 : vector<16x1xi1> to vector<16x1xi1>
      %243 = vector.broadcast %242 : vector<16x1xi1> to vector<16x63xi1>
      %244 = arith.select %243, %235, %232 : vector<16x63xi1>, vector<16x63xf32>
      %245 = vector.extract_strided_slice %244 {offsets = [0, 31], sizes = [16, 32], strides = [1, 1]} : vector<16x63xf32> to vector<16x32xf32>
      %246 = arith.addf %183, %245 : vector<16x32xf32>
      %cst_76 = arith.constant dense<0xFF800000> : vector<16xf32>
      %247 = vector.multi_reduction <maximumf>, %246, %cst_76 [1] : vector<16x32xf32> to vector<16xf32>
      %248 = vector.shape_cast %247 : vector<16xf32> to vector<16x1xf32>
      %249 = vector.broadcast %248 : vector<16x1xf32> to vector<16x32xf32>
      %250 = arith.subf %246, %249 : vector<16x32xf32>
      %251 = math.exp %250 : vector<16x32xf32>
      %cst_77 = arith.constant dense<0.000000e+00> : vector<16xf32>
      %252 = vector.multi_reduction <add>, %251, %cst_77 [1] : vector<16x32xf32> to vector<16xf32>
      %253 = vector.shape_cast %252 : vector<16xf32> to vector<16x1xf32>
      %254 = tpu.reciprocal %253 {approx = true} : vector<16x1xf32> -> vector<16x1xf32>
      %255 = vector.broadcast %254 : vector<16x1xf32> to vector<16x32xf32>
      %256 = arith.mulf %251, %255 : vector<16x32xf32>
      %257 = arith.truncf %256 : vector<16x32xf32> to vector<16x32xbf16>
      %cst_78 = arith.constant dense<0.000000e+00> : vector<16x8xf32>
      %258 = tpu.matmul %257, %182, %cst_78 {dimension_numbers = #tpu.dot_dimension_numbers<[1], [0], [0], [1], [0, 0, 1, 1], [], []>} : vector<16x32xbf16>, vector<32x8xbf16>, vector<16x8xf32> -> vector<16x8xf32>
      %259 = arith.truncf %258 : vector<16x8xf32> to vector<16x8xbf16>
      %c0_79 = arith.constant 0 : index
      %c16_80 = arith.constant 16 : index
      %260 = vector.load %arg13[%c0_79, %c16_80] : memref<16x32xbf16, #tpu.memory_space<vmem>>, vector<16x8xbf16>
      tpu.vector_store %arg13[%c0_79, %c16_80], %259 {strides = array<i32>} : memref<16x32xbf16, #tpu.memory_space<vmem>>, vector<16x8xbf16>,
      %261 = vector.extract_strided_slice %13 {offsets = [0, 24], sizes = [16, 8], strides = [1, 1]} : vector<16x32xbf16> to vector<16x8xbf16>
      %c0_81 = arith.constant 0 : index
      %c24 = arith.constant 24 : index
      %262 = vector.load %arg11[%c0_81, %c24] : memref<32x32xbf16, #tpu.memory_space<vmem>>, vector<32x8xbf16>
      %c0_82 = arith.constant 0 : index
      %c24_83 = arith.constant 24 : index
      %263 = vector.load %arg12[%c0_82, %c24_83] : memref<32x32xbf16, #tpu.memory_space<vmem>>, vector<32x8xbf16>
      %cst_84 = arith.constant dense<0.000000e+00> : vector<16x32xf32>
      %264 = tpu.matmul %261, %262, %cst_84 {dimension_numbers = #tpu.dot_dimension_numbers<[1], [1], [0], [0], [0, 0, 1, 0], [], []>} : vector<16x8xbf16>, vector<32x8xbf16>, vector<16x32xf32> -> vector<16x32xf32>
      %cst_85 = arith.constant dense<0.000000e+00> : vector<16x63xf32>
      %265 = tpu.matmul %261, %14, %cst_85 {dimension_numbers = #tpu.dot_dimension_numbers<[1], [1], [0], [0], [0, 0, 1, 0], [], []>} : vector<16x8xbf16>, vector<63x8xbf16>, vector<16x63xf32> -> vector<16x63xf32>
      %266 = vector.extract_strided_slice %265 {offsets = [0, 62], sizes = [16, 1], strides = [1, 1]} : vector<16x63xf32> to vector<16x1xf32>
      %267 = vector.extract_strided_slice %265 {offsets = [0, 0], sizes = [16, 62], strides = [1, 1]} : vector<16x63xf32> to vector<16x62xf32>
      %268 = tpu.concatenate %266, %267 in 1 : vector<16x1xf32>, vector<16x62xf32> -> vector<16x63xf32>
      %c0_i32_86 = arith.constant 0 : i32
      %269 = vector.broadcast %c0_i32_86 : i32 to vector<16x1xi32>
      %270 = arith.shrsi %17, %269 : vector<16x1xi32>
      %c1_i32_87 = arith.constant 1 : i32
      %271 = vector.broadcast %c1_i32_87 : i32 to vector<16x1xi32>
      %272 = arith.andi %270, %271 : vector<16x1xi32>
      %c1_i32_88 = arith.constant 1 : i32
      %273 = vector.broadcast %c1_i32_88 : i32 to vector<16x1xi32>
      %274 = arith.cmpi eq, %272, %273 : vector<16x1xi32>
      %275 = vector.shape_cast %274 : vector<16x1xi1> to vector<16x1xi1>
      %276 = vector.broadcast %275 : vector<16x1xi1> to vector<16x63xi1>
      %277 = arith.select %276, %268, %265 : vector<16x63xi1>, vector<16x63xf32>
      %278 = vector.extract_strided_slice %277 {offsets = [0, 61], sizes = [16, 2], strides = [1, 1]} : vector<16x63xf32> to vector<16x2xf32>
      %279 = vector.extract_strided_slice %277 {offsets = [0, 0], sizes = [16, 61], strides = [1, 1]} : vector<16x63xf32> to vector<16x61xf32>
      %280 = tpu.concatenate %278, %279 in 1 : vector<16x2xf32>, vector<16x61xf32> -> vector<16x63xf32>
      %c1_i32_89 = arith.constant 1 : i32
      %281 = vector.broadcast %c1_i32_89 : i32 to vector<16x1xi32>
      %282 = arith.shrsi %17, %281 : vector<16x1xi32>
      %c1_i32_90 = arith.constant 1 : i32
      %283 = vector.broadcast %c1_i32_90 : i32 to vector<16x1xi32>
      %284 = arith.andi %282, %283 : vector<16x1xi32>
      %c1_i32_91 = arith.constant 1 : i32
      %285 = vector.broadcast %c1_i32_91 : i32 to vector<16x1xi32>
      %286 = arith.cmpi eq, %284, %285 : vector<16x1xi32>
      %287 = vector.shape_cast %286 : vector<16x1xi1> to vector<16x1xi1>
      %288 = vector.broadcast %287 : vector<16x1xi1> to vector<16x63xi1>
      %289 = arith.select %288, %280, %277 : vector<16x63xi1>, vector<16x63xf32>
      %290 = vector.extract_strided_slice %289 {offsets = [0, 59], sizes = [16, 4], strides = [1, 1]} : vector<16x63xf32> to vector<16x4xf32>
      %291 = vector.extract_strided_slice %289 {offsets = [0, 0], sizes = [16, 59], strides = [1, 1]} : vector<16x63xf32> to vector<16x59xf32>
      %292 = tpu.concatenate %290, %291 in 1 : vector<16x4xf32>, vector<16x59xf32> -> vector<16x63xf32>
      %c2_i32_92 = arith.constant 2 : i32
      %293 = vector.broadcast %c2_i32_92 : i32 to vector<16x1xi32>
      %294 = arith.shrsi %17, %293 : vector<16x1xi32>
      %c1_i32_93 = arith.constant 1 : i32
      %295 = vector.broadcast %c1_i32_93 : i32 to vector<16x1xi32>
      %296 = arith.andi %294, %295 : vector<16x1xi32>
      %c1_i32_94 = arith.constant 1 : i32
      %297 = vector.broadcast %c1_i32_94 : i32 to vector<16x1xi32>
      %298 = arith.cmpi eq, %296, %297 : vector<16x1xi32>
      %299 = vector.shape_cast %298 : vector<16x1xi1> to vector<16x1xi1>
      %300 = vector.broadcast %299 : vector<16x1xi1> to vector<16x63xi1>
      %301 = arith.select %300, %292, %289 : vector<16x63xi1>, vector<16x63xf32>
      %302 = vector.extract_strided_slice %301 {offsets = [0, 55], sizes = [16, 8], strides = [1, 1]} : vector<16x63xf32> to vector<16x8xf32>
      %303 = vector.extract_strided_slice %301 {offsets = [0, 0], sizes = [16, 55], strides = [1, 1]} : vector<16x63xf32> to vector<16x55xf32>
      %304 = tpu.concatenate %302, %303 in 1 : vector<16x8xf32>, vector<16x55xf32> -> vector<16x63xf32>
      %c3_i32_95 = arith.constant 3 : i32
      %305 = vector.broadcast %c3_i32_95 : i32 to vector<16x1xi32>
      %306 = arith.shrsi %17, %305 : vector<16x1xi32>
      %c1_i32_96 = arith.constant 1 : i32
      %307 = vector.broadcast %c1_i32_96 : i32 to vector<16x1xi32>
      %308 = arith.andi %306, %307 : vector<16x1xi32>
      %c1_i32_97 = arith.constant 1 : i32
      %309 = vector.broadcast %c1_i32_97 : i32 to vector<16x1xi32>
      %310 = arith.cmpi eq, %308, %309 : vector<16x1xi32>
      %311 = vector.shape_cast %310 : vector<16x1xi1> to vector<16x1xi1>
      %312 = vector.broadcast %311 : vector<16x1xi1> to vector<16x63xi1>
      %313 = arith.select %312, %304, %301 : vector<16x63xi1>, vector<16x63xf32>
      %314 = vector.extract_strided_slice %313 {offsets = [0, 47], sizes = [16, 16], strides = [1, 1]} : vector<16x63xf32> to vector<16x16xf32>
      %315 = vector.extract_strided_slice %313 {offsets = [0, 0], sizes = [16, 47], strides = [1, 1]} : vector<16x63xf32> to vector<16x47xf32>
      %316 = tpu.concatenate %314, %315 in 1 : vector<16x16xf32>, vector<16x47xf32> -> vector<16x63xf32>
      %c4_i32_98 = arith.constant 4 : i32
      %317 = vector.broadcast %c4_i32_98 : i32 to vector<16x1xi32>
      %318 = arith.shrsi %17, %317 : vector<16x1xi32>
      %c1_i32_99 = arith.constant 1 : i32
      %319 = vector.broadcast %c1_i32_99 : i32 to vector<16x1xi32>
      %320 = arith.andi %318, %319 : vector<16x1xi32>
      %c1_i32_100 = arith.constant 1 : i32
      %321 = vector.broadcast %c1_i32_100 : i32 to vector<16x1xi32>
      %322 = arith.cmpi eq, %320, %321 : vector<16x1xi32>
      %323 = vector.shape_cast %322 : vector<16x1xi1> to vector<16x1xi1>
      %324 = vector.broadcast %323 : vector<16x1xi1> to vector<16x63xi1>
      %325 = arith.select %324, %316, %313 : vector<16x63xi1>, vector<16x63xf32>
      %326 = vector.extract_strided_slice %325 {offsets = [0, 31], sizes = [16, 32], strides = [1, 1]} : vector<16x63xf32> to vector<16x32xf32>
      %327 = arith.addf %264, %326 : vector<16x32xf32>
      %cst_101 = arith.constant dense<0xFF800000> : vector<16xf32>
      %328 = vector.multi_reduction <maximumf>, %327, %cst_101 [1] : vector<16x32xf32> to vector<16xf32>
      %329 = vector.shape_cast %328 : vector<16xf32> to vector<16x1xf32>
      %330 = vector.broadcast %329 : vector<16x1xf32> to vector<16x32xf32>
      %331 = arith.subf %327, %330 : vector<16x32xf32>
      %332 = math.exp %331 : vector<16x32xf32>
      %cst_102 = arith.constant dense<0.000000e+00> : vector<16xf32>
      %333 = vector.multi_reduction <add>, %332, %cst_102 [1] : vector<16x32xf32> to vector<16xf32>
      %334 = vector.shape_cast %333 : vector<16xf32> to vector<16x1xf32>
      %335 = tpu.reciprocal %334 {approx = true} : vector<16x1xf32> -> vector<16x1xf32>
      %336 = vector.broadcast %335 : vector<16x1xf32> to vector<16x32xf32>
      %337 = arith.mulf %332, %336 : vector<16x32xf32>
      %338 = arith.truncf %337 : vector<16x32xf32> to vector<16x32xbf16>
      %cst_103 = arith.constant dense<0.000000e+00> : vector<16x8xf32>
      %339 = tpu.matmul %338, %263, %cst_103 {dimension_numbers = #tpu.dot_dimension_numbers<[1], [0], [0], [1], [0, 0, 1, 1], [], []>} : vector<16x32xbf16>, vector<32x8xbf16>, vector<16x8xf32> -> vector<16x8xf32>
      %340 = arith.truncf %339 : vector<16x8xf32> to vector<16x8xbf16>
      %c0_104 = arith.constant 0 : index
      %c24_105 = arith.constant 24 : index
      %341 = vector.load %arg13[%c0_104, %c24_105] : memref<16x32xbf16, #tpu.memory_space<vmem>>, vector<16x8xbf16>
      tpu.vector_store %arg13[%c0_104, %c24_105], %340 {strides = array<i32>} : memref<16x32xbf16, #tpu.memory_space<vmem>>, vector<16x8xbf16>,
      %c0_106 = arith.constant 0 : index
      %c0_107 = arith.constant 0 : index
      %342 = vector.load %arg13[%c0_106, %c0_107] : memref<16x32xbf16, #tpu.memory_space<vmem>>, vector<16x32xbf16>
      %c0_108 = arith.constant 0 : index
      %c0_109 = arith.constant 0 : index
      %343 = vector.load %arg7[%c0_108, %c0_109] : memref<32x32xbf16, #tpu.memory_space<vmem>>, vector<32x32xbf16>
      %cst_110 = arith.constant dense<0.000000e+00> : vector<16x32xf32>
      %344 = tpu.matmul %342, %343, %cst_110 {dimension_numbers = #tpu.dot_dimension_numbers<[1], [0], [0], [1], [0, 0, 1, 1], [], []>} : vector<16x32xbf16>, vector<32x32xbf16>, vector<16x32xf32> -> vector<16x32xf32>
      %345 = arith.addf %344, %10 : vector<16x32xf32>
      %cst_111 = arith.constant dense<0.000000e+00> : vector<16xf32>
      %346 = vector.multi_reduction <add>, %345, %cst_111 [1] : vector<16x32xf32> to vector<16xf32>
      %347 = vector.shape_cast %346 : vector<16xf32> to vector<16x1xf32>
      %cst_112 = arith.constant 3.200000e+01 : f32
      %348 = vector.broadcast %cst_112 : f32 to vector<16x1xf32>
      %349 = arith.divf %347, %348 : vector<16x1xf32>
      %350 = vector.broadcast %349 : vector<16x1xf32> to vector<16x32xf32>
      %351 = arith.subf %345, %350 : vector<16x32xf32>
      %352 = arith.mulf %351, %351 : vector<16x32xf32>
      %cst_113 = arith.constant dense<0.000000e+00> : vector<16xf32>
      %353 = vector.multi_reduction <add>, %352, %cst_113 [1] : vector<16x32xf32> to vector<16xf32>
      %354 = vector.shape_cast %353 : vector<16xf32> to vector<16x1xf32>
      %cst_114 = arith.constant 3.200000e+01 : f32
      %355 = vector.broadcast %cst_114 : f32 to vector<16x1xf32>
      %356 = arith.divf %354, %355 : vector<16x1xf32>
      %357 = vector.broadcast %349 : vector<16x1xf32> to vector<16x32xf32>
      %358 = arith.subf %345, %357 : vector<16x32xf32>
      %cst_115 = arith.constant 9.99999974E-6 : f32
      %359 = vector.broadcast %cst_115 : f32 to vector<16x1xf32>
      %360 = arith.addf %356, %359 : vector<16x1xf32>
      %361 = math.rsqrt %360 : vector<16x1xf32>
      %362 = vector.broadcast %361 : vector<16x1xf32> to vector<16x32xf32>
      %363 = arith.mulf %358, %362 : vector<16x32xf32>
      %c0_116 = arith.constant 0 : index
      %c0_117 = arith.constant 0 : index
      %364 = vector.load %arg8[%c0_116, %c0_117] : memref<1x32xf32, #tpu.memory_space<vmem>>, vector<1x32xf32>
      %365 = vector.broadcast %364 : vector<1x32xf32> to vector<16x32xf32>
      %366 = arith.mulf %363, %365 : vector<16x32xf32>
      %c0_118 = arith.constant 0 : index
      %c0_119 = arith.constant 0 : index
      %367 = vector.load %arg9[%c0_118, %c0_119] : memref<1x32xf32, #tpu.memory_space<vmem>>, vector<1x32xf32>
      %368 = vector.broadcast %367 : vector<1x32xf32> to vector<16x32xf32>
      %369 = arith.addf %366, %368 : vector<16x32xf32>
      %370 = arith.truncf %369 : vector<16x32xf32> to vector<16x32xbf16>
      %c0_120 = arith.constant 0 : index
      %c0_121 = arith.constant 0 : index
      %c0_122 = arith.constant 0 : index
      %371 = vector.load %arg10[%c0_120, %c0_121, %c0_122] : memref<1x16x32xbf16, #tpu.memory_space<vmem>>, vector<1x16x32xbf16>
      %372 = vector.shape_cast %371 : vector<1x16x32xbf16> to vector<16x32xbf16>
      %373 = vector.shape_cast %370 : vector<16x32xbf16> to vector<1x16x32xbf16>
      tpu.vector_store %arg10[%c0_120, %c0_121, %c0_122], %373 {strides = array<i32>} : memref<1x16x32xbf16, #tpu.memory_space<vmem>>, vector<1x16x32xbf16>,
    } else {
    }
    return
  }
  func.func @transform_0(%arg0: i32, %arg1: i32, %arg2: i32) -> (i32, i32, i32) {
    %c0_i32 = arith.constant 0 : i32
    %c0_i32_0 = arith.constant 0 : i32
    return %arg0, %arg2, %c0_i32 : i32, i32, i32
  }
  func.func @transform_1(%arg0: i32, %arg1: i32, %arg2: i32) -> (i32, i32) {
    %c0_i32 = arith.constant 0 : i32
    %c0_i32_0 = arith.constant 0 : i32
    %c0_i32_1 = arith.constant 0 : i32
    return %c0_i32, %c0_i32_0 : i32, i32
  }
  func.func @transform_2(%arg0: i32, %arg1: i32, %arg2: i32) -> (i32, i32) {
    %c0_i32 = arith.constant 0 : i32
    %c0_i32_0 = arith.constant 0 : i32
    %c0_i32_1 = arith.constant 0 : i32
    return %c0_i32, %c0_i32_0 : i32, i32
  }
  func.func @transform_3(%arg0: i32, %arg1: i32, %arg2: i32) -> (i32, i32) {
    %c0_i32 = arith.constant 0 : i32
    %c0_i32_0 = arith.constant 0 : i32
    %c0_i32_1 = arith.constant 0 : i32
    return %c0_i32, %c0_i32_0 : i32, i32
  }
  func.func @transform_4(%arg0: i32, %arg1: i32, %arg2: i32) -> (i32, i32) {
    %c0_i32 = arith.constant 0 : i32
    %c0_i32_0 = arith.constant 0 : i32
    %c0_i32_1 = arith.constant 0 : i32
    return %c0_i32, %c0_i32_0 : i32, i32
  }
  func.func @transform_5(%arg0: i32, %arg1: i32, %arg2: i32) -> (i32, i32) {
    %c0_i32 = arith.constant 0 : i32
    %c0_i32_0 = arith.constant 0 : i32
    %c0_i32_1 = arith.constant 0 : i32
    return %c0_i32, %c0_i32_0 : i32, i32
  }
  func.func @transform_6(%arg0: i32, %arg1: i32, %arg2: i32) -> (i32, i32) {
    %c0_i32 = arith.constant 0 : i32
    %c0_i32_0 = arith.constant 0 : i32
    %c0_i32_1 = arith.constant 0 : i32
    return %c0_i32, %c0_i32_0 : i32, i32
  }
  func.func @transform_7(%arg0: i32, %arg1: i32, %arg2: i32) -> (i32, i32, i32) {
    %0 = arith.muli %arg2, %arg1 : i32
    %c0_i32 = arith.constant 0 : i32
    %c0_i32_0 = arith.constant 0 : i32
    return %arg0, %0, %c0_i32 : i32, i32, i32
  }
}

</mosaic_0001>

<llo_original>
// kernel: tpu_custom_call.1
$region0: #{tpu_custom_call.1}
  #allocation0 [shape = 'u32[]', space=smem, size = 0x4, offset = 0x4, fixed_abs, tag = 'smem constant byte address 0x4 - core index']
  #allocation1 [shape = 'u32[144,128]{1,0:T(1,128)}', space=vmem, size = 0x12000, scoped, tag = 'internal scratch']
  #allocation2 [shape = 'bf16[32,32]{1,0:T(8,128)(2,1)}', space=vmem, size = 0x2000, scoped, tag = 'scratch operand']
  #allocation3 [shape = 'bf16[32,32]{1,0:T(8,128)(2,1)}', space=vmem, size = 0x2000, scoped, tag = 'scratch operand']
  #allocation4 [shape = 'bf16[16,32]{1,0:T(8,128)(2,1)}', space=vmem, size = 0x1000, scoped, tag = 'scratch operand']
  %s0 = inlined_call_operand.vmem [shape: bf16[2,32,32], index: 0, kind: input, shape index: {}]
  %s1 = inlined_call_operand.hbm [shape: bf16[32,32], index: 1, kind: input, shape index: {}]
  %s2 = inlined_call_operand.hbm [shape: bf16[32,64], index: 2, kind: input, shape index: {}]
  %s3 = inlined_call_operand.vmem [shape: bf16[63,8], index: 3, kind: input, shape index: {}]
  %s4 = inlined_call_operand.hbm [shape: bf16[32,32], index: 4, kind: input, shape index: {}]
  %s5 = inlined_call_operand.vmem [shape: f32[1,32], index: 5, kind: input, shape index: {}]
  %s6 = inlined_call_operand.vmem [shape: f32[1,32], index: 6, kind: input, shape index: {}]
  %s7 = inlined_call_operand.hbm [shape: bf16[2,32,32], index: 7, kind: output, shape index: {}]
  %s8 = sld [smem:[#allocation0]]
  $region81: #{tpu_custom_call.1} parent=0
    _
  %s10 = ssub.s32 1, %s8
  %s11 = scalar_select 0, %s10, %s8
  $region1: #{tpu_custom_call.1} parent=0
    #allocation5 [shape = 'u8[8192]{0}', space=vmem, size = 0x2000, scoped, tag = 'input window, operand 1, single buffered']
    #allocation6 [shape = 's32[2]{0}', space=sflag, size = 0x8, scoped, tag = 'scoped memory for tpu_custom_call.1']
    #allocation7 [shape = 's32[2]{0}', space=sflag, size = 0x8, scoped, tag = 'scoped memory for tpu_custom_call.1']
    #allocation8 [shape = 'u8[8192]{0}', space=vmem, size = 0x2000, scoped, tag = 'input window, operand 2, single buffered']
    #allocation9 [shape = 's32[1]{0}', space=sflag, size = 0x4, scoped, tag = 'scoped memory for tpu_custom_call.1']
    #allocation10 [shape = 'u8[8192]{0}', space=vmem, size = 0x2000, scoped, tag = 'input window, operand 4, single buffered']
    #allocation11 [shape = 'u8[8192]{0}', space=vmem, size = 0x2000, scoped, tag = 'output window, operand 0']
    %12 = vsyncpa [#allocation6], 0
    %13 = vsyncpa [#allocation9], 0
    %14 = vsyncpa [#allocation7], 0
    %s15 = scalar_lea.sflag [#allocation7], 1
    %16 = vsyncpa %s15, 0
    loop: start=0, step=1, limit=10
    $region2: #{tpu_custom_call.1} parent=1 // loop_pre_header
      _
    $region3: #{tpu_custom_call.1} parent=1 // loop_header
      %s18 = sphi 0, %s22
      %p19 = scmp.ge.s32.totalorder %s18, 10
      %s25 = sphi 0, %s44
      %s26 = sphi 0, %s40
      %s27 = sphi 0, %s36
      %s28 = sphi 0, %s25
      %s29 = sphi 0, %s26
      %s30 = sphi 0, %s27
      %s31 = sphi 0, %s28
      %s32 = sphi 0, %s29
      %s33 = sphi 0, %s30
      %s49 = sphi 0, %s51
      %s52 = sphi 0, %s49
      %s53 = sphi 0, %s52
      %s69 = sphi 0, %s53
      %s73 = sphi 0, %s73
      %s75 = sphi 0, %s73
      %s76 = sphi 0, %s75
      %s90 = sphi 0, %s76
      %s94 = sphi 0, %s94
      %s96 = sphi 0, %s94
      %s97 = sphi 0, %s96
      %s111 = sphi 0, %s97
      %s115 = sphi 0, %s115
      %s117 = sphi 0, %s115
      %s118 = sphi 0, %s117
      %s132 = sphi 0, %s118
      %s136 = sphi 0, %s136
      %s138 = sphi 0, %s136
      %s139 = sphi 0, %s138
      %s153 = sphi 0, %s139
      %s157 = sphi 0, %s157
      %s159 = sphi 0, %s157
      %s160 = sphi 0, %s159
      %s174 = sphi 0, %s160
      %s178 = sphi 0, %s178
      %s180 = sphi 0, %s178
      %s181 = sphi 0, %s180
      %s195 = sphi 0, %s181
      %s205 = sphi 0, %s207
      %s208 = sphi 0, %s205
      %s209 = sphi 0, %s208
      %s225 = sphi 0, %s209
    $region4: #{tpu_custom_call.1} parent=1 // loop_header_branch
      %21 = sbr.rel (%p19) target = $region8
    $region5: #{tpu_custom_call.1} parent=1 // loop_body
      %s23 = ssub.s32 %s18, 1
      %s24 = ssub.s32 %s18, 2
      %s34 = sadd.s32 1, %s27
      %p35 = scmp.ge.s32.totalorder %s34, 2
      %s36 = scalar_select %p35, 0, %s34
      %s37 = sadd.s32 1, %s26
      %s38 = scalar_select %p35, %s37, %s26
      %p39 = scmp.ge.s32.totalorder %s38, 2
      %s40 = scalar_select %p39, 0, %s38
      %s41 = sadd.s32 1, %s25
      %s42 = scalar_select %p39, %s41, %s25
      %p43 = scmp.ge.s32.totalorder %s42, 2
      %s44 = scalar_select %p43, 0, %s42
      %s45 = ssub.s32 %s25, %s44
      %s46 = ssub.s32 %s27, %s36
      %s47 = sor.u32 %s45, %s46
      %p48 = scmp.eq.s32.totalorder %s47, 0
      %s50 = sadd.s32 %s49, 1
      %s51 = scalar_select %p48, %s49, %s50
      %p54 = pneg %p48
      %p55 = scmp.eq.s32.totalorder %s18, 7
      %p56 = por %p54, %p55
      %p57 = scmp.ne.s32.totalorder %s49, %s52
      %p58 = scmp.eq.s32.totalorder %s18, 0
      %p59 = por %p57, %p58
      %p60 = scmp.ne.s32.totalorder %s49, %s52
      %p61 = scmp.eq.s32.totalorder %s23, 7
      %p62 = por %p60, %p61
      %p63 = scmp.ne.s32.totalorder %s52, %s53
      %p64 = scmp.eq.s32.totalorder %s23, 0
      %p65 = por %p63, %p64
      %p66 = scmp.ne.s32.totalorder %s52, %s53
      %p67 = scmp.eq.s32.totalorder %s24, 7
      %p68 = por %p66, %p67
      %p70 = scmp.ne.s32.totalorder %s53, %s69
      %p71 = scmp.eq.s32.totalorder %s24, 0
      %p72 = por %p70, %p71
      %s74 = sadd.s32 %s73, 1
      %p77 = scmp.eq.s32.totalorder %s18, 7
      %p78 = scmp.ne.s32.totalorder %s73, %s75
      %p79 = scmp.eq.s32.totalorder %s18, 0
      %p80 = por %p78, %p79
      %p81 = scmp.ne.s32.totalorder %s73, %s75
      %p82 = scmp.eq.s32.totalorder %s23, 7
      %p83 = por %p81, %p82
      %p84 = scmp.ne.s32.totalorder %s75, %s76
      %p85 = scmp.eq.s32.totalorder %s23, 0
      %p86 = por %p84, %p85
      %p87 = scmp.ne.s32.totalorder %s75, %s76
      %p88 = scmp.eq.s32.totalorder %s24, 7
      %p89 = por %p87, %p88
      %p91 = scmp.ne.s32.totalorder %s76, %s90
      %p92 = scmp.eq.s32.totalorder %s24, 0
      %p93 = por %p91, %p92
      %s95 = sadd.s32 %s94, 1
      %p98 = scmp.eq.s32.totalorder %s18, 7
      %p99 = scmp.ne.s32.totalorder %s94, %s96
      %p100 = scmp.eq.s32.totalorder %s18, 0
      %p101 = por %p99, %p100
      %p102 = scmp.ne.s32.totalorder %s94, %s96
      %p103 = scmp.eq.s32.totalorder %s23, 7
      %p104 = por %p102, %p103
      %p105 = scmp.ne.s32.totalorder %s96, %s97
      %p106 = scmp.eq.s32.totalorder %s23, 0
      %p107 = por %p105, %p106
      %p108 = scmp.ne.s32.totalorder %s96, %s97
      %p109 = scmp.eq.s32.totalorder %s24, 7
      %p110 = por %p108, %p109
      %p112 = scmp.ne.s32.totalorder %s97, %s111
      %p113 = scmp.eq.s32.totalorder %s24, 0
      %p114 = por %p112, %p113
      %s116 = sadd.s32 %s115, 1
      %p119 = scmp.eq.s32.totalorder %s18, 7
      %p120 = scmp.ne.s32.totalorder %s115, %s117
      %p121 = scmp.eq.s32.totalorder %s18, 0
      %p122 = por %p120, %p121
      %p123 = scmp.ne.s32.totalorder %s115, %s117
      %p124 = scmp.eq.s32.totalorder %s23, 7
      %p125 = por %p123, %p124
      %p126 = scmp.ne.s32.totalorder %s117, %s118
      %p127 = scmp.eq.s32.totalorder %s23, 0
      %p128 = por %p126, %p127
      %p129 = scmp.ne.s32.totalorder %s117, %s118
      %p130 = scmp.eq.s32.totalorder %s24, 7
      %p131 = por %p129, %p130
      %p133 = scmp.ne.s32.totalorder %s118, %s132
      %p134 = scmp.eq.s32.totalorder %s24, 0
      %p135 = por %p133, %p134
      %s137 = sadd.s32 %s136, 1
      %p140 = scmp.eq.s32.totalorder %s18, 7
      %p141 = scmp.ne.s32.totalorder %s136, %s138
      %p142 = scmp.eq.s32.totalorder %s18, 0
      %p143 = por %p141, %p142
      %p144 = scmp.ne.s32.totalorder %s136, %s138
      %p145 = scmp.eq.s32.totalorder %s23, 7
      %p146 = por %p144, %p145
      %p147 = scmp.ne.s32.totalorder %s138, %s139
      %p148 = scmp.eq.s32.totalorder %s23, 0
      %p149 = por %p147, %p148
      %p150 = scmp.ne.s32.totalorder %s138, %s139
      %p151 = scmp.eq.s32.totalorder %s24, 7
      %p152 = por %p150, %p151
      %p154 = scmp.ne.s32.totalorder %s139, %s153
      %p155 = scmp.eq.s32.totalorder %s24, 0
      %p156 = por %p154, %p155
      %s158 = sadd.s32 %s157, 1
      %p161 = scmp.eq.s32.totalorder %s18, 7
      %p162 = scmp.ne.s32.totalorder %s157, %s159
      %p163 = scmp.eq.s32.totalorder %s18, 0
      %p164 = por %p162, %p163
      %p165 = scmp.ne.s32.totalorder %s157, %s159
      %p166 = scmp.eq.s32.totalorder %s23, 7
      %p167 = por %p165, %p166
      %p168 = scmp.ne.s32.totalorder %s159, %s160
      %p169 = scmp.eq.s32.totalorder %s23, 0
      %p170 = por %p168, %p169
      %p171 = scmp.ne.s32.totalorder %s159, %s160
      %p172 = scmp.eq.s32.totalorder %s24, 7
      %p173 = por %p171, %p172
      %p175 = scmp.ne.s32.totalorder %s160, %s174
      %p176 = scmp.eq.s32.totalorder %s24, 0
      %p177 = por %p175, %p176
      %s179 = sadd.s32 %s178, 1
      %p182 = scmp.eq.s32.totalorder %s18, 7
      %p183 = scmp.ne.s32.totalorder %s178, %s180
      %p184 = scmp.eq.s32.totalorder %s18, 0
      %p185 = por %p183, %p184
      %p186 = scmp.ne.s32.totalorder %s178, %s180
      %p187 = scmp.eq.s32.totalorder %s23, 7
      %p188 = por %p186, %p187
      %p189 = scmp.ne.s32.totalorder %s180, %s181
      %p190 = scmp.eq.s32.totalorder %s23, 0
      %p191 = por %p189, %p190
      %p192 = scmp.ne.s32.totalorder %s180, %s181
      %p193 = scmp.eq.s32.totalorder %s24, 7
      %p194 = por %p192, %p193
      %p196 = scmp.ne.s32.totalorder %s181, %s195
      %p197 = scmp.eq.s32.totalorder %s24, 0
      %p198 = por %p196, %p197
      %s199 = smul.u32 %s27, %s26
      %s200 = smul.u32 %s36, %s40
      %s201 = ssub.s32 %s25, %s44
      %s202 = ssub.s32 %s199, %s200
      %s203 = sor.u32 %s201, %s202
      %p204 = scmp.eq.s32.totalorder %s203, 0
      %s206 = sadd.s32 %s205, 1
      %s207 = scalar_select %p204, %s205, %s206
      %p210 = pneg %p204
      %p211 = scmp.eq.s32.totalorder %s18, 7
      %p212 = por %p210, %p211
      %p213 = scmp.ne.s32.totalorder %s205, %s208
      %p214 = scmp.eq.s32.totalorder %s18, 0
      %p215 = por %p213, %p214
      %p216 = scmp.ne.s32.totalorder %s205, %s208
      %p217 = scmp.eq.s32.totalorder %s23, 7
      %p218 = por %p216, %p217
      %p219 = scmp.ne.s32.totalorder %s208, %s209
      %p220 = scmp.eq.s32.totalorder %s23, 0
      %p221 = por %p219, %p220
      %p222 = scmp.ne.s32.totalorder %s208, %s209
      %p223 = scmp.eq.s32.totalorder %s24, 7
      %p224 = por %p222, %p223
      %p226 = scmp.ne.s32.totalorder %s209, %s225
      %p227 = scmp.eq.s32.totalorder %s24, 0
      %p228 = por %p226, %p227
      %p229 = scmp.le.s32.totalorder 1, %s18
      %p230 = scmp.lt.s32.totalorder %s18, 9
      %p231 = pnand %p229, %p230
      %p232 = pneg %p231
      // Predicated region
      $region9: #{tpu_custom_call.1} parent=5 // pred_check
        _
      $region10: #{tpu_custom_call.1} parent=5 // pred_check_branch
        %234 = sbr.rel (%p231) target = $region12
      $region11: #{tpu_custom_call.1} parent=5 // pred_region
        %s235 = ssub.s32 %s18, 1
        // Predicated region
        $region13: #{tpu_custom_call.1} parent=11 // pred_check
          %p236 = pneg %p86
        $region14: #{tpu_custom_call.1} parent=11 // pred_check_branch
          %238 = sbr.rel (%p236) target = $region16
        $region15: #{tpu_custom_call.1} parent=11 // pred_region
          %s240 = ssub.s32 256, 256
          %241 = vsyncadd [#allocation6], %s240
          %s242 = sshll.u32 [#allocation5], 4
          %s243 = int_to_ptr.vmem [resolvable:$true] %s242
          %248 = dma.hbm_to_vmem [thread:$0]  %s1, 256, %s243, [#allocation6], 64, 64, 4
        $region16: #{tpu_custom_call.1} parent=11 // pred_fallthru
          _
        // Predicated region
        $region17: #{tpu_custom_call.1} parent=11 // pred_check
          %p249 = pneg %p107
        $region18: #{tpu_custom_call.1} parent=11 // pred_check_branch
          %251 = sbr.rel (%p249) target = $region20
        $region19: #{tpu_custom_call.1} parent=11 // pred_region
          %s253 = ssub.s32 256, 256
          %254 = vsyncadd [#allocation9], %s253
          %s255 = sshll.u32 [#allocation8], 4
          %s256 = int_to_ptr.vmem [resolvable:$true] %s255
          %261 = dma.hbm_to_vmem [thread:$0]  %s2, 256, %s256, [#allocation9], 64, 64, 4
        $region20: #{tpu_custom_call.1} parent=11 // pred_fallthru
          _
        // Predicated region
        $region21: #{tpu_custom_call.1} parent=11 // pred_check
          %p262 = pneg %p128
        $region22: #{tpu_custom_call.1} parent=11 // pred_check_branch
          %264 = sbr.rel (%p262) target = $region24
        $region23: #{tpu_custom_call.1} parent=11 // pred_region
          _
        $region24: #{tpu_custom_call.1} parent=11 // pred_fallthru
          _
        // Predicated region
        $region25: #{tpu_custom_call.1} parent=11 // pred_check
          %p265 = pneg %p149
        $region26: #{tpu_custom_call.1} parent=11 // pred_check_branch
          %267 = sbr.rel (%p265) target = $region28
        $region27: #{tpu_custom_call.1} parent=11 // pred_region
          %s269 = ssub.s32 256, 256
          %270 = vsyncadd [#allocation9], %s269
          %s271 = sshll.u32 [#allocation10], 4
          %s272 = int_to_ptr.vmem [resolvable:$true] %s271
          %277 = dma.hbm_to_vmem [thread:$0]  %s4, 256, %s272, [#allocation9], 64, 64, 4
        $region28: #{tpu_custom_call.1} parent=11 // pred_fallthru
          _
        // Predicated region
        $region29: #{tpu_custom_call.1} parent=11 // pred_check
          %p278 = pneg %p170
        $region30: #{tpu_custom_call.1} parent=11 // pred_check_branch
          %280 = sbr.rel (%p278) target = $region32
        $region31: #{tpu_custom_call.1} parent=11 // pred_region
          _
        $region32: #{tpu_custom_call.1} parent=11 // pred_fallthru
          _
        // Predicated region
        $region33: #{tpu_custom_call.1} parent=11 // pred_check
          %p281 = pneg %p191
        $region34: #{tpu_custom_call.1} parent=11 // pred_check_branch
          %283 = sbr.rel (%p281) target = $region36
        $region35: #{tpu_custom_call.1} parent=11 // pred_region
          _
        $region36: #{tpu_custom_call.1} parent=11 // pred_fallthru
          _
      $region12: #{tpu_custom_call.1} parent=5 // pred_fallthru
        _
      %p284 = scmp.lt.s32.totalorder %s18, 8
      // Predicated region
      $region37: #{tpu_custom_call.1} parent=5 // pred_check
        %p285 = pneg %p284
      $region38: #{tpu_custom_call.1} parent=5 // pred_check_branch
        %287 = sbr.rel (%p285) target = $region40
      $region39: #{tpu_custom_call.1} parent=5 // pred_region
        // Predicated region
        $region41: #{tpu_custom_call.1} parent=39 // pred_check
          %p288 = pneg %p59
        $region42: #{tpu_custom_call.1} parent=39 // pred_check_branch
          %290 = sbr.rel (%p288) target = $region44
        $region43: #{tpu_custom_call.1} parent=39 // pred_region
          %s291 = smul.u32 2, %s27
          %p292 = scmp.lt.s32.totalorder %s25, 1
          %s293 = scalar_select %p292, %s25, 1
          %p294 = scmp.lt.s32.totalorder %s291, 3
          %s295 = scalar_select %p294, %s291, 3
          %s296 = smul.addr %s293, 4
          %s297 = sadd.s32 %s295, %s296
          %s298 = smul.addr %s297, 4
          %s299 = scalar_lea.vmem %s0, %s298
          %s300 = smul.u32 2, %s27
        $region44: #{tpu_custom_call.1} parent=39 // pred_fallthru
          _
      $region40: #{tpu_custom_call.1} parent=5 // pred_fallthru
        _
      %p301 = scmp.le.s32.totalorder 1, %s18
      %p302 = scmp.lt.s32.totalorder %s18, 9
      %p303 = pnand %p301, %p302
      %p304 = pneg %p303
      // Predicated region
      $region45: #{tpu_custom_call.1} parent=5 // pred_check
        _
      $region46: #{tpu_custom_call.1} parent=5 // pred_check_branch
        %306 = sbr.rel (%p303) target = $region48
      $region47: #{tpu_custom_call.1} parent=5 // pred_region
        %s307 = ssub.s32 %s18, 1
        // Predicated region
        $region49: #{tpu_custom_call.1} parent=47 // pred_check
          %p308 = pneg %p86
        $region50: #{tpu_custom_call.1} parent=47 // pred_check_branch
          %310 = sbr.rel (%p308) target = $region52
        $region51: #{tpu_custom_call.1} parent=47 // pred_region
          %311 = dma.done [#allocation6], 256
        $region52: #{tpu_custom_call.1} parent=47 // pred_fallthru
          _
        // Predicated region
        $region53: #{tpu_custom_call.1} parent=47 // pred_check
          %p312 = pneg %p107
        $region54: #{tpu_custom_call.1} parent=47 // pred_check_branch
          %314 = sbr.rel (%p312) target = $region56
        $region55: #{tpu_custom_call.1} parent=47 // pred_region
          %315 = dma.done [#allocation9], 256
        $region56: #{tpu_custom_call.1} parent=47 // pred_fallthru
          _
        // Predicated region
        $region57: #{tpu_custom_call.1} parent=47 // pred_check
          %p316 = pneg %p149
        $region58: #{tpu_custom_call.1} parent=47 // pred_check_branch
          %318 = sbr.rel (%p316) target = $region60
        $region59: #{tpu_custom_call.1} parent=47 // pred_region
          %319 = dma.done [#allocation9], 256
        $region60: #{tpu_custom_call.1} parent=47 // pred_fallthru
          _
        %s320 = smul.u32 2, %s30
        %p321 = scmp.lt.s32.totalorder %s28, 1
        %s322 = scalar_select %p321, %s28, 1
        %p323 = scmp.lt.s32.totalorder %s320, 3
        %s324 = scalar_select %p323, %s320, 3
        %s325 = smul.addr %s322, 4
        %s326 = sadd.s32 %s324, %s325
        %s327 = smul.addr %s326, 4
        %s328 = scalar_lea.vmem %s0, %s327
        %p329 = pneg %p65
        %p330 = pneg %p62
        %p331 = pneg %p86
        %p332 = pneg %p83
        %p333 = pneg %p107
        %p334 = pneg %p104
        %p335 = pneg %p128
        %p336 = pneg %p125
        %p337 = pneg %p149
        %p338 = pneg %p146
        %p339 = pneg %p170
        %p340 = pneg %p167
        %p341 = pneg %p191
        %p342 = pneg %p188
        %p343 = pneg %p221
        %p344 = pneg %p218
        %s345 = sand.u32 %s208, 1
        %s346 = scalar_lea.sflag [#allocation7], %s345
        %s347 = sand.u32 %s208, 1
        %s348 = smul.addr %s347, 8
        %s349 = scalar_lea.vmem [#allocation11], %s348
        %s350 = smul.u32 2, %s30
        %p351 = scmp.lt.s32.totalorder %s28, 1
        %s352 = scalar_select %p351, %s28, 1
        %p353 = scmp.lt.s32.totalorder %s350, 3
        %s354 = scalar_select %p353, %s350, 3
        %s355 = smul.addr %s352, 4
        %s356 = sadd.s32 %s354, %s355
        %s357 = smul.addr %s356, 4
        %s358 = scalar_lea.vmem %s0, %s357
        %s359 = smul.u32 2, %s30
        %s360 = smul.u32 %s30, %s29
        %s361 = smul.u32 2, %s360
        %s363 = smul.u32 %s30, 16
        %p364 = scmp.eq.s32.totalorder %s29, 0
        // Predicated region
        $region61: #{tpu_custom_call.1} parent=47 // pred_check
          %p365 = pneg %p364
        $region62: #{tpu_custom_call.1} parent=47 // pred_check_branch
          %367 = sbr.rel (%p365) target = $region64
        $region63: #{tpu_custom_call.1} parent=47 // pred_region
          %v368 = vld [vmem:[%s358] sm:$0xf]
          %v369 = vld [vmem:[%s358 + $0x4] sm:$0xf]
          %v370 = vld [vmem:[#allocation8] sm:$0xf]
          %v371 = vld [vmem:[#allocation8 + $0x4] sm:$0xf]
          %v372 = vld [vmem:[#allocation8 + $0x8] sm:$0xf]
          %v373 = vld [vmem:[#allocation8 + $0xc] sm:$0xf]
          %v376 = vunpack.c.l.b16 %v368
          %v377 = vunpack.c.l.b16 %v369
          %v378 = vpack.c.b16 %v377, %v376
          %v383 = vunpack.c.l.b16 %v370
          %v384 = vunpack.c.l.b16 %v371
          %v385 = vunpack.c.l.b16 %v372
          %v386 = vunpack.c.l.b16 %v373
          %v387 = vpack.c.b16 %v384, %v383
          %v388 = vpack.c.b16 %v386, %v385
          %vm391 = vcmask 261120
          %v393 = vsel %vm391, %v378, 0
          %395 = vmatprep.subr.bf16.mxu0 0
          %396 = vmatpush1.bf16.msra.mxu0 0
          %397 = vmatprep.subr.bf16.mxu0 0
          %398 = vmatpush1.bf16.msra.mxu0 0
          %399 = vmatprep.subr.bf16.mxu0 0
          %400 = vmatpush1.bf16.msra.mxu0 0
          %401 = vmatprep.subr.bf16.mxu0 0
          %402 = vmatpush1.bf16.msra.mxu0 0
          %403 = vmatprep.subr.bf16.mxu0 0
          %404 = vmatpush1.bf16.msra.mxu0 0
          %405 = vmatprep.subr.bf16.mxu0 0
          %406 = vmatpush1.bf16.msra.mxu0 0
          %407 = vmatprep.subr.bf16.mxu0 0
          %408 = vmatpush1.bf16.msra.mxu0 %v388
          %409 = vmatprep.subr.bf16.mxu0 0
          %410 = vmatpush1.bf16.msra.mxu0 %v387
          %411 = vmatprep.subr.bf16.mxu0 0
          %412 = vmatpush2.bf16.msra.mxu0 0
          %413 = vmatprep.subr.bf16.mxu0 0
          %414 = vmatpush2.bf16.msra.mxu0 0
          %415 = vmatprep.subr.bf16.mxu0 0
          %416 = vmatpush2.bf16.msra.mxu0 0
          %417 = vmatprep.subr.bf16.mxu0 0
          %418 = vmatpush2.bf16.msra.mxu0 0
          %419 = vmatprep.subr.bf16.mxu0 0
          %420 = vmatpush2.bf16.msra.mxu0 0
          %421 = vmatprep.subr.bf16.mxu0 0
          %422 = vmatpush2.bf16.msra.mxu0 0
          %423 = vmatprep.subr.bf16.mxu0 0
          %424 = vmatpush2.bf16.msra.mxu0 0
          %425 = vmatprep.subr.bf16.mxu0 0
          %426 = vmatpush2.bf16.msra.mxu0 0
          %427 = vmatprep.mubr.bf16.mxu0 0
          %428 = vmatmul.mubr.bf16.gmra.mxu0 %v393
          %v429 = vpop.f32.mrf.mxu0
          %v430 = vadd.f32 0.0, %v429
          %v431 = vpop.f32.mrf.mxu0
          %v432 = vpop.f32.mrf.mxu0
          %v433 = vadd.f32 0.0, %v432
          %v434 = vpop.f32.mrf.mxu0
          %435 = vdwg.mxu0
          %v436 = vpack.c.bf16 %v433, %v430
          %v438 = vunpack.c.l.b16 %v436
          %v439 = vunpack.c.h.b16 %v436
          %v440 = vpack.c.b16 %v438, %v438
          %v441 = vpack.c.b16 %v439, %v439
          %s444 = sshra.s32 %s363, 3
          %s445 = sand.u32 %s363, 7
          %s446 = smul.addr %s444, 4
          %s447 = scalar_lea.vmem [#allocation2], %s446
          %vm448 = vcmask 257024
          %449 = vst.msk [vmem:[%s447] sm:$0xf] %vm448, %v440
          %450 = vst.msk [vmem:[%s447 + $0x4] sm:$0xf] %vm448, %v441
          %451 = vrot.lane.b32.xlu0 %v440, 96
          %v452 = vpop.permute.xlu0 %451
          %453 = vrot.lane.b32.xlu0 %v441, 96
          %v454 = vpop.permute.xlu0 %453
          %s457 = smul.addr %s444, 4
          %s458 = scalar_lea.vmem [#allocation3], %s457
          %459 = vst.msk [vmem:[%s458] sm:$0xf] %vm448, %v452
          %460 = vst.msk [vmem:[%s458 + $0x4] sm:$0xf] %vm448, %v454
        $region64: #{tpu_custom_call.1} parent=47 // pred_fallthru
          _
        %p461 = scmp.eq.s32.totalorder %s29, 1
        // Predicated region
        $region65: #{tpu_custom_call.1} parent=47 // pred_check
          %p462 = pneg %p461
        $region66: #{tpu_custom_call.1} parent=47 // pred_check_branch
          %464 = sbr.rel (%p462) target = $region68
        $region67: #{tpu_custom_call.1} parent=47 // pred_region
          %v465 = vld [vmem:[%s358] sm:$0xf]
          %v466 = vld [vmem:[%s358 + $0x4] sm:$0xf]
          %v467 = vunpack.c.l.bf16 %v465
          %v468 = vunpack.c.l.bf16 %v466
          %v469 = vld [vmem:[#allocation5] sm:$0xf]
          %v470 = vld [vmem:[#allocation5 + $0x4] sm:$0xf]
          %v471 = vld [vmem:[#allocation5 + $0x8] sm:$0xf]
          %v472 = vld [vmem:[#allocation5 + $0xc] sm:$0xf]
          %v475 = vunpack.c.l.b16 %v465
          %v476 = vunpack.c.l.b16 %v466
          %v477 = vpack.c.b16 %v476, %v475
          %v482 = vunpack.c.l.b16 %v469
          %v483 = vunpack.c.l.b16 %v470
          %v484 = vunpack.c.l.b16 %v471
          %v485 = vunpack.c.l.b16 %v472
          %v486 = vpack.c.b16 %v483, %v482
          %v487 = vpack.c.b16 %v485, %v484
          %vm490 = vcmask 261120
          %v492 = vsel %vm490, %v477, 0
          %494 = vmatprep.subr.bf16.mxu0 0
          %495 = vmatpush1.bf16.msra.mxu0 0
          %496 = vmatprep.subr.bf16.mxu0 0
          %497 = vmatpush1.bf16.msra.mxu0 0
          %498 = vmatprep.subr.bf16.mxu0 0
          %499 = vmatpush1.bf16.msra.mxu0 0
          %500 = vmatprep.subr.bf16.mxu0 0
          %501 = vmatpush1.bf16.msra.mxu0 0
          %502 = vmatprep.subr.bf16.mxu0 0
          %503 = vmatpush1.bf16.msra.mxu0 0
          %504 = vmatprep.subr.bf16.mxu0 0
          %505 = vmatpush1.bf16.msra.mxu0 0
          %506 = vmatprep.subr.bf16.mxu0 0
          %507 = vmatpush1.bf16.msra.mxu0 %v487
          %508 = vmatprep.subr.bf16.mxu0 0
          %509 = vmatpush1.bf16.msra.mxu0 %v486
          %510 = vmatprep.subr.bf16.mxu0 0
          %511 = vmatpush2.bf16.msra.mxu0 0
          %512 = vmatprep.subr.bf16.mxu0 0
          %513 = vmatpush2.bf16.msra.mxu0 0
          %514 = vmatprep.subr.bf16.mxu0 0
          %515 = vmatpush2.bf16.msra.mxu0 0
          %516 = vmatprep.subr.bf16.mxu0 0
          %517 = vmatpush2.bf16.msra.mxu0 0
          %518 = vmatprep.subr.bf16.mxu0 0
          %519 = vmatpush2.bf16.msra.mxu0 0
          %520 = vmatprep.subr.bf16.mxu0 0
          %521 = vmatpush2.bf16.msra.mxu0 0
          %522 = vmatprep.subr.bf16.mxu0 0
          %523 = vmatpush2.bf16.msra.mxu0 0
          %524 = vmatprep.subr.bf16.mxu0 0
          %525 = vmatpush2.bf16.msra.mxu0 0
          %526 = vmatprep.mubr.bf16.mxu0 0
          %527 = vmatmul.mubr.bf16.gmra.mxu0 %v492
          %v528 = vpop.f32.mrf.mxu0
          %v529 = vadd.f32 0.0, %v528
          %v530 = vpop.f32.mrf.mxu0
          %v531 = vpop.f32.mrf.mxu0
          %v532 = vadd.f32 0.0, %v531
          %v533 = vpop.f32.mrf.mxu0
          %534 = vdwg.mxu0
          %v535 = vpack.c.bf16 %v532, %v529
          %v536 = vld [vmem:[%s3] sm:$0xf]
          %v537 = vld [vmem:[%s3 + $0x4] sm:$0xf]
          %v538 = vld [vmem:[%s3 + $0x8] sm:$0xf]
          %v539 = vld [vmem:[%s3 + $0xc] sm:$0xf]
          %v540 = vld [vmem:[%s3 + $0x10] sm:$0xf]
          %v541 = vld [vmem:[%s3 + $0x14] sm:$0xf]
          %v542 = vld [vmem:[%s3 + $0x18] sm:$0xf]
          %v543 = vld [vmem:[%s3 + $0x1c] sm:$0xf]
          %v544 = vlaneseq
          %v545 = vshrl.u32 %v544, 7
          %v546 = vadd.s32 %v545, 8
          %v547 = vstv %s363
          %v548 = vadd.s32 %v547, %v545
          %v549 = vadd.s32 %v547, %v546
          %v550 = vld [vmem:[#allocation2] sm:$0xf]
          %v551 = vld [vmem:[#allocation2 + $0x4] sm:$0xf]
          %v552 = vld [vmem:[#allocation2 + $0x8] sm:$0xf]
          %v553 = vld [vmem:[#allocation2 + $0xc] sm:$0xf]
          %v554 = vld [vmem:[#allocation3] sm:$0xf]
          %v555 = vld [vmem:[#allocation3 + $0x4] sm:$0xf]
          %v556 = vld [vmem:[#allocation3 + $0x8] sm:$0xf]
          %v557 = vld [vmem:[#allocation3 + $0xc] sm:$0xf]
          %v566 = vunpack.c.l.b16 %v536
          %v567 = vunpack.c.l.b16 %v537
          %v568 = vunpack.c.l.b16 %v538
          %v569 = vunpack.c.l.b16 %v539
          %v570 = vunpack.c.l.b16 %v540
          %v571 = vunpack.c.l.b16 %v541
          %v572 = vunpack.c.l.b16 %v542
          %v573 = vunpack.c.l.b16 %v543
          %v574 = vpack.c.b16 %v567, %v566
          %v575 = vpack.c.b16 %v569, %v568
          %v576 = vpack.c.b16 %v571, %v570
          %v577 = vpack.c.b16 %v573, %v572
          %vm578 = vcmask 64512
          %v580 = vsel %vm578, %v535, 0
          %v583 = vsel %vm578, %v574, 0
          %v586 = vsel %vm578, %v575, 0
          %v589 = vsel %vm578, %v576, 0
          %v592 = vsel %vm578, %v577, 0
          %594 = vmatprep.subr.bf16.mxu0 0
          %595 = vmatpush1.bf16.xpose.msra.mxu0 0
          %596 = vmatprep.subr.bf16.mxu0 0
          %597 = vmatpush1.bf16.xpose.msra.mxu0 0
          %598 = vmatprep.subr.bf16.mxu0 0
          %599 = vmatpush1.bf16.xpose.msra.mxu0 0
          %600 = vmatprep.subr.bf16.mxu0 0
          %601 = vmatpush1.bf16.xpose.msra.mxu0 0
          %602 = vmatprep.subr.bf16.mxu0 0
          %603 = vmatpush1.bf16.xpose.msra.mxu0 %v592
          %604 = vmatprep.subr.bf16.mxu0 0
          %605 = vmatpush1.bf16.xpose.msra.mxu0 %v589
          %606 = vmatprep.subr.bf16.mxu0 0
          %607 = vmatpush1.bf16.xpose.msra.mxu0 %v586
          %608 = vmatprep.subr.bf16.mxu0 0
          %609 = vmatpush1.bf16.xpose.msra.mxu0 %v583
          %610 = vmatprep.subr.bf16.mxu0 0
          %611 = vmatpush2.bf16.xpose.msra.mxu0 0
          %612 = vmatprep.subr.bf16.mxu0 0
          %613 = vmatpush2.bf16.xpose.msra.mxu0 0
          %614 = vmatprep.subr.bf16.mxu0 0
          %615 = vmatpush2.bf16.xpose.msra.mxu0 0
          %616 = vmatprep.subr.bf16.mxu0 0
          %617 = vmatpush2.bf16.xpose.msra.mxu0 0
          %618 = vmatprep.subr.bf16.mxu0 0
          %619 = vmatpush2.bf16.xpose.msra.mxu0 0
          %620 = vmatprep.subr.bf16.mxu0 0
          %621 = vmatpush2.bf16.xpose.msra.mxu0 0
          %622 = vmatprep.subr.bf16.mxu0 0
          %623 = vmatpush2.bf16.xpose.msra.mxu0 0
          %624 = vmatprep.subr.bf16.mxu0 0
          %625 = vmatpush2.bf16.xpose.msra.mxu0 0
          %626 = vmatprep.mubr.bf16.mxu0 0
          %627 = vmatmul.mubr.bf16.gmra.mxu0 %v580
          %v628 = vpop.f32.mrf.mxu0
          %v629 = vadd.f32 0.0, %v628
          %v630 = vpop.f32.mrf.mxu0
          %v631 = vpop.f32.mrf.mxu0
          %v632 = vadd.f32 0.0, %v631
          %v633 = vpop.f32.mrf.mxu0
          %634 = vdwg.mxu0
          %637 = vrot.lane.b32.xlu0 %v629, 66
          %v638 = vpop.permute.xlu0 %637
          %639 = vrot.lane.b32.xlu0 %v632, 66
          %v640 = vpop.permute.xlu0 %639
          %643 = vrot.lane.b32.xlu0 %v629, 1
          %v644 = vpop.permute.xlu0 %643
          %645 = vrot.lane.b32.xlu0 %v632, 1
          %v646 = vpop.permute.xlu0 %645
          %vm649 = vcmask 7168
          %v650 = vsel %vm649, %v638, %v644
          %v651 = vsel %vm649, %v640, %v646
          %v652 = vand.u32 %v548, 1
          %v653 = vand.u32 %v549, 1
          %vm654 = vcmp.eq.s32.totalorder %v652, 1
          %vm655 = vcmp.eq.s32.totalorder %v653, 1
          %v656 = vsel %vm654, 1, 0
          %v657 = vsel %vm655, 1, 0
          %vm658 = vcmp.eq.s32.totalorder %v656, 1
          %vm659 = vcmp.eq.s32.totalorder %v657, 1
          %v660 = vsel %vm658, %v650, %v629
          %v661 = vsel %vm659, %v651, %v632
          %664 = vrot.lane.b32.xlu0 %v660, 67
          %v665 = vpop.permute.xlu0 %664
          %666 = vrot.lane.b32.xlu0 %v661, 67
          %v667 = vpop.permute.xlu0 %666
          %670 = vrot.lane.b32.xlu0 %v660, 2
          %v671 = vpop.permute.xlu0 %670
          %672 = vrot.lane.b32.xlu0 %v661, 2
          %v673 = vpop.permute.xlu0 %672
          %vm676 = vcmask 15360
          %v677 = vsel %vm676, %v665, %v671
          %v678 = vsel %vm676, %v667, %v673
          %v679 = vshra.s32 %v548, 1
          %v680 = vshra.s32 %v549, 1
          %v681 = vand.u32 %v679, 1
          %v682 = vand.u32 %v680, 1
          %vm683 = vcmp.eq.s32.totalorder %v681, 1
          %vm684 = vcmp.eq.s32.totalorder %v682, 1
          %v685 = vsel %vm683, 1, 0
          %v686 = vsel %vm684, 1, 0
          %vm687 = vcmp.eq.s32.totalorder %v685, 1
          %vm688 = vcmp.eq.s32.totalorder %v686, 1
          %v689 = vsel %vm687, %v677, %v660
          %v690 = vsel %vm688, %v678, %v661
          %693 = vrot.lane.b32.xlu0 %v689, 69
          %v694 = vpop.permute.xlu0 %693
          %695 = vrot.lane.b32.xlu0 %v690, 69
          %v696 = vpop.permute.xlu0 %695
          %699 = vrot.lane.b32.xlu0 %v689, 4
          %v700 = vpop.permute.xlu0 %699
          %701 = vrot.lane.b32.xlu0 %v690, 4
          %v702 = vpop.permute.xlu0 %701
          %vm705 = vcmask 31744
          %v706 = vsel %vm705, %v694, %v700
          %v707 = vsel %vm705, %v696, %v702
          %v708 = vshra.s32 %v548, 2
          %v709 = vshra.s32 %v549, 2
          %v710 = vand.u32 %v708, 1
          %v711 = vand.u32 %v709, 1
          %vm712 = vcmp.eq.s32.totalorder %v710, 1
          %vm713 = vcmp.eq.s32.totalorder %v711, 1
          %v714 = vsel %vm712, 1, 0
          %v715 = vsel %vm713, 1, 0
          %vm716 = vcmp.eq.s32.totalorder %v714, 1
          %vm717 = vcmp.eq.s32.totalorder %v715, 1
          %v718 = vsel %vm716, %v706, %v689
          %v719 = vsel %vm717, %v707, %v690
          %722 = vrot.lane.b32.xlu0 %v718, 73
          %v723 = vpop.permute.xlu0 %722
          %724 = vrot.lane.b32.xlu0 %v719, 73
          %v725 = vpop.permute.xlu0 %724
          %728 = vrot.lane.b32.xlu0 %v718, 8
          %v729 = vpop.permute.xlu0 %728
          %730 = vrot.lane.b32.xlu0 %v719, 8
          %v731 = vpop.permute.xlu0 %730
          %v734 = vsel %vm578, %v723, %v729
          %v735 = vsel %vm578, %v725, %v731
          %v736 = vshra.s32 %v548, 3
          %v737 = vshra.s32 %v549, 3
          %v738 = vand.u32 %v736, 1
          %v739 = vand.u32 %v737, 1
          %vm740 = vcmp.eq.s32.totalorder %v738, 1
          %vm741 = vcmp.eq.s32.totalorder %v739, 1
          %v742 = vsel %vm740, 1, 0
          %v743 = vsel %vm741, 1, 0
          %vm744 = vcmp.eq.s32.totalorder %v742, 1
          %vm745 = vcmp.eq.s32.totalorder %v743, 1
          %v746 = vsel %vm744, %v734, %v718
          %v747 = vsel %vm745, %v735, %v719
          %750 = vrot.lane.b32.xlu0 %v746, 81
          %v751 = vpop.permute.xlu0 %750
          %752 = vrot.lane.b32.xlu0 %v747, 81
          %v753 = vpop.permute.xlu0 %752
          %756 = vrot.lane.b32.xlu0 %v746, 16
          %v757 = vpop.permute.xlu0 %756
          %758 = vrot.lane.b32.xlu0 %v747, 16
          %v759 = vpop.permute.xlu0 %758
          %vm762 = vcmask 130048
          %v763 = vsel %vm762, %v751, %v757
          %v764 = vsel %vm762, %v753, %v759
          %v765 = vshra.s32 %v548, 4
          %v766 = vshra.s32 %v549, 4
          %v767 = vand.u32 %v765, 1
          %v768 = vand.u32 %v766, 1
          %vm769 = vcmp.eq.s32.totalorder %v767, 1
          %vm770 = vcmp.eq.s32.totalorder %v768, 1
          %v771 = vsel %vm769, 1, 0
          %v772 = vsel %vm770, 1, 0
          %vm773 = vcmp.eq.s32.totalorder %v771, 1
          %vm774 = vcmp.eq.s32.totalorder %v772, 1
          %v775 = vsel %vm773, %v763, %v746
          %v776 = vsel %vm774, %v764, %v747
          %v781 = vunpack.c.l.b16 %v550
          %v782 = vunpack.c.l.b16 %v551
          %v783 = vunpack.c.l.b16 %v552
          %v784 = vunpack.c.l.b16 %v553
          %v785 = vpack.c.b16 %v782, %v781
          %v786 = vpack.c.b16 %v784, %v783
          %789 = vrot.lane.b32.xlu0 %v775, 97
          %v790 = vpop.permute.xlu0 %789
          %791 = vrot.lane.b32.xlu0 %v776, 97
          %v792 = vpop.permute.xlu0 %791
          %v796 = vsel %vm578, %v785, 0
          %v799 = vsel %vm578, %v786, 0
          %801 = vmatprep.subr.bf16.mxu0 0
          %802 = vmatpush1.bf16.xpose.msra.mxu0 0
          %803 = vmatprep.subr.bf16.mxu0 0
          %804 = vmatpush1.bf16.xpose.msra.mxu0 0
          %805 = vmatprep.subr.bf16.mxu0 0
          %806 = vmatpush1.bf16.xpose.msra.mxu0 0
          %807 = vmatprep.subr.bf16.mxu0 0
          %808 = vmatpush1.bf16.xpose.msra.mxu0 0
          %809 = vmatprep.subr.bf16.mxu0 0
          %810 = vmatpush1.bf16.xpose.msra.mxu0 0
          %811 = vmatprep.subr.bf16.mxu0 0
          %812 = vmatpush1.bf16.xpose.msra.mxu0 0
          %813 = vmatprep.subr.bf16.mxu0 0
          %814 = vmatpush1.bf16.xpose.msra.mxu0 %v799
          %815 = vmatprep.subr.bf16.mxu0 0
          %816 = vmatpush1.bf16.xpose.msra.mxu0 %v796
          %817 = vmatprep.subr.bf16.mxu0 0
          %818 = vmatpush2.bf16.xpose.msra.mxu0 0
          %819 = vmatprep.subr.bf16.mxu0 0
          %820 = vmatpush2.bf16.xpose.msra.mxu0 0
          %821 = vmatprep.subr.bf16.mxu0 0
          %822 = vmatpush2.bf16.xpose.msra.mxu0 0
          %823 = vmatprep.subr.bf16.mxu0 0
          %824 = vmatpush2.bf16.xpose.msra.mxu0 0
          %825 = vmatprep.subr.bf16.mxu0 0
          %826 = vmatpush2.bf16.xpose.msra.mxu0 0
          %827 = vmatprep.subr.bf16.mxu0 0
          %828 = vmatpush2.bf16.xpose.msra.mxu0 0
          %829 = vmatprep.subr.bf16.mxu0 0
          %830 = vmatpush2.bf16.xpose.msra.mxu0 0
          %831 = vmatprep.subr.bf16.mxu0 0
          %832 = vmatpush2.bf16.xpose.msra.mxu0 0
          %833 = vmatprep.mubr.bf16.mxu0 0
          %834 = vmatmul.mubr.bf16.gmra.mxu0 %v580
          %v835 = vpop.f32.mrf.mxu0
          %v836 = vadd.f32 %v790, %v835
          %v837 = vpop.f32.mrf.mxu0
          %v838 = vpop.f32.mrf.mxu0
          %v839 = vadd.f32 %v792, %v838
          %v840 = vpop.f32.mrf.mxu0
          %841 = vdwg.mxu0
          %v842 = vsel %vm490, %v836, -inf
          %843 = vmax.xlane.f32.xlu0 %v842
          %v844 = vpop.xlane.xlu0 %843
          %v845 = vsel %vm490, %v839, -inf
          %846 = vmax.xlane.f32.xlu0 %v845
          %v847 = vpop.xlane.xlu0 %846
          %v848 = vsub.f32 %v836, %v844
          %v849 = vsub.f32 %v839, %v847
          %v850 = vmul.f32 %v848, 1.442695
          %v851 = vpow.pop %v850
          %v852 = vmul.f32 %v849, 1.442695
          %v853 = vpow.pop %v852
          %v854 = vsel %vm490, %v851, 0.0
          %855 = vadd.xlane.f32.xlu0 %v854
          %v856 = vpop.xlane.xlu0 %855
          %v857 = vsel %vm490, %v853, 0.0
          %858 = vadd.xlane.f32.xlu0 %v857
          %v859 = vpop.xlane.xlu0 %858
          %v860 = vrcp.pop %v856
          %v861 = vrcp.pop %v859
          %v862 = vmul.f32 %v851, %v860
          %v863 = vmul.f32 %v853, %v861
          %v864 = vpack.c.bf16 %v863, %v862
          %v869 = vunpack.c.l.b16 %v554
          %v870 = vunpack.c.l.b16 %v555
          %v871 = vunpack.c.l.b16 %v556
          %v872 = vunpack.c.l.b16 %v557
          %v873 = vpack.c.b16 %v870, %v869
          %v874 = vpack.c.b16 %v872, %v871
          %v878 = vsel %vm490, %v864, 0
          %880 = vmatprep.subr.bf16.mxu0 0
          %881 = vmatpush1.bf16.msra.mxu0 0
          %882 = vmatprep.subr.bf16.mxu0 0
          %883 = vmatpush1.bf16.msra.mxu0 0
          %884 = vmatprep.subr.bf16.mxu0 0
          %885 = vmatpush1.bf16.msra.mxu0 0
          %886 = vmatprep.subr.bf16.mxu0 0
          %887 = vmatpush1.bf16.msra.mxu0 0
          %888 = vmatprep.subr.bf16.mxu0 0
          %889 = vmatpush1.bf16.msra.mxu0 0
          %890 = vmatprep.subr.bf16.mxu0 0
          %891 = vmatpush1.bf16.msra.mxu0 0
          %892 = vmatprep.subr.bf16.mxu0 0
          %893 = vmatpush1.bf16.msra.mxu0 %v874
          %894 = vmatprep.subr.bf16.mxu0 0
          %895 = vmatpush1.bf16.msra.mxu0 %v873
          %896 = vmatprep.subr.bf16.mxu0 0
          %897 = vmatpush2.bf16.msra.mxu0 0
          %898 = vmatprep.subr.bf16.mxu0 0
          %899 = vmatpush2.bf16.msra.mxu0 0
          %900 = vmatprep.subr.bf16.mxu0 0
          %901 = vmatpush2.bf16.msra.mxu0 0
          %902 = vmatprep.subr.bf16.mxu0 0
          %903 = vmatpush2.bf16.msra.mxu0 0
          %904 = vmatprep.subr.bf16.mxu0 0
          %905 = vmatpush2.bf16.msra.mxu0 0
          %906 = vmatprep.subr.bf16.mxu0 0
          %907 = vmatpush2.bf16.msra.mxu0 0
          %908 = vmatprep.subr.bf16.mxu0 0
          %909 = vmatpush2.bf16.msra.mxu0 0
          %910 = vmatprep.subr.bf16.mxu0 0
          %911 = vmatpush2.bf16.msra.mxu0 0
          %912 = vmatprep.mubr.bf16.mxu0 0
          %913 = vmatmul.mubr.bf16.gmra.mxu0 %v878
          %v914 = vpop.f32.mrf.mxu0
          %v915 = vadd.f32 0.0, %v914
          %v916 = vpop.f32.mrf.mxu0
          %v917 = vpop.f32.mrf.mxu0
          %v918 = vadd.f32 0.0, %v917
          %v919 = vpop.f32.mrf.mxu0
          %920 = vdwg.mxu0
          %v921 = vpack.c.bf16 %v918, %v915
          %v923 = vunpack.c.l.b16 %v921
          %v924 = vunpack.c.h.b16 %v921
          %v925 = vpack.c.b16 %v923, %v923
          %v926 = vpack.c.b16 %v924, %v924
          %vm929 = vcmask 60416
          %930 = vst.msk [vmem:[#allocation4] sm:$0xf] %vm929, %v925
          %931 = vst.msk [vmem:[#allocation4 + $0x4] sm:$0xf] %vm929, %v926
          %v932 = vld [vmem:[#allocation2] sm:$0xf]
          %v933 = vld [vmem:[#allocation2 + $0x4] sm:$0xf]
          %v934 = vld [vmem:[#allocation2 + $0x8] sm:$0xf]
          %v935 = vld [vmem:[#allocation2 + $0xc] sm:$0xf]
          %v936 = vld [vmem:[#allocation3] sm:$0xf]
          %v937 = vld [vmem:[#allocation3 + $0x4] sm:$0xf]
          %v938 = vld [vmem:[#allocation3 + $0x8] sm:$0xf]
          %v939 = vld [vmem:[#allocation3 + $0xc] sm:$0xf]
          %941 = vrot.lane.b32.xlu0 %v535, 120
          %v942 = vpop.permute.xlu0 %941
          %v944 = vsel %vm578, %v942, 0
          %946 = vmatprep.subr.bf16.mxu0 0
          %947 = vmatpush1.bf16.xpose.msra.mxu0 0
          %948 = vmatprep.subr.bf16.mxu0 0
          %949 = vmatpush1.bf16.xpose.msra.mxu0 0
          %950 = vmatprep.subr.bf16.mxu0 0
          %951 = vmatpush1.bf16.xpose.msra.mxu0 0
          %952 = vmatprep.subr.bf16.mxu0 0
          %953 = vmatpush1.bf16.xpose.msra.mxu0 0
          %954 = vmatprep.subr.bf16.mxu0 0
          %955 = vmatpush1.bf16.xpose.msra.mxu0 %v592
          %956 = vmatprep.subr.bf16.mxu0 0
          %957 = vmatpush1.bf16.xpose.msra.mxu0 %v589
          %958 = vmatprep.subr.bf16.mxu0 0
          %959 = vmatpush1.bf16.xpose.msra.mxu0 %v586
          %960 = vmatprep.subr.bf16.mxu0 0
          %961 = vmatpush1.bf16.xpose.msra.mxu0 %v583
          %962 = vmatprep.subr.bf16.mxu0 0
          %963 = vmatpush2.bf16.xpose.msra.mxu0 0
          %964 = vmatprep.subr.bf16.mxu0 0
          %965 = vmatpush2.bf16.xpose.msra.mxu0 0
          %966 = vmatprep.subr.bf16.mxu0 0
          %967 = vmatpush2.bf16.xpose.msra.mxu0 0
          %968 = vmatprep.subr.bf16.mxu0 0
          %969 = vmatpush2.bf16.xpose.msra.mxu0 0
          %970 = vmatprep.subr.bf16.mxu0 0
          %971 = vmatpush2.bf16.xpose.msra.mxu0 0
          %972 = vmatprep.subr.bf16.mxu0 0
          %973 = vmatpush2.bf16.xpose.msra.mxu0 0
          %974 = vmatprep.subr.bf16.mxu0 0
          %975 = vmatpush2.bf16.xpose.msra.mxu0 0
          %976 = vmatprep.subr.bf16.mxu0 0
          %977 = vmatpush2.bf16.xpose.msra.mxu0 0
          %978 = vmatprep.mubr.bf16.mxu0 0
          %979 = vmatmul.mubr.bf16.gmra.mxu0 %v944
          %v980 = vpop.f32.mrf.mxu0
          %v981 = vadd.f32 0.0, %v980
          %v982 = vpop.f32.mrf.mxu0
          %v983 = vpop.f32.mrf.mxu0
          %v984 = vadd.f32 0.0, %v983
          %v985 = vpop.f32.mrf.mxu0
          %986 = vdwg.mxu0
          %989 = vrot.lane.b32.xlu0 %v981, 66
          %v990 = vpop.permute.xlu0 %989
          %991 = vrot.lane.b32.xlu0 %v984, 66
          %v992 = vpop.permute.xlu0 %991
          %995 = vrot.lane.b32.xlu0 %v981, 1
          %v996 = vpop.permute.xlu0 %995
          %997 = vrot.lane.b32.xlu0 %v984, 1
          %v998 = vpop.permute.xlu0 %997
          %v1001 = vsel %vm649, %v990, %v996
          %v1002 = vsel %vm649, %v992, %v998
          %v1003 = vsel %vm658, %v1001, %v981
          %v1004 = vsel %vm659, %v1002, %v984
          %1007 = vrot.lane.b32.xlu0 %v1003, 67
          %v1008 = vpop.permute.xlu0 %1007
          %1009 = vrot.lane.b32.xlu0 %v1004, 67
          %v1010 = vpop.permute.xlu0 %1009
          %1013 = vrot.lane.b32.xlu0 %v1003, 2
          %v1014 = vpop.permute.xlu0 %1013
          %1015 = vrot.lane.b32.xlu0 %v1004, 2
          %v1016 = vpop.permute.xlu0 %1015
          %v1019 = vsel %vm676, %v1008, %v1014
          %v1020 = vsel %vm676, %v1010, %v1016
          %v1021 = vsel %vm687, %v1019, %v1003
          %v1022 = vsel %vm688, %v1020, %v1004
          %1025 = vrot.lane.b32.xlu0 %v1021, 69
          %v1026 = vpop.permute.xlu0 %1025
          %1027 = vrot.lane.b32.xlu0 %v1022, 69
          %v1028 = vpop.permute.xlu0 %1027
          %1031 = vrot.lane.b32.xlu0 %v1021, 4
          %v1032 = vpop.permute.xlu0 %1031
          %1033 = vrot.lane.b32.xlu0 %v1022, 4
          %v1034 = vpop.permute.xlu0 %1033
          %v1037 = vsel %vm705, %v1026, %v1032
          %v1038 = vsel %vm705, %v1028, %v1034
          %v1039 = vsel %vm716, %v1037, %v1021
          %v1040 = vsel %vm717, %v1038, %v1022
          %1043 = vrot.lane.b32.xlu0 %v1039, 73
          %v1044 = vpop.permute.xlu0 %1043
          %1045 = vrot.lane.b32.xlu0 %v1040, 73
          %v1046 = vpop.permute.xlu0 %1045
          %1049 = vrot.lane.b32.xlu0 %v1039, 8
          %v1050 = vpop.permute.xlu0 %1049
          %1051 = vrot.lane.b32.xlu0 %v1040, 8
          %v1052 = vpop.permute.xlu0 %1051
          %v1055 = vsel %vm578, %v1044, %v1050
          %v1056 = vsel %vm578, %v1046, %v1052
          %v1057 = vsel %vm744, %v1055, %v1039
          %v1058 = vsel %vm745, %v1056, %v1040
          %1061 = vrot.lane.b32.xlu0 %v1057, 81
          %v1062 = vpop.permute.xlu0 %1061
          %1063 = vrot.lane.b32.xlu0 %v1058, 81
          %v1064 = vpop.permute.xlu0 %1063
          %1067 = vrot.lane.b32.xlu0 %v1057, 16
          %v1068 = vpop.permute.xlu0 %1067
          %1069 = vrot.lane.b32.xlu0 %v1058, 16
          %v1070 = vpop.permute.xlu0 %1069
          %v1073 = vsel %vm762, %v1062, %v1068
          %v1074 = vsel %vm762, %v1064, %v1070
          %v1075 = vsel %vm773, %v1073, %v1057
          %v1076 = vsel %vm774, %v1074, %v1058
          %v1081 = vunpack.c.l.b16 %v932
          %v1082 = vunpack.c.l.b16 %v933
          %v1083 = vunpack.c.l.b16 %v934
          %v1084 = vunpack.c.l.b16 %v935
          %v1085 = vpack.c.b16 %v1082, %v1081
          %v1086 = vpack.c.b16 %v1084, %v1083
          %1087 = vrot.lane.b32.xlu0 %v1085, 120
          %v1088 = vpop.permute.xlu0 %1087
          %1089 = vrot.lane.b32.xlu0 %v1086, 120
          %v1090 = vpop.permute.xlu0 %1089
          %1093 = vrot.lane.b32.xlu0 %v1075, 97
          %v1094 = vpop.permute.xlu0 %1093
          %1095 = vrot.lane.b32.xlu0 %v1076, 97
          %v1096 = vpop.permute.xlu0 %1095
          %v1100 = vsel %vm578, %v1088, 0
          %v1103 = vsel %vm578, %v1090, 0
          %1105 = vmatprep.subr.bf16.mxu0 0
          %1106 = vmatpush1.bf16.xpose.msra.mxu0 0
          %1107 = vmatprep.subr.bf16.mxu0 0
          %1108 = vmatpush1.bf16.xpose.msra.mxu0 0
          %1109 = vmatprep.subr.bf16.mxu0 0
          %1110 = vmatpush1.bf16.xpose.msra.mxu0 0
          %1111 = vmatprep.subr.bf16.mxu0 0
          %1112 = vmatpush1.bf16.xpose.msra.mxu0 0
          %1113 = vmatprep.subr.bf16.mxu0 0
          %1114 = vmatpush1.bf16.xpose.msra.mxu0 0
          %1115 = vmatprep.subr.bf16.mxu0 0
          %1116 = vmatpush1.bf16.xpose.msra.mxu0 0
          %1117 = vmatprep.subr.bf16.mxu0 0
          %1118 = vmatpush1.bf16.xpose.msra.mxu0 %v1103
          %1119 = vmatprep.subr.bf16.mxu0 0
          %1120 = vmatpush1.bf16.xpose.msra.mxu0 %v1100
          %1121 = vmatprep.subr.bf16.mxu0 0
          %1122 = vmatpush2.bf16.xpose.msra.mxu0 0
          %1123 = vmatprep.subr.bf16.mxu0 0
          %1124 = vmatpush2.bf16.xpose.msra.mxu0 0
          %1125 = vmatprep.subr.bf16.mxu0 0
          %1126 = vmatpush2.bf16.xpose.msra.mxu0 0
          %1127 = vmatprep.subr.bf16.mxu0 0
          %1128 = vmatpush2.bf16.xpose.msra.mxu0 0
          %1129 = vmatprep.subr.bf16.mxu0 0
          %1130 = vmatpush2.bf16.xpose.msra.mxu0 0
          %1131 = vmatprep.subr.bf16.mxu0 0
          %1132 = vmatpush2.bf16.xpose.msra.mxu0 0
          %1133 = vmatprep.subr.bf16.mxu0 0
          %1134 = vmatpush2.bf16.xpose.msra.mxu0 0
          %1135 = vmatprep.subr.bf16.mxu0 0
          %1136 = vmatpush2.bf16.xpose.msra.mxu0 0
          %1137 = vmatprep.mubr.bf16.mxu0 0
          %1138 = vmatmul.mubr.bf16.gmra.mxu0 %v944
          %v1139 = vpop.f32.mrf.mxu0
          %v1140 = vadd.f32 %v1094, %v1139
          %v1141 = vpop.f32.mrf.mxu0
          %v1142 = vpop.f32.mrf.mxu0
          %v1143 = vadd.f32 %v1096, %v1142
          %v1144 = vpop.f32.mrf.mxu0
          %1145 = vdwg.mxu0
          %v1146 = vsel %vm490, %v1140, -inf
          %1147 = vmax.xlane.f32.xlu0 %v1146
          %v1148 = vpop.xlane.xlu0 %1147
          %v1149 = vsel %vm490, %v1143, -inf
          %1150 = vmax.xlane.f32.xlu0 %v1149
          %v1151 = vpop.xlane.xlu0 %1150
          %v1152 = vsub.f32 %v1140, %v1148
          %v1153 = vsub.f32 %v1143, %v1151
          %v1154 = vmul.f32 %v1152, 1.442695
          %v1155 = vpow.pop %v1154
          %v1156 = vmul.f32 %v1153, 1.442695
          %v1157 = vpow.pop %v1156
          %v1158 = vsel %vm490, %v1155, 0.0
          %1159 = vadd.xlane.f32.xlu0 %v1158
          %v1160 = vpop.xlane.xlu0 %1159
          %v1161 = vsel %vm490, %v1157, 0.0
          %1162 = vadd.xlane.f32.xlu0 %v1161
          %v1163 = vpop.xlane.xlu0 %1162
          %v1164 = vrcp.pop %v1160
          %v1165 = vrcp.pop %v1163
          %v1166 = vmul.f32 %v1155, %v1164
          %v1167 = vmul.f32 %v1157, %v1165
          %v1168 = vpack.c.bf16 %v1167, %v1166
          %v1173 = vunpack.c.l.b16 %v936
          %v1174 = vunpack.c.l.b16 %v937
          %v1175 = vunpack.c.l.b16 %v938
          %v1176 = vunpack.c.l.b16 %v939
          %v1177 = vpack.c.b16 %v1174, %v1173
          %v1178 = vpack.c.b16 %v1176, %v1175
          %1179 = vrot.lane.b32.xlu0 %v1177, 120
          %v1180 = vpop.permute.xlu0 %1179
          %1181 = vrot.lane.b32.xlu0 %v1178, 120
          %v1182 = vpop.permute.xlu0 %1181
          %v1186 = vsel %vm490, %v1168, 0
          %1188 = vmatprep.subr.bf16.mxu0 0
          %1189 = vmatpush1.bf16.msra.mxu0 0
          %1190 = vmatprep.subr.bf16.mxu0 0
          %1191 = vmatpush1.bf16.msra.mxu0 0
          %1192 = vmatprep.subr.bf16.mxu0 0
          %1193 = vmatpush1.bf16.msra.mxu0 0
          %1194 = vmatprep.subr.bf16.mxu0 0
          %1195 = vmatpush1.bf16.msra.mxu0 0
          %1196 = vmatprep.subr.bf16.mxu0 0
          %1197 = vmatpush1.bf16.msra.mxu0 0
          %1198 = vmatprep.subr.bf16.mxu0 0
          %1199 = vmatpush1.bf16.msra.mxu0 0
          %1200 = vmatprep.subr.bf16.mxu0 0
          %1201 = vmatpush1.bf16.msra.mxu0 %v1182
          %1202 = vmatprep.subr.bf16.mxu0 0
          %1203 = vmatpush1.bf16.msra.mxu0 %v1180
          %1204 = vmatprep.subr.bf16.mxu0 0
          %1205 = vmatpush2.bf16.msra.mxu0 0
          %1206 = vmatprep.subr.bf16.mxu0 0
          %1207 = vmatpush2.bf16.msra.mxu0 0
          %1208 = vmatprep.subr.bf16.mxu0 0
          %1209 = vmatpush2.bf16.msra.mxu0 0
          %1210 = vmatprep.subr.bf16.mxu0 0
          %1211 = vmatpush2.bf16.msra.mxu0 0
          %1212 = vmatprep.subr.bf16.mxu0 0
          %1213 = vmatpush2.bf16.msra.mxu0 0
          %1214 = vmatprep.subr.bf16.mxu0 0
          %1215 = vmatpush2.bf16.msra.mxu0 0
          %1216 = vmatprep.subr.bf16.mxu0 0
          %1217 = vmatpush2.bf16.msra.mxu0 0
          %1218 = vmatprep.subr.bf16.mxu0 0
          %1219 = vmatpush2.bf16.msra.mxu0 0
          %1220 = vmatprep.mubr.bf16.mxu0 0
          %1221 = vmatmul.mubr.bf16.gmra.mxu0 %v1186
          %v1222 = vpop.f32.mrf.mxu0
          %v1223 = vadd.f32 0.0, %v1222
          %v1224 = vpop.f32.mrf.mxu0
          %v1225 = vpop.f32.mrf.mxu0
          %v1226 = vadd.f32 0.0, %v1225
          %v1227 = vpop.f32.mrf.mxu0
          %1228 = vdwg.mxu0
          %v1229 = vpack.c.bf16 %v1226, %v1223
          %v1231 = vunpack.c.l.b16 %v1229
          %v1232 = vunpack.c.h.b16 %v1229
          %v1233 = vpack.c.b16 %v1231, %v1231
          %v1234 = vpack.c.b16 %v1232, %v1232
          %1235 = vrot.lane.b32.xlu0 %v1233, 8
          %v1236 = vpop.permute.xlu0 %1235
          %1237 = vrot.lane.b32.xlu0 %v1234, 8
          %v1238 = vpop.permute.xlu0 %1237
          %vm1241 = vcmask 126016
          %1242 = vst.msk [vmem:[#allocation4] sm:$0xf] %vm1241, %v1236
          %1243 = vst.msk [vmem:[#allocation4 + $0x4] sm:$0xf] %vm1241, %v1238
          %v1244 = vld [vmem:[#allocation2] sm:$0xf]
          %v1245 = vld [vmem:[#allocation2 + $0x4] sm:$0xf]
          %v1246 = vld [vmem:[#allocation2 + $0x8] sm:$0xf]
          %v1247 = vld [vmem:[#allocation2 + $0xc] sm:$0xf]
          %v1248 = vld [vmem:[#allocation3] sm:$0xf]
          %v1249 = vld [vmem:[#allocation3 + $0x4] sm:$0xf]
          %v1250 = vld [vmem:[#allocation3 + $0x8] sm:$0xf]
          %v1251 = vld [vmem:[#allocation3 + $0xc] sm:$0xf]
          %1252 = vrot.lane.b32.xlu0 %v535, 112
          %v1253 = vpop.permute.xlu0 %1252
          %v1255 = vsel %vm578, %v1253, 0
          %1257 = vmatprep.subr.bf16.mxu0 0
          %1258 = vmatpush1.bf16.xpose.msra.mxu0 0
          %1259 = vmatprep.subr.bf16.mxu0 0
          %1260 = vmatpush1.bf16.xpose.msra.mxu0 0
          %1261 = vmatprep.subr.bf16.mxu0 0
          %1262 = vmatpush1.bf16.xpose.msra.mxu0 0
          %1263 = vmatprep.subr.bf16.mxu0 0
          %1264 = vmatpush1.bf16.xpose.msra.mxu0 0
          %1265 = vmatprep.subr.bf16.mxu0 0
          %1266 = vmatpush1.bf16.xpose.msra.mxu0 %v592
          %1267 = vmatprep.subr.bf16.mxu0 0
          %1268 = vmatpush1.bf16.xpose.msra.mxu0 %v589
          %1269 = vmatprep.subr.bf16.mxu0 0
          %1270 = vmatpush1.bf16.xpose.msra.mxu0 %v586
          %1271 = vmatprep.subr.bf16.mxu0 0
          %1272 = vmatpush1.bf16.xpose.msra.mxu0 %v583
          %1273 = vmatprep.subr.bf16.mxu0 0
          %1274 = vmatpush2.bf16.xpose.msra.mxu0 0
          %1275 = vmatprep.subr.bf16.mxu0 0
          %1276 = vmatpush2.bf16.xpose.msra.mxu0 0
          %1277 = vmatprep.subr.bf16.mxu0 0
          %1278 = vmatpush2.bf16.xpose.msra.mxu0 0
          %1279 = vmatprep.subr.bf16.mxu0 0
          %1280 = vmatpush2.bf16.xpose.msra.mxu0 0
          %1281 = vmatprep.subr.bf16.mxu0 0
          %1282 = vmatpush2.bf16.xpose.msra.mxu0 0
          %1283 = vmatprep.subr.bf16.mxu0 0
          %1284 = vmatpush2.bf16.xpose.msra.mxu0 0
          %1285 = vmatprep.subr.bf16.mxu0 0
          %1286 = vmatpush2.bf16.xpose.msra.mxu0 0
          %1287 = vmatprep.subr.bf16.mxu0 0
          %1288 = vmatpush2.bf16.xpose.msra.mxu0 0
          %1289 = vmatprep.mubr.bf16.mxu0 0
          %1290 = vmatmul.mubr.bf16.gmra.mxu0 %v1255
          %v1291 = vpop.f32.mrf.mxu0
          %v1292 = vadd.f32 0.0, %v1291
          %v1293 = vpop.f32.mrf.mxu0
          %v1294 = vpop.f32.mrf.mxu0
          %v1295 = vadd.f32 0.0, %v1294
          %v1296 = vpop.f32.mrf.mxu0
          %1297 = vdwg.mxu0
          %1300 = vrot.lane.b32.xlu0 %v1292, 66
          %v1301 = vpop.permute.xlu0 %1300
          %1302 = vrot.lane.b32.xlu0 %v1295, 66
          %v1303 = vpop.permute.xlu0 %1302
          %1306 = vrot.lane.b32.xlu0 %v1292, 1
          %v1307 = vpop.permute.xlu0 %1306
          %1308 = vrot.lane.b32.xlu0 %v1295, 1
          %v1309 = vpop.permute.xlu0 %1308
          %v1312 = vsel %vm649, %v1301, %v1307
          %v1313 = vsel %vm649, %v1303, %v1309
          %v1314 = vsel %vm658, %v1312, %v1292
          %v1315 = vsel %vm659, %v1313, %v1295
          %1318 = vrot.lane.b32.xlu0 %v1314, 67
          %v1319 = vpop.permute.xlu0 %1318
          %1320 = vrot.lane.b32.xlu0 %v1315, 67
          %v1321 = vpop.permute.xlu0 %1320
          %1324 = vrot.lane.b32.xlu0 %v1314, 2
          %v1325 = vpop.permute.xlu0 %1324
          %1326 = vrot.lane.b32.xlu0 %v1315, 2
          %v1327 = vpop.permute.xlu0 %1326
          %v1330 = vsel %vm676, %v1319, %v1325
          %v1331 = vsel %vm676, %v1321, %v1327
          %v1332 = vsel %vm687, %v1330, %v1314
          %v1333 = vsel %vm688, %v1331, %v1315
          %1336 = vrot.lane.b32.xlu0 %v1332, 69
          %v1337 = vpop.permute.xlu0 %1336
          %1338 = vrot.lane.b32.xlu0 %v1333, 69
          %v1339 = vpop.permute.xlu0 %1338
          %1342 = vrot.lane.b32.xlu0 %v1332, 4
          %v1343 = vpop.permute.xlu0 %1342
          %1344 = vrot.lane.b32.xlu0 %v1333, 4
          %v1345 = vpop.permute.xlu0 %1344
          %v1348 = vsel %vm705, %v1337, %v1343
          %v1349 = vsel %vm705, %v1339, %v1345
          %v1350 = vsel %vm716, %v1348, %v1332
          %v1351 = vsel %vm717, %v1349, %v1333
          %1354 = vrot.lane.b32.xlu0 %v1350, 73
          %v1355 = vpop.permute.xlu0 %1354
          %1356 = vrot.lane.b32.xlu0 %v1351, 73
          %v1357 = vpop.permute.xlu0 %1356
          %1360 = vrot.lane.b32.xlu0 %v1350, 8
          %v1361 = vpop.permute.xlu0 %1360
          %1362 = vrot.lane.b32.xlu0 %v1351, 8
          %v1363 = vpop.permute.xlu0 %1362
          %v1366 = vsel %vm578, %v1355, %v1361
          %v1367 = vsel %vm578, %v1357, %v1363
          %v1368 = vsel %vm744, %v1366, %v1350
          %v1369 = vsel %vm745, %v1367, %v1351
          %1372 = vrot.lane.b32.xlu0 %v1368, 81
          %v1373 = vpop.permute.xlu0 %1372
          %1374 = vrot.lane.b32.xlu0 %v1369, 81
          %v1375 = vpop.permute.xlu0 %1374
          %1378 = vrot.lane.b32.xlu0 %v1368, 16
          %v1379 = vpop.permute.xlu0 %1378
          %1380 = vrot.lane.b32.xlu0 %v1369, 16
          %v1381 = vpop.permute.xlu0 %1380
          %v1384 = vsel %vm762, %v1373, %v1379
          %v1385 = vsel %vm762, %v1375, %v1381
          %v1386 = vsel %vm773, %v1384, %v1368
          %v1387 = vsel %vm774, %v1385, %v1369
          %v1392 = vunpack.c.l.b16 %v1244
          %v1393 = vunpack.c.l.b16 %v1245
          %v1394 = vunpack.c.l.b16 %v1246
          %v1395 = vunpack.c.l.b16 %v1247
          %v1396 = vpack.c.b16 %v1393, %v1392
          %v1397 = vpack.c.b16 %v1395, %v1394
          %1398 = vrot.lane.b32.xlu0 %v1396, 112
          %v1399 = vpop.permute.xlu0 %1398
          %1400 = vrot.lane.b32.xlu0 %v1397, 112
          %v1401 = vpop.permute.xlu0 %1400
          %1404 = vrot.lane.b32.xlu0 %v1386, 97
          %v1405 = vpop.permute.xlu0 %1404
          %1406 = vrot.lane.b32.xlu0 %v1387, 97
          %v1407 = vpop.permute.xlu0 %1406
          %v1411 = vsel %vm578, %v1399, 0
          %v1414 = vsel %vm578, %v1401, 0
          %1416 = vmatprep.subr.bf16.mxu0 0
          %1417 = vmatpush1.bf16.xpose.msra.mxu0 0
          %1418 = vmatprep.subr.bf16.mxu0 0
          %1419 = vmatpush1.bf16.xpose.msra.mxu0 0
          %1420 = vmatprep.subr.bf16.mxu0 0
          %1421 = vmatpush1.bf16.xpose.msra.mxu0 0
          %1422 = vmatprep.subr.bf16.mxu0 0
          %1423 = vmatpush1.bf16.xpose.msra.mxu0 0
          %1424 = vmatprep.subr.bf16.mxu0 0
          %1425 = vmatpush1.bf16.xpose.msra.mxu0 0
          %1426 = vmatprep.subr.bf16.mxu0 0
          %1427 = vmatpush1.bf16.xpose.msra.mxu0 0
          %1428 = vmatprep.subr.bf16.mxu0 0
          %1429 = vmatpush1.bf16.xpose.msra.mxu0 %v1414
          %1430 = vmatprep.subr.bf16.mxu0 0
          %1431 = vmatpush1.bf16.xpose.msra.mxu0 %v1411
          %1432 = vmatprep.subr.bf16.mxu0 0
          %1433 = vmatpush2.bf16.xpose.msra.mxu0 0
          %1434 = vmatprep.subr.bf16.mxu0 0
          %1435 = vmatpush2.bf16.xpose.msra.mxu0 0
          %1436 = vmatprep.subr.bf16.mxu0 0
          %1437 = vmatpush2.bf16.xpose.msra.mxu0 0
          %1438 = vmatprep.subr.bf16.mxu0 0
          %1439 = vmatpush2.bf16.xpose.msra.mxu0 0
          %1440 = vmatprep.subr.bf16.mxu0 0
          %1441 = vmatpush2.bf16.xpose.msra.mxu0 0
          %1442 = vmatprep.subr.bf16.mxu0 0
          %1443 = vmatpush2.bf16.xpose.msra.mxu0 0
          %1444 = vmatprep.subr.bf16.mxu0 0
          %1445 = vmatpush2.bf16.xpose.msra.mxu0 0
          %1446 = vmatprep.subr.bf16.mxu0 0
          %1447 = vmatpush2.bf16.xpose.msra.mxu0 0
          %1448 = vmatprep.mubr.bf16.mxu0 0
          %1449 = vmatmul.mubr.bf16.gmra.mxu0 %v1255
          %v1450 = vpop.f32.mrf.mxu0
          %v1451 = vadd.f32 %v1405, %v1450
          %v1452 = vpop.f32.mrf.mxu0
          %v1453 = vpop.f32.mrf.mxu0
          %v1454 = vadd.f32 %v1407, %v1453
          %v1455 = vpop.f32.mrf.mxu0
          %1456 = vdwg.mxu0
          %v1457 = vsel %vm490, %v1451, -inf
          %1458 = vmax.xlane.f32.xlu0 %v1457
          %v1459 = vpop.xlane.xlu0 %1458
          %v1460 = vsel %vm490, %v1454, -inf
          %1461 = vmax.xlane.f32.xlu0 %v1460
          %v1462 = vpop.xlane.xlu0 %1461
          %v1463 = vsub.f32 %v1451, %v1459
          %v1464 = vsub.f32 %v1454, %v1462
          %v1465 = vmul.f32 %v1463, 1.442695
          %v1466 = vpow.pop %v1465
          %v1467 = vmul.f32 %v1464, 1.442695
          %v1468 = vpow.pop %v1467
          %v1469 = vsel %vm490, %v1466, 0.0
          %1470 = vadd.xlane.f32.xlu0 %v1469
          %v1471 = vpop.xlane.xlu0 %1470
          %v1472 = vsel %vm490, %v1468, 0.0
          %1473 = vadd.xlane.f32.xlu0 %v1472
          %v1474 = vpop.xlane.xlu0 %1473
          %v1475 = vrcp.pop %v1471
          %v1476 = vrcp.pop %v1474
          %v1477 = vmul.f32 %v1466, %v1475
          %v1478 = vmul.f32 %v1468, %v1476
          %v1479 = vpack.c.bf16 %v1478, %v1477
          %v1484 = vunpack.c.l.b16 %v1248
          %v1485 = vunpack.c.l.b16 %v1249
          %v1486 = vunpack.c.l.b16 %v1250
          %v1487 = vunpack.c.l.b16 %v1251
          %v1488 = vpack.c.b16 %v1485, %v1484
          %v1489 = vpack.c.b16 %v1487, %v1486
          %1490 = vrot.lane.b32.xlu0 %v1488, 112
          %v1491 = vpop.permute.xlu0 %1490
          %1492 = vrot.lane.b32.xlu0 %v1489, 112
          %v1493 = vpop.permute.xlu0 %1492
          %v1497 = vsel %vm490, %v1479, 0
          %1499 = vmatprep.subr.bf16.mxu0 0
          %1500 = vmatpush1.bf16.msra.mxu0 0
          %1501 = vmatprep.subr.bf16.mxu0 0
          %1502 = vmatpush1.bf16.msra.mxu0 0
          %1503 = vmatprep.subr.bf16.mxu0 0
          %1504 = vmatpush1.bf16.msra.mxu0 0
          %1505 = vmatprep.subr.bf16.mxu0 0
          %1506 = vmatpush1.bf16.msra.mxu0 0
          %1507 = vmatprep.subr.bf16.mxu0 0
          %1508 = vmatpush1.bf16.msra.mxu0 0
          %1509 = vmatprep.subr.bf16.mxu0 0
          %1510 = vmatpush1.bf16.msra.mxu0 0
          %1511 = vmatprep.subr.bf16.mxu0 0
          %1512 = vmatpush1.bf16.msra.mxu0 %v1493
          %1513 = vmatprep.subr.bf16.mxu0 0
          %1514 = vmatpush1.bf16.msra.mxu0 %v1491
          %1515 = vmatprep.subr.bf16.mxu0 0
          %1516 = vmatpush2.bf16.msra.mxu0 0
          %1517 = vmatprep.subr.bf16.mxu0 0
          %1518 = vmatpush2.bf16.msra.mxu0 0
          %1519 = vmatprep.subr.bf16.mxu0 0
          %1520 = vmatpush2.bf16.msra.mxu0 0
          %1521 = vmatprep.subr.bf16.mxu0 0
          %1522 = vmatpush2.bf16.msra.mxu0 0
          %1523 = vmatprep.subr.bf16.mxu0 0
          %1524 = vmatpush2.bf16.msra.mxu0 0
          %1525 = vmatprep.subr.bf16.mxu0 0
          %1526 = vmatpush2.bf16.msra.mxu0 0
          %1527 = vmatprep.subr.bf16.mxu0 0
          %1528 = vmatpush2.bf16.msra.mxu0 0
          %1529 = vmatprep.subr.bf16.mxu0 0
          %1530 = vmatpush2.bf16.msra.mxu0 0
          %1531 = vmatprep.mubr.bf16.mxu0 0
          %1532 = vmatmul.mubr.bf16.gmra.mxu0 %v1497
          %v1533 = vpop.f32.mrf.mxu0
          %v1534 = vadd.f32 0.0, %v1533
          %v1535 = vpop.f32.mrf.mxu0
          %v1536 = vpop.f32.mrf.mxu0
          %v1537 = vadd.f32 0.0, %v1536
          %v1538 = vpop.f32.mrf.mxu0
          %1539 = vdwg.mxu0
          %v1540 = vpack.c.bf16 %v1537, %v1534
          %v1542 = vunpack.c.l.b16 %v1540
          %v1543 = vunpack.c.h.b16 %v1540
          %v1544 = vpack.c.b16 %v1542, %v1542
          %v1545 = vpack.c.b16 %v1543, %v1543
          %1546 = vrot.lane.b32.xlu0 %v1544, 16
          %v1547 = vpop.permute.xlu0 %1546
          %1548 = vrot.lane.b32.xlu0 %v1545, 16
          %v1549 = vpop.permute.xlu0 %1548
          %vm1552 = vcmask 191616
          %1553 = vst.msk [vmem:[#allocation4] sm:$0xf] %vm1552, %v1547
          %1554 = vst.msk [vmem:[#allocation4 + $0x4] sm:$0xf] %vm1552, %v1549
          %v1555 = vld [vmem:[#allocation2] sm:$0xf]
          %v1556 = vld [vmem:[#allocation2 + $0x4] sm:$0xf]
          %v1557 = vld [vmem:[#allocation2 + $0x8] sm:$0xf]
          %v1558 = vld [vmem:[#allocation2 + $0xc] sm:$0xf]
          %v1559 = vld [vmem:[#allocation3] sm:$0xf]
          %v1560 = vld [vmem:[#allocation3 + $0x4] sm:$0xf]
          %v1561 = vld [vmem:[#allocation3 + $0x8] sm:$0xf]
          %v1562 = vld [vmem:[#allocation3 + $0xc] sm:$0xf]
          %1563 = vrot.lane.b32.xlu0 %v535, 104
          %v1564 = vpop.permute.xlu0 %1563
          %v1566 = vsel %vm578, %v1564, 0
          %1568 = vmatprep.subr.bf16.mxu0 0
          %1569 = vmatpush1.bf16.xpose.msra.mxu0 0
          %1570 = vmatprep.subr.bf16.mxu0 0
          %1571 = vmatpush1.bf16.xpose.msra.mxu0 0
          %1572 = vmatprep.subr.bf16.mxu0 0
          %1573 = vmatpush1.bf16.xpose.msra.mxu0 0
          %1574 = vmatprep.subr.bf16.mxu0 0
          %1575 = vmatpush1.bf16.xpose.msra.mxu0 0
          %1576 = vmatprep.subr.bf16.mxu0 0
          %1577 = vmatpush1.bf16.xpose.msra.mxu0 %v592
          %1578 = vmatprep.subr.bf16.mxu0 0
          %1579 = vmatpush1.bf16.xpose.msra.mxu0 %v589
          %1580 = vmatprep.subr.bf16.mxu0 0
          %1581 = vmatpush1.bf16.xpose.msra.mxu0 %v586
          %1582 = vmatprep.subr.bf16.mxu0 0
          %1583 = vmatpush1.bf16.xpose.msra.mxu0 %v583
          %1584 = vmatprep.subr.bf16.mxu0 0
          %1585 = vmatpush2.bf16.xpose.msra.mxu0 0
          %1586 = vmatprep.subr.bf16.mxu0 0
          %1587 = vmatpush2.bf16.xpose.msra.mxu0 0
          %1588 = vmatprep.subr.bf16.mxu0 0
          %1589 = vmatpush2.bf16.xpose.msra.mxu0 0
          %1590 = vmatprep.subr.bf16.mxu0 0
          %1591 = vmatpush2.bf16.xpose.msra.mxu0 0
          %1592 = vmatprep.subr.bf16.mxu0 0
          %1593 = vmatpush2.bf16.xpose.msra.mxu0 0
          %1594 = vmatprep.subr.bf16.mxu0 0
          %1595 = vmatpush2.bf16.xpose.msra.mxu0 0
          %1596 = vmatprep.subr.bf16.mxu0 0
          %1597 = vmatpush2.bf16.xpose.msra.mxu0 0
          %1598 = vmatprep.subr.bf16.mxu0 0
          %1599 = vmatpush2.bf16.xpose.msra.mxu0 0
          %1600 = vmatprep.mubr.bf16.mxu0 0
          %1601 = vmatmul.mubr.bf16.gmra.mxu0 %v1566
          %v1602 = vpop.f32.mrf.mxu0
          %v1603 = vadd.f32 0.0, %v1602
          %v1604 = vpop.f32.mrf.mxu0
          %v1605 = vpop.f32.mrf.mxu0
          %v1606 = vadd.f32 0.0, %v1605
          %v1607 = vpop.f32.mrf.mxu0
          %1608 = vdwg.mxu0
          %1611 = vrot.lane.b32.xlu0 %v1603, 66
          %v1612 = vpop.permute.xlu0 %1611
          %1613 = vrot.lane.b32.xlu0 %v1606, 66
          %v1614 = vpop.permute.xlu0 %1613
          %1617 = vrot.lane.b32.xlu0 %v1603, 1
          %v1618 = vpop.permute.xlu0 %1617
          %1619 = vrot.lane.b32.xlu0 %v1606, 1
          %v1620 = vpop.permute.xlu0 %1619
          %v1623 = vsel %vm649, %v1612, %v1618
          %v1624 = vsel %vm649, %v1614, %v1620
          %v1625 = vsel %vm658, %v1623, %v1603
          %v1626 = vsel %vm659, %v1624, %v1606
          %1629 = vrot.lane.b32.xlu0 %v1625, 67
          %v1630 = vpop.permute.xlu0 %1629
          %1631 = vrot.lane.b32.xlu0 %v1626, 67
          %v1632 = vpop.permute.xlu0 %1631
          %1635 = vrot.lane.b32.xlu0 %v1625, 2
          %v1636 = vpop.permute.xlu0 %1635
          %1637 = vrot.lane.b32.xlu0 %v1626, 2
          %v1638 = vpop.permute.xlu0 %1637
          %v1641 = vsel %vm676, %v1630, %v1636
          %v1642 = vsel %vm676, %v1632, %v1638
          %v1643 = vsel %vm687, %v1641, %v1625
          %v1644 = vsel %vm688, %v1642, %v1626
          %1647 = vrot.lane.b32.xlu0 %v1643, 69
          %v1648 = vpop.permute.xlu0 %1647
          %1649 = vrot.lane.b32.xlu0 %v1644, 69
          %v1650 = vpop.permute.xlu0 %1649
          %1653 = vrot.lane.b32.xlu0 %v1643, 4
          %v1654 = vpop.permute.xlu0 %1653
          %1655 = vrot.lane.b32.xlu0 %v1644, 4
          %v1656 = vpop.permute.xlu0 %1655
          %v1659 = vsel %vm705, %v1648, %v1654
          %v1660 = vsel %vm705, %v1650, %v1656
          %v1661 = vsel %vm716, %v1659, %v1643
          %v1662 = vsel %vm717, %v1660, %v1644
          %1665 = vrot.lane.b32.xlu0 %v1661, 73
          %v1666 = vpop.permute.xlu0 %1665
          %1667 = vrot.lane.b32.xlu0 %v1662, 73
          %v1668 = vpop.permute.xlu0 %1667
          %1671 = vrot.lane.b32.xlu0 %v1661, 8
          %v1672 = vpop.permute.xlu0 %1671
          %1673 = vrot.lane.b32.xlu0 %v1662, 8
          %v1674 = vpop.permute.xlu0 %1673
          %v1677 = vsel %vm578, %v1666, %v1672
          %v1678 = vsel %vm578, %v1668, %v1674
          %v1679 = vsel %vm744, %v1677, %v1661
          %v1680 = vsel %vm745, %v1678, %v1662
          %1683 = vrot.lane.b32.xlu0 %v1679, 81
          %v1684 = vpop.permute.xlu0 %1683
          %1685 = vrot.lane.b32.xlu0 %v1680, 81
          %v1686 = vpop.permute.xlu0 %1685
          %1689 = vrot.lane.b32.xlu0 %v1679, 16
          %v1690 = vpop.permute.xlu0 %1689
          %1691 = vrot.lane.b32.xlu0 %v1680, 16
          %v1692 = vpop.permute.xlu0 %1691
          %v1695 = vsel %vm762, %v1684, %v1690
          %v1696 = vsel %vm762, %v1686, %v1692
          %v1697 = vsel %vm773, %v1695, %v1679
          %v1698 = vsel %vm774, %v1696, %v1680
          %v1703 = vunpack.c.l.b16 %v1555
          %v1704 = vunpack.c.l.b16 %v1556
          %v1705 = vunpack.c.l.b16 %v1557
          %v1706 = vunpack.c.l.b16 %v1558
          %v1707 = vpack.c.b16 %v1704, %v1703
          %v1708 = vpack.c.b16 %v1706, %v1705
          %1709 = vrot.lane.b32.xlu0 %v1707, 104
          %v1710 = vpop.permute.xlu0 %1709
          %1711 = vrot.lane.b32.xlu0 %v1708, 104
          %v1712 = vpop.permute.xlu0 %1711
          %1715 = vrot.lane.b32.xlu0 %v1697, 97
          %v1716 = vpop.permute.xlu0 %1715
          %1717 = vrot.lane.b32.xlu0 %v1698, 97
          %v1718 = vpop.permute.xlu0 %1717
          %v1722 = vsel %vm578, %v1710, 0
          %v1725 = vsel %vm578, %v1712, 0
          %1727 = vmatprep.subr.bf16.mxu0 0
          %1728 = vmatpush1.bf16.xpose.msra.mxu0 0
          %1729 = vmatprep.subr.bf16.mxu0 0
          %1730 = vmatpush1.bf16.xpose.msra.mxu0 0
          %1731 = vmatprep.subr.bf16.mxu0 0
          %1732 = vmatpush1.bf16.xpose.msra.mxu0 0
          %1733 = vmatprep.subr.bf16.mxu0 0
          %1734 = vmatpush1.bf16.xpose.msra.mxu0 0
          %1735 = vmatprep.subr.bf16.mxu0 0
          %1736 = vmatpush1.bf16.xpose.msra.mxu0 0
          %1737 = vmatprep.subr.bf16.mxu0 0
          %1738 = vmatpush1.bf16.xpose.msra.mxu0 0
          %1739 = vmatprep.subr.bf16.mxu0 0
          %1740 = vmatpush1.bf16.xpose.msra.mxu0 %v1725
          %1741 = vmatprep.subr.bf16.mxu0 0
          %1742 = vmatpush1.bf16.xpose.msra.mxu0 %v1722
          %1743 = vmatprep.subr.bf16.mxu0 0
          %1744 = vmatpush2.bf16.xpose.msra.mxu0 0
          %1745 = vmatprep.subr.bf16.mxu0 0
          %1746 = vmatpush2.bf16.xpose.msra.mxu0 0
          %1747 = vmatprep.subr.bf16.mxu0 0
          %1748 = vmatpush2.bf16.xpose.msra.mxu0 0
          %1749 = vmatprep.subr.bf16.mxu0 0
          %1750 = vmatpush2.bf16.xpose.msra.mxu0 0
          %1751 = vmatprep.subr.bf16.mxu0 0
          %1752 = vmatpush2.bf16.xpose.msra.mxu0 0
          %1753 = vmatprep.subr.bf16.mxu0 0
          %1754 = vmatpush2.bf16.xpose.msra.mxu0 0
          %1755 = vmatprep.subr.bf16.mxu0 0
          %1756 = vmatpush2.bf16.xpose.msra.mxu0 0
          %1757 = vmatprep.subr.bf16.mxu0 0
          %1758 = vmatpush2.bf16.xpose.msra.mxu0 0
          %1759 = vmatprep.mubr.bf16.mxu0 0
          %1760 = vmatmul.mubr.bf16.gmra.mxu0 %v1566
          %v1761 = vpop.f32.mrf.mxu0
          %v1762 = vadd.f32 %v1716, %v1761
          %v1763 = vpop.f32.mrf.mxu0
          %v1764 = vpop.f32.mrf.mxu0
          %v1765 = vadd.f32 %v1718, %v1764
          %v1766 = vpop.f32.mrf.mxu0
          %1767 = vdwg.mxu0
          %v1768 = vsel %vm490, %v1762, -inf
          %1769 = vmax.xlane.f32.xlu0 %v1768
          %v1770 = vpop.xlane.xlu0 %1769
          %v1771 = vsel %vm490, %v1765, -inf
          %1772 = vmax.xlane.f32.xlu0 %v1771
          %v1773 = vpop.xlane.xlu0 %1772
          %v1774 = vsub.f32 %v1762, %v1770
          %v1775 = vsub.f32 %v1765, %v1773
          %v1776 = vmul.f32 %v1774, 1.442695
          %v1777 = vpow.pop %v1776
          %v1778 = vmul.f32 %v1775, 1.442695
          %v1779 = vpow.pop %v1778
          %v1780 = vsel %vm490, %v1777, 0.0
          %1781 = vadd.xlane.f32.xlu0 %v1780
          %v1782 = vpop.xlane.xlu0 %1781
          %v1783 = vsel %vm490, %v1779, 0.0
          %1784 = vadd.xlane.f32.xlu0 %v1783
          %v1785 = vpop.xlane.xlu0 %1784
          %v1786 = vrcp.pop %v1782
          %v1787 = vrcp.pop %v1785
          %v1788 = vmul.f32 %v1777, %v1786
          %v1789 = vmul.f32 %v1779, %v1787
          %v1790 = vpack.c.bf16 %v1789, %v1788
          %v1795 = vunpack.c.l.b16 %v1559
          %v1796 = vunpack.c.l.b16 %v1560
          %v1797 = vunpack.c.l.b16 %v1561
          %v1798 = vunpack.c.l.b16 %v1562
          %v1799 = vpack.c.b16 %v1796, %v1795
          %v1800 = vpack.c.b16 %v1798, %v1797
          %1801 = vrot.lane.b32.xlu0 %v1799, 104
          %v1802 = vpop.permute.xlu0 %1801
          %1803 = vrot.lane.b32.xlu0 %v1800, 104
          %v1804 = vpop.permute.xlu0 %1803
          %v1808 = vsel %vm490, %v1790, 0
          %1810 = vmatprep.subr.bf16.mxu0 0
          %1811 = vmatpush1.bf16.msra.mxu0 0
          %1812 = vmatprep.subr.bf16.mxu0 0
          %1813 = vmatpush1.bf16.msra.mxu0 0
          %1814 = vmatprep.subr.bf16.mxu0 0
          %1815 = vmatpush1.bf16.msra.mxu0 0
          %1816 = vmatprep.subr.bf16.mxu0 0
          %1817 = vmatpush1.bf16.msra.mxu0 0
          %1818 = vmatprep.subr.bf16.mxu0 0
          %1819 = vmatpush1.bf16.msra.mxu0 0
          %1820 = vmatprep.subr.bf16.mxu0 0
          %1821 = vmatpush1.bf16.msra.mxu0 0
          %1822 = vmatprep.subr.bf16.mxu0 0
          %1823 = vmatpush1.bf16.msra.mxu0 %v1804
          %1824 = vmatprep.subr.bf16.mxu0 0
          %1825 = vmatpush1.bf16.msra.mxu0 %v1802
          %1826 = vmatprep.subr.bf16.mxu0 0
          %1827 = vmatpush2.bf16.msra.mxu0 0
          %1828 = vmatprep.subr.bf16.mxu0 0
          %1829 = vmatpush2.bf16.msra.mxu0 0
          %1830 = vmatprep.subr.bf16.mxu0 0
          %1831 = vmatpush2.bf16.msra.mxu0 0
          %1832 = vmatprep.subr.bf16.mxu0 0
          %1833 = vmatpush2.bf16.msra.mxu0 0
          %1834 = vmatprep.subr.bf16.mxu0 0
          %1835 = vmatpush2.bf16.msra.mxu0 0
          %1836 = vmatprep.subr.bf16.mxu0 0
          %1837 = vmatpush2.bf16.msra.mxu0 0
          %1838 = vmatprep.subr.bf16.mxu0 0
          %1839 = vmatpush2.bf16.msra.mxu0 0
          %1840 = vmatprep.subr.bf16.mxu0 0
          %1841 = vmatpush2.bf16.msra.mxu0 0
          %1842 = vmatprep.mubr.bf16.mxu0 0
          %1843 = vmatmul.mubr.bf16.gmra.mxu0 %v1808
          %v1844 = vpop.f32.mrf.mxu0
          %v1845 = vadd.f32 0.0, %v1844
          %v1846 = vpop.f32.mrf.mxu0
          %v1847 = vpop.f32.mrf.mxu0
          %v1848 = vadd.f32 0.0, %v1847
          %v1849 = vpop.f32.mrf.mxu0
          %1850 = vdwg.mxu0
          %v1851 = vpack.c.bf16 %v1848, %v1845
          %v1853 = vunpack.c.l.b16 %v1851
          %v1854 = vunpack.c.h.b16 %v1851
          %v1855 = vpack.c.b16 %v1853, %v1853
          %v1856 = vpack.c.b16 %v1854, %v1854
          %1857 = vrot.lane.b32.xlu0 %v1855, 24
          %v1858 = vpop.permute.xlu0 %1857
          %1859 = vrot.lane.b32.xlu0 %v1856, 24
          %v1860 = vpop.permute.xlu0 %1859
          %vm1863 = vcmask 257216
          %1864 = vst.msk [vmem:[#allocation4] sm:$0xf] %vm1863, %v1858
          %1865 = vst.msk [vmem:[#allocation4 + $0x4] sm:$0xf] %vm1863, %v1860
          %v1866 = vld [vmem:[#allocation4] sm:$0xf]
          %v1867 = vld [vmem:[#allocation4 + $0x4] sm:$0xf]
          %v1868 = vld [vmem:[#allocation10] sm:$0xf]
          %v1869 = vld [vmem:[#allocation10 + $0x4] sm:$0xf]
          %v1870 = vld [vmem:[#allocation10 + $0x8] sm:$0xf]
          %v1871 = vld [vmem:[#allocation10 + $0xc] sm:$0xf]
          %v1874 = vunpack.c.l.b16 %v1866
          %v1875 = vunpack.c.l.b16 %v1867
          %v1876 = vpack.c.b16 %v1875, %v1874
          %v1881 = vunpack.c.l.b16 %v1868
          %v1882 = vunpack.c.l.b16 %v1869
          %v1883 = vunpack.c.l.b16 %v1870
          %v1884 = vunpack.c.l.b16 %v1871
          %v1885 = vpack.c.b16 %v1882, %v1881
          %v1886 = vpack.c.b16 %v1884, %v1883
          %v1890 = vsel %vm490, %v1876, 0
          %1892 = vmatprep.subr.bf16.mxu0 0
          %1893 = vmatpush1.bf16.msra.mxu0 0
          %1894 = vmatprep.subr.bf16.mxu0 0
          %1895 = vmatpush1.bf16.msra.mxu0 0
          %1896 = vmatprep.subr.bf16.mxu0 0
          %1897 = vmatpush1.bf16.msra.mxu0 0
          %1898 = vmatprep.subr.bf16.mxu0 0
          %1899 = vmatpush1.bf16.msra.mxu0 0
          %1900 = vmatprep.subr.bf16.mxu0 0
          %1901 = vmatpush1.bf16.msra.mxu0 0
          %1902 = vmatprep.subr.bf16.mxu0 0
          %1903 = vmatpush1.bf16.msra.mxu0 0
          %1904 = vmatprep.subr.bf16.mxu0 0
          %1905 = vmatpush1.bf16.msra.mxu0 %v1886
          %1906 = vmatprep.subr.bf16.mxu0 0
          %1907 = vmatpush1.bf16.msra.mxu0 %v1885
          %1908 = vmatprep.subr.bf16.mxu0 0
          %1909 = vmatpush2.bf16.msra.mxu0 0
          %1910 = vmatprep.subr.bf16.mxu0 0
          %1911 = vmatpush2.bf16.msra.mxu0 0
          %1912 = vmatprep.subr.bf16.mxu0 0
          %1913 = vmatpush2.bf16.msra.mxu0 0
          %1914 = vmatprep.subr.bf16.mxu0 0
          %1915 = vmatpush2.bf16.msra.mxu0 0
          %1916 = vmatprep.subr.bf16.mxu0 0
          %1917 = vmatpush2.bf16.msra.mxu0 0
          %1918 = vmatprep.subr.bf16.mxu0 0
          %1919 = vmatpush2.bf16.msra.mxu0 0
          %1920 = vmatprep.subr.bf16.mxu0 0
          %1921 = vmatpush2.bf16.msra.mxu0 0
          %1922 = vmatprep.subr.bf16.mxu0 0
          %1923 = vmatpush2.bf16.msra.mxu0 0
          %1924 = vmatprep.mubr.bf16.mxu0 0
          %1925 = vmatmul.mubr.bf16.gmra.mxu0 %v1890
          %v1926 = vpop.f32.mrf.mxu0
          %v1927 = vadd.f32 %v467, %v1926
          %v1928 = vpop.f32.mrf.mxu0
          %v1929 = vpop.f32.mrf.mxu0
          %v1930 = vadd.f32 %v468, %v1929
          %v1931 = vpop.f32.mrf.mxu0
          %1932 = vdwg.mxu0
          %v1933 = vsel %vm490, %v1927, 0.0
          %1934 = vadd.xlane.f32.xlu0 %v1933
          %v1935 = vpop.xlane.xlu0 %1934
          %v1936 = vsel %vm490, %v1930, 0.0
          %1937 = vadd.xlane.f32.xlu0 %v1936
          %v1938 = vpop.xlane.xlu0 %1937
          %v1939 = vrcp.pop 32.0
          %v1940 = vmul.f32 %v1935, %v1939
          %v1941 = vmul.f32 %v1938, %v1939
          %v1942 = vsub.f32 %v1927, %v1940
          %v1943 = vsub.f32 %v1930, %v1941
          %v1944 = vmul.f32 %v1942, %v1942
          %v1945 = vmul.f32 %v1943, %v1943
          %v1946 = vsel %vm490, %v1944, 0.0
          %1947 = vadd.xlane.f32.xlu0 %v1946
          %v1948 = vpop.xlane.xlu0 %1947
          %v1949 = vsel %vm490, %v1945, 0.0
          %1950 = vadd.xlane.f32.xlu0 %v1949
          %v1951 = vpop.xlane.xlu0 %1950
          %v1952 = vmul.f32 %v1948, %v1939
          %v1953 = vmul.f32 %v1951, %v1939
          %v1954 = vadd.f32 %v1952, 1e-05
          %v1955 = vadd.f32 %v1953, 1e-05
          %v1956 = vrsqrt.pop %v1954
          %v1957 = vrsqrt.pop %v1955
          %v1958 = vmul.f32 %v1942, %v1956
          %v1959 = vmul.f32 %v1943, %v1957
          %v1960 = vld [vmem:[%s5] sm:$0x1]
          %v1962 = vlaneseq
          %v1963 = vshrl.u32 %v1962, 7
          %v1964 = vsub.s32 0, %v1963
          %v1965 = vrot.slane %v1960, %v1964
          %v1967 = vmul.f32 %v1958, %v1965
          %v1968 = vmul.f32 %v1959, %v1965
          %v1969 = vld [vmem:[%s6] sm:$0x1]
          %v1971 = vlaneseq
          %v1972 = vshrl.u32 %v1971, 7
          %v1973 = vsub.s32 0, %v1972
          %v1974 = vrot.slane %v1969, %v1973
          %v1976 = vadd.f32 %v1967, %v1974
          %v1977 = vadd.f32 %v1968, %v1974
          %v1978 = vpack.c.bf16 %v1977, %v1976
          %v1980 = vunpack.c.l.b16 %v1978
          %v1981 = vunpack.c.h.b16 %v1978
          %v1982 = vpack.c.b16 %v1980, %v1980
          %v1983 = vpack.c.b16 %v1981, %v1981
          %vm1986 = vcmask 257024
          %1987 = vst.msk [vmem:[%s349] sm:$0xf] %vm1986, %v1982
          %1988 = vst.msk [vmem:[%s349 + $0x4] sm:$0xf] %vm1986, %v1983
        $region68: #{tpu_custom_call.1} parent=47 // pred_fallthru
          _
        %s1989 = sand.u32 %s208, 1
        %s1990 = scalar_lea.sflag [#allocation7], %s1989
        %s1991 = sand.u32 %s208, 1
        %s1992 = smul.addr %s1991, 8
        %s1993 = scalar_lea.vmem [#allocation11], %s1992
        // Predicated region
        $region69: #{tpu_custom_call.1} parent=47 // pred_check
          %p1994 = pneg %p218
        $region70: #{tpu_custom_call.1} parent=47 // pred_check_branch
          %1996 = sbr.rel (%p1994) target = $region72
        $region71: #{tpu_custom_call.1} parent=47 // pred_region
          %s1997 = smul.u32 %s30, %s29
          %s1998 = smul.u32 2, %s1997
          %s2000 = ssub.s32 128, 128
          %2001 = vsyncadd %s1990, %s2000
          %s2002 = smul.addr %s28, 4
          %s2003 = sadd.s32 %s1998, %s2002
          %s2004 = smul.addr %s2003, 64
          %s2005 = scalar_lea.hbm %s7, %s2004
          %s2006 = sshll.u32 %s1993, 4
          %s2007 = int_to_ptr.vmem [resolvable:$true] %s2006
          %2012 = dma.vmem_to_hbm [thread:$0]  %s2007, 128, %s2005, %s1990, 64, 64, 4
        $region72: #{tpu_custom_call.1} parent=47 // pred_fallthru
          _
      $region48: #{tpu_custom_call.1} parent=5 // pred_fallthru
        _
      %p2013 = scmp.le.s32.totalorder 2, %s18
      // Predicated region
      $region73: #{tpu_custom_call.1} parent=5 // pred_check
        %p2014 = pneg %p2013
      $region74: #{tpu_custom_call.1} parent=5 // pred_check_branch
        %2016 = sbr.rel (%p2014) target = $region76
      $region75: #{tpu_custom_call.1} parent=5 // pred_region
        %s2017 = ssub.s32 %s18, 2
        // Predicated region
        $region77: #{tpu_custom_call.1} parent=75 // pred_check
          %p2018 = pneg %p224
        $region78: #{tpu_custom_call.1} parent=75 // pred_check_branch
          %2020 = sbr.rel (%p2018) target = $region80
        $region79: #{tpu_custom_call.1} parent=75 // pred_region
          %s2021 = sand.u32 %s209, 1
          %s2022 = scalar_lea.sflag [#allocation7], %s2021
          %s2023 = sand.u32 %s209, 1
          %s2024 = smul.addr %s2023, 8
          %s2025 = scalar_lea.vmem [#allocation11], %s2024
          %2026 = dma.done %s2022, 128
        $region80: #{tpu_custom_call.1} parent=75 // pred_fallthru
          _
      $region76: #{tpu_custom_call.1} parent=5 // pred_fallthru
        _
    $region6: #{tpu_custom_call.1} parent=1 // loop_footer
      %s22 = sadd.s32 1, %s18
    $region7: #{tpu_custom_call.1} parent=1 // loop_footer_branch
      %17 = sbr.rel target = $region3
    $region8: #{tpu_custom_call.1} parent=1 // loop_exit
      _
    %2027 = vsyncpa [#allocation6], 1
    %s2028 = scalar_lea.sflag [#allocation6], 1
    %2029 = vsyncpa %s2028, 1
    %2030 = vsyncpa [#allocation9], 1
    %2031 = vsyncpa [#allocation7], 1
    %s2032 = scalar_lea.sflag [#allocation7], 1
    %2033 = vsyncpa %s2032, 1

// kernel: tpu_custom_call.1
$region0: #{tpu_custom_call.1}
  #allocation0 [shape = 'u32[]', space=smem, size = 0x4, offset = 0x4, fixed_abs, tag = 'smem constant byte address 0x4 - core index']
  #allocation1 [shape = 'u32[144,128]{1,0:T(1,128)}', space=vmem, size = 0x12000, scoped, tag = 'internal scratch']
  #allocation2 [shape = 'bf16[32,32]{1,0:T(8,128)(2,1)}', space=vmem, size = 0x2000, scoped, tag = 'scratch operand']
  #allocation3 [shape = 'bf16[32,32]{1,0:T(8,128)(2,1)}', space=vmem, size = 0x2000, scoped, tag = 'scratch operand']
  #allocation4 [shape = 'bf16[16,32]{1,0:T(8,128)(2,1)}', space=vmem, size = 0x1000, scoped, tag = 'scratch operand']
  %s0 = inlined_call_operand.vmem [shape: bf16[2,32,32], index: 0, kind: input, shape index: {}]
  %s1 = inlined_call_operand.hbm [shape: bf16[32,32], index: 1, kind: input, shape index: {}]
  %s2 = inlined_call_operand.hbm [shape: bf16[32,64], index: 2, kind: input, shape index: {}]
  %s3 = inlined_call_operand.vmem [shape: bf16[63,8], index: 3, kind: input, shape index: {}]
  %s4 = inlined_call_operand.hbm [shape: bf16[32,32], index: 4, kind: input, shape index: {}]
  %s5 = inlined_call_operand.vmem [shape: f32[1,32], index: 5, kind: input, shape index: {}]
  %s6 = inlined_call_operand.vmem [shape: f32[1,32], index: 6, kind: input, shape index: {}]
  %s7 = inlined_call_operand.hbm [shape: bf16[2,32,32], index: 7, kind: output, shape index: {}]
  %s8 = sld [smem:[#allocation0]]
  $region81: #{tpu_custom_call.1} parent=0
    _
  %s10 = ssub.s32 1, %s8
  %s11 = scalar_select 0, %s10, %s8
  $region1: #{tpu_custom_call.1} parent=0
    #allocation5 [shape = 'u8[8192]{0}', space=vmem, size = 0x2000, scoped, tag = 'input window, operand 1, single buffered']
    #allocation6 [shape = 's32[2]{0}', space=sflag, size = 0x8, scoped, tag = 'scoped memory for tpu_custom_call.1']
    #allocation7 [shape = 's32[2]{0}', space=sflag, size = 0x8, scoped, tag = 'scoped memory for tpu_custom_call.1']
    #allocation8 [shape = 'u8[8192]{0}', space=vmem, size = 0x2000, scoped, tag = 'input window, operand 2, single buffered']
    #allocation9 [shape = 's32[1]{0}', space=sflag, size = 0x4, scoped, tag = 'scoped memory for tpu_custom_call.1']
    #allocation10 [shape = 'u8[8192]{0}', space=vmem, size = 0x2000, scoped, tag = 'input window, operand 4, single buffered']
    #allocation11 [shape = 'u8[8192]{0}', space=vmem, size = 0x2000, scoped, tag = 'output window, operand 0']
    %12 = vsyncpa [#allocation6], 0
    %13 = vsyncpa [#allocation9], 0
    %14 = vsyncpa [#allocation7], 0
    %s15 = scalar_lea.sflag [#allocation7], 1
    %16 = vsyncpa %s15, 0
    loop: start=0, step=1, limit=10
    $region2: #{tpu_custom_call.1} parent=1 // loop_pre_header
      _
    $region3: #{tpu_custom_call.1} parent=1 // loop_header
      %s18 = sphi 0, %s22
      %p19 = scmp.ge.s32.totalorder %s18, 10
      %s25 = sphi 0, %s44
      %s26 = sphi 0, %s40
      %s27 = sphi 0, %s36
      %s28 = sphi 0, %s25
      %s29 = sphi 0, %s26
      %s30 = sphi 0, %s27
      %s31 = sphi 0, %s28
      %s32 = sphi 0, %s29
      %s33 = sphi 0, %s30
      %s49 = sphi 0, %s51
      %s52 = sphi 0, %s49
      %s53 = sphi 0, %s52
      %s69 = sphi 0, %s53
      %s73 = sphi 0, %s73
      %s75 = sphi 0, %s73
      %s76 = sphi 0, %s75
      %s90 = sphi 0, %s76
      %s94 = sphi 0, %s94
      %s96 = sphi 0, %s94
      %s97 = sphi 0, %s96
      %s111 = sphi 0, %s97
      %s115 = sphi 0, %s115
      %s117 = sphi 0, %s115
      %s118 = sphi 0, %s117
      %s132 = sphi 0, %s118
      %s136 = sphi 0, %s136
      %s138 = sphi 0, %s136
      %s139 = sphi 0, %s138
      %s153 = sphi 0, %s139
      %s157 = sphi 0, %s157
      %s159 = sphi 0, %s157
      %s160 = sphi 0, %s159
      %s174 = sphi 0, %s160
      %s178 = sphi 0, %s178
      %s180 = sphi 0, %s178
      %s181 = sphi 0, %s180
      %s195 = sphi 0, %s181
      %s205 = sphi 0, %s207
      %s208 = sphi 0, %s205
      %s209 = sphi 0, %s208
      %s225 = sphi 0, %s209
    $region4: #{tpu_custom_call.1} parent=1 // loop_header_branch
      %21 = sbr.rel (%p19) target = $region8
    $region5: #{tpu_custom_call.1} parent=1 // loop_body
      %s23 = ssub.s32 %s18, 1
      %s24 = ssub.s32 %s18, 2
      %s34 = sadd.s32 1, %s27
      %p35 = scmp.ge.s32.totalorder %s34, 2
      %s36 = scalar_select %p35, 0, %s34
      %s37 = sadd.s32 1, %s26
      %s38 = scalar_select %p35, %s37, %s26
      %p39 = scmp.ge.s32.totalorder %s38, 2
      %s40 = scalar_select %p39, 0, %s38
      %s41 = sadd.s32 1, %s25
      %s42 = scalar_select %p39, %s41, %s25
      %p43 = scmp.ge.s32.totalorder %s42, 2
      %s44 = scalar_select %p43, 0, %s42
      %s45 = ssub.s32 %s25, %s44
      %s46 = ssub.s32 %s27, %s36
      %s47 = sor.u32 %s45, %s46
      %p48 = scmp.eq.s32.totalorder %s47, 0
      %s50 = sadd.s32 %s49, 1
      %s51 = scalar_select %p48, %s49, %s50
      %p54 = pneg %p48
      %p55 = scmp.eq.s32.totalorder %s18, 7
      %p56 = por %p54, %p55
      %p57 = scmp.ne.s32.totalorder %s49, %s52
      %p58 = scmp.eq.s32.totalorder %s18, 0
      %p59 = por %p57, %p58
      %p60 = scmp.ne.s32.totalorder %s49, %s52
      %p61 = scmp.eq.s32.totalorder %s23, 7
      %p62 = por %p60, %p61
      %p63 = scmp.ne.s32.totalorder %s52, %s53
      %p64 = scmp.eq.s32.totalorder %s23, 0
      %p65 = por %p63, %p64
      %p66 = scmp.ne.s32.totalorder %s52, %s53
      %p67 = scmp.eq.s32.totalorder %s24, 7
      %p68 = por %p66, %p67
      %p70 = scmp.ne.s32.totalorder %s53, %s69
      %p71 = scmp.eq.s32.totalorder %s24, 0
      %p72 = por %p70, %p71
      %s74 = sadd.s32 %s73, 1
      %p77 = scmp.eq.s32.totalorder %s18, 7
      %p78 = scmp.ne.s32.totalorder %s73, %s75
      %p79 = scmp.eq.s32.totalorder %s18, 0
      %p80 = por %p78, %p79
      %p81 = scmp.ne.s32.totalorder %s73, %s75
      %p82 = scmp.eq.s32.totalorder %s23, 7
      %p83 = por %p81, %p82
      %p84 = scmp.ne.s32.totalorder %s75, %s76
      %p85 = scmp.eq.s32.totalorder %s23, 0
      %p86 = por %p84, %p85
      %p87 = scmp.ne.s32.totalorder %s75, %s76
      %p88 = scmp.eq.s32.totalorder %s24, 7
      %p89 = por %p87, %p88
      %p91 = scmp.ne.s32.totalorder %s76, %s90
      %p92 = scmp.eq.s32.totalorder %s24, 0
      %p93 = por %p91, %p92
      %s95 = sadd.s32 %s94, 1
      %p98 = scmp.eq.s32.totalorder %s18, 7
      %p99 = scmp.ne.s32.totalorder %s94, %s96
      %p100 = scmp.eq.s32.totalorder %s18, 0
      %p101 = por %p99, %p100
      %p102 = scmp.ne.s32.totalorder %s94, %s96
      %p103 = scmp.eq.s32.totalorder %s23, 7
      %p104 = por %p102, %p103
      %p105 = scmp.ne.s32.totalorder %s96, %s97
      %p106 = scmp.eq.s32.totalorder %s23, 0
      %p107 = por %p105, %p106
      %p108 = scmp.ne.s32.totalorder %s96, %s97
      %p109 = scmp.eq.s32.totalorder %s24, 7
      %p110 = por %p108, %p109
      %p112 = scmp.ne.s32.totalorder %s97, %s111
      %p113 = scmp.eq.s32.totalorder %s24, 0
      %p114 = por %p112, %p113
      %s116 = sadd.s32 %s115, 1
      %p119 = scmp.eq.s32.totalorder %s18, 7
      %p120 = scmp.ne.s32.totalorder %s115, %s117
      %p121 = scmp.eq.s32.totalorder %s18, 0
      %p122 = por %p120, %p121
      %p123 = scmp.ne.s32.totalorder %s115, %s117
      %p124 = scmp.eq.s32.totalorder %s23, 7
      %p125 = por %p123, %p124
      %p126 = scmp.ne.s32.totalorder %s117, %s118
      %p127 = scmp.eq.s32.totalorder %s23, 0
      %p128 = por %p126, %p127
      %p129 = scmp.ne.s32.totalorder %s117, %s118
      %p130 = scmp.eq.s32.totalorder %s24, 7
      %p131 = por %p129, %p130
      %p133 = scmp.ne.s32.totalorder %s118, %s132
      %p134 = scmp.eq.s32.totalorder %s24, 0
      %p135 = por %p133, %p134
      %s137 = sadd.s32 %s136, 1
      %p140 = scmp.eq.s32.totalorder %s18, 7
      %p141 = scmp.ne.s32.totalorder %s136, %s138
      %p142 = scmp.eq.s32.totalorder %s18, 0
      %p143 = por %p141, %p142
      %p144 = scmp.ne.s32.totalorder %s136, %s138
      %p145 = scmp.eq.s32.totalorder %s23, 7
      %p146 = por %p144, %p145
      %p147 = scmp.ne.s32.totalorder %s138, %s139
      %p148 = scmp.eq.s32.totalorder %s23, 0
      %p149 = por %p147, %p148
      %p150 = scmp.ne.s32.totalorder %s138, %s139
      %p151 = scmp.eq.s32.totalorder %s24, 7
      %p152 = por %p150, %p151
      %p154 = scmp.ne.s32.totalorder %s139, %s153
      %p155 = scmp.eq.s32.totalorder %s24, 0
      %p156 = por %p154, %p155
      %s158 = sadd.s32 %s157, 1
      %p161 = scmp.eq.s32.totalorder %s18, 7
      %p162 = scmp.ne.s32.totalorder %s157, %s159
      %p163 = scmp.eq.s32.totalorder %s18, 0
      %p164 = por %p162, %p163
      %p165 = scmp.ne.s32.totalorder %s157, %s159
      %p166 = scmp.eq.s32.totalorder %s23, 7
      %p167 = por %p165, %p166
      %p168 = scmp.ne.s32.totalorder %s159, %s160
      %p169 = scmp.eq.s32.totalorder %s23, 0
      %p170 = por %p168, %p169
      %p171 = scmp.ne.s32.totalorder %s159, %s160
      %p172 = scmp.eq.s32.totalorder %s24, 7
      %p173 = por %p171, %p172
      %p175 = scmp.ne.s32.totalorder %s160, %s174
      %p176 = scmp.eq.s32.totalorder %s24, 0
      %p177 = por %p175, %p176
      %s179 = sadd.s32 %s178, 1
      %p182 = scmp.eq.s32.totalorder %s18, 7
      %p183 = scmp.ne.s32.totalorder %s178, %s180
      %p184 = scmp.eq.s32.totalorder %s18, 0
      %p185 = por %p183, %p184
      %p186 = scmp.ne.s32.totalorder %s178, %s180
      %p187 = scmp.eq.s32.totalorder %s23, 7
      %p188 = por %p186, %p187
      %p189 = scmp.ne.s32.totalorder %s180, %s181
      %p190 = scmp.eq.s32.totalorder %s23, 0
      %p191 = por %p189, %p190
      %p192 = scmp.ne.s32.totalorder %s180, %s181
      %p193 = scmp.eq.s32.totalorder %s24, 7
      %p194 = por %p192, %p193
      %p196 = scmp.ne.s32.totalorder %s181, %s195
      %p197 = scmp.eq.s32.totalorder %s24, 0
      %p198 = por %p196, %p197
      %s199 = smul.u32 %s27, %s26
      %s200 = smul.u32 %s36, %s40
      %s201 = ssub.s32 %s25, %s44
      %s202 = ssub.s32 %s199, %s200
      %s203 = sor.u32 %s201, %s202
      %p204 = scmp.eq.s32.totalorder %s203, 0
      %s206 = sadd.s32 %s205, 1
      %s207 = scalar_select %p204, %s205, %s206
      %p210 = pneg %p204
      %p211 = scmp.eq.s32.totalorder %s18, 7
      %p212 = por %p210, %p211
      %p213 = scmp.ne.s32.totalorder %s205, %s208
      %p214 = scmp.eq.s32.totalorder %s18, 0
      %p215 = por %p213, %p214
      %p216 = scmp.ne.s32.totalorder %s205, %s208
      %p217 = scmp.eq.s32.totalorder %s23, 7
      %p218 = por %p216, %p217
      %p219 = scmp.ne.s32.totalorder %s208, %s209
      %p220 = scmp.eq.s32.totalorder %s23, 0
      %p221 = por %p219, %p220
      %p222 = scmp.ne.s32.totalorder %s208, %s209
      %p223 = scmp.eq.s32.totalorder %s24, 7
      %p224 = por %p222, %p223
      %p226 = scmp.ne.s32.totalorder %s209, %s225
      %p227 = scmp.eq.s32.totalorder %s24, 0
      %p228 = por %p226, %p227
      %p229 = scmp.le.s32.totalorder 1, %s18
      %p230 = scmp.lt.s32.totalorder %s18, 9
      %p231 = pnand %p229, %p230
      %p232 = pneg %p231
      // Predicated region
      $region9: #{tpu_custom_call.1} parent=5 // pred_check
        _
      $region10: #{tpu_custom_call.1} parent=5 // pred_check_branch
        %234 = sbr.rel (%p231) target = $region12
      $region11: #{tpu_custom_call.1} parent=5 // pred_region
        %s235 = ssub.s32 %s18, 1
        // Predicated region
        $region13: #{tpu_custom_call.1} parent=11 // pred_check
          %p236 = pneg %p86
        $region14: #{tpu_custom_call.1} parent=11 // pred_check_branch
          %238 = sbr.rel (%p236) target = $region16
        $region15: #{tpu_custom_call.1} parent=11 // pred_region
          %s240 = ssub.s32 256, 256
          %241 = vsyncadd [#allocation6], %s240
          %s242 = sshll.u32 [#allocation5], 4
          %s243 = int_to_ptr.vmem [resolvable:$true] %s242
          %248 = dma.hbm_to_vmem [thread:$0]  %s1, 256, %s243, [#allocation6], 64, 64, 4
        $region16: #{tpu_custom_call.1} parent=11 // pred_fallthru
          _
        // Predicated region
        $region17: #{tpu_custom_call.1} parent=11 // pred_check
          %p249 = pneg %p107
        $region18: #{tpu_custom_call.1} parent=11 // pred_check_branch
          %251 = sbr.rel (%p249) target = $region20
        $region19: #{tpu_custom_call.1} parent=11 // pred_region
          %s253 = ssub.s32 256, 256
          %254 = vsyncadd [#allocation9], %s253
          %s255 = sshll.u32 [#allocation8], 4
          %s256 = int_to_ptr.vmem [resolvable:$true] %s255
          %261 = dma.hbm_to_vmem [thread:$0]  %s2, 256, %s256, [#allocation9], 64, 64, 4
        $region20: #{tpu_custom_call.1} parent=11 // pred_fallthru
          _
        // Predicated region
        $region21: #{tpu_custom_call.1} parent=11 // pred_check
          %p262 = pneg %p128
        $region22: #{tpu_custom_call.1} parent=11 // pred_check_branch
          %264 = sbr.rel (%p262) target = $region24
        $region23: #{tpu_custom_call.1} parent=11 // pred_region
          _
        $region24: #{tpu_custom_call.1} parent=11 // pred_fallthru
          _
        // Predicated region
        $region25: #{tpu_custom_call.1} parent=11 // pred_check
          %p265 = pneg %p149
        $region26: #{tpu_custom_call.1} parent=11 // pred_check_branch
          %267 = sbr.rel (%p265) target = $region28
        $region27: #{tpu_custom_call.1} parent=11 // pred_region
          %s269 = ssub.s32 256, 256
          %270 = vsyncadd [#allocation9], %s269
          %s271 = sshll.u32 [#allocation10], 4
          %s272 = int_to_ptr.vmem [resolvable:$true] %s271
          %277 = dma.hbm_to_vmem [thread:$0]  %s4, 256, %s272, [#allocation9], 64, 64, 4
        $region28: #{tpu_custom_call.1} parent=11 // pred_fallthru
          _
        // Predicated region
        $region29: #{tpu_custom_call.1} parent=11 // pred_check
          %p278 = pneg %p170
        $region30: #{tpu_custom_call.1} parent=11 // pred_check_branch
          %280 = sbr.rel (%p278) target = $region32
        $region31: #{tpu_custom_call.1} parent=11 // pred_region
          _
        $region32: #{tpu_custom_call.1} parent=11 // pred_fallthru
          _
        // Predicated region
        $region33: #{tpu_custom_call.1} parent=11 // pred_check
          %p281 = pneg %p191
        $region34: #{tpu_custom_call.1} parent=11 // pred_check_branch
          %283 = sbr.rel (%p281) target = $region36
        $region35: #{tpu_custom_call.1} parent=11 // pred_region
          _
        $region36: #{tpu_custom_call.1} parent=11 // pred_fallthru
          _
      $region12: #{tpu_custom_call.1} parent=5 // pred_fallthru
        _
      %p284 = scmp.lt.s32.totalorder %s18, 8
      // Predicated region
      $region37: #{tpu_custom_call.1} parent=5 // pred_check
        %p285 = pneg %p284
      $region38: #{tpu_custom_call.1} parent=5 // pred_check_branch
        %287 = sbr.rel (%p285) target = $region40
      $region39: #{tpu_custom_call.1} parent=5 // pred_region
        // Predicated region
        $region41: #{tpu_custom_call.1} parent=39 // pred_check
          %p288 = pneg %p59
        $region42: #{tpu_custom_call.1} parent=39 // pred_check_branch
          %290 = sbr.rel (%p288) target = $region44
        $region43: #{tpu_custom_call.1} parent=39 // pred_region
          %s291 = smul.u32 2, %s27
          %p292 = scmp.lt.s32.totalorder %s25, 1
          %s293 = scalar_select %p292, %s25, 1
          %p294 = scmp.lt.s32.totalorder %s291, 3
          %s295 = scalar_select %p294, %s291, 3
          %s296 = smul.addr %s293, 4
          %s297 = sadd.s32 %s295, %s296
          %s298 = smul.addr %s297, 4
          %s299 = scalar_lea.vmem %s0, %s298
          %s300 = smul.u32 2, %s27
        $region44: #{tpu_custom_call.1} parent=39 // pred_fallthru
          _
      $region40: #{tpu_custom_call.1} parent=5 // pred_fallthru
        _
      %p301 = scmp.le.s32.totalorder 1, %s18
      %p302 = scmp.lt.s32.totalorder %s18, 9
      %p303 = pnand %p301, %p302
      %p304 = pneg %p303
      // Predicated region
      $region45: #{tpu_custom_call.1} parent=5 // pred_check
        _
      $region46: #{tpu_custom_call.1} parent=5 // pred_check_branch
        %306 = sbr.rel (%p303) target = $region48
      $region47: #{tpu_custom_call.1} parent=5 // pred_region
        %s307 = ssub.s32 %s18, 1
        // Predicated region
        $region49: #{tpu_custom_call.1} parent=47 // pred_check
          %p308 = pneg %p86
        $region50: #{tpu_custom_call.1} parent=47 // pred_check_branch
          %310 = sbr.rel (%p308) target = $region52
        $region51: #{tpu_custom_call.1} parent=47 // pred_region
          %311 = dma.done [#allocation6], 256
        $region52: #{tpu_custom_call.1} parent=47 // pred_fallthru
          _
        // Predicated region
        $region53: #{tpu_custom_call.1} parent=47 // pred_check
          %p312 = pneg %p107
        $region54: #{tpu_custom_call.1} parent=47 // pred_check_branch
          %314 = sbr.rel (%p312) target = $region56
        $region55: #{tpu_custom_call.1} parent=47 // pred_region
          %315 = dma.done [#allocation9], 256
        $region56: #{tpu_custom_call.1} parent=47 // pred_fallthru
          _
        // Predicated region
        $region57: #{tpu_custom_call.1} parent=47 // pred_check
          %p316 = pneg %p149
        $region58: #{tpu_custom_call.1} parent=47 // pred_check_branch
          %318 = sbr.rel (%p316) target = $region60
        $region59: #{tpu_custom_call.1} parent=47 // pred_region
          %319 = dma.done [#allocation9], 256
        $region60: #{tpu_custom_call.1} parent=47 // pred_fallthru
          _
        %s320 = smul.u32 2, %s30
        %p321 = scmp.lt.s32.totalorder %s28, 1
        %s322 = scalar_select %p321, %s28, 1
        %p323 = scmp.lt.s32.totalorder %s320, 3
        %s324 = scalar_select %p323, %s320, 3
        %s325 = smul.addr %s322, 4
        %s326 = sadd.s32 %s324, %s325
        %s327 = smul.addr %s326, 4
        %s328 = scalar_lea.vmem %s0, %s327
        %p329 = pneg %p65
        %p330 = pneg %p62
        %p331 = pneg %p86
        %p332 = pneg %p83
        %p333 = pneg %p107
        %p334 = pneg %p104
        %p335 = pneg %p128
        %p336 = pneg %p125
        %p337 = pneg %p149
        %p338 = pneg %p146
        %p339 = pneg %p170
        %p340 = pneg %p167
        %p341 = pneg %p191
        %p342 = pneg %p188
        %p343 = pneg %p221
        %p344 = pneg %p218
        %s345 = sand.u32 %s208, 1
        %s346 = scalar_lea.sflag [#allocation7], %s345
        %s347 = sand.u32 %s208, 1
        %s348 = smul.addr %s347, 8
        %s349 = scalar_lea.vmem [#allocation11], %s348
        %s350 = smul.u32 2, %s30
        %p351 = scmp.lt.s32.totalorder %s28, 1
        %s352 = scalar_select %p351, %s28, 1
        %p353 = scmp.lt.s32.totalorder %s350, 3
        %s354 = scalar_select %p353, %s350, 3
        %s355 = smul.addr %s352, 4
        %s356 = sadd.s32 %s354, %s355
        %s357 = smul.addr %s356, 4
        %s358 = scalar_lea.vmem %s0, %s357
        %s359 = smul.u32 2, %s30
        %s360 = smul.u32 %s30, %s29
        %s361 = smul.u32 2, %s360
        %s363 = smul.u32 %s30, 16
        %p364 = scmp.eq.s32.totalorder %s29, 0
        // Predicated region
        $region61: #{tpu_custom_call.1} parent=47 // pred_check
          %p365 = pneg %p364
        $region62: #{tpu_custom_call.1} parent=47 // pred_check_branch
          %367 = sbr.rel (%p365) target = $region64
        $region63: #{tpu_custom_call.1} parent=47 // pred_region
          %v368 = vld [vmem:[%s358] sm:$0xf]
          %v369 = vld [vmem:[%s358 + $0x4] sm:$0xf]
          %v370 = vld [vmem:[#allocation8] sm:$0xf]
          %v371 = vld [vmem:[#allocation8 + $0x4] sm:$0xf]
          %v372 = vld [vmem:[#allocation8 + $0x8] sm:$0xf]
          %v373 = vld [vmem:[#allocation8 + $0xc] sm:$0xf]
          %v376 = vunpack.c.l.b16 %v368
          %v377 = vunpack.c.l.b16 %v369
          %v378 = vpack.c.b16 %v377, %v376
          %v383 = vunpack.c.l.b16 %v370
          %v384 = vunpack.c.l.b16 %v371
          %v385 = vunpack.c.l.b16 %v372
          %v386 = vunpack.c.l.b16 %v373
          %v387 = vpack.c.b16 %v384, %v383
          %v388 = vpack.c.b16 %v386, %v385
          %vm391 = vcmask 261120
          %v393 = vsel %vm391, %v378, 0
          %395 = vmatprep.subr.bf16.mxu0 0
          %396 = vmatpush1.bf16.msra.mxu0 0
          %397 = vmatprep.subr.bf16.mxu0 0
          %398 = vmatpush1.bf16.msra.mxu0 0
          %399 = vmatprep.subr.bf16.mxu0 0
          %400 = vmatpush1.bf16.msra.mxu0 0
          %401 = vmatprep.subr.bf16.mxu0 0
          %402 = vmatpush1.bf16.msra.mxu0 0
          %403 = vmatprep.subr.bf16.mxu0 0
          %404 = vmatpush1.bf16.msra.mxu0 0
          %405 = vmatprep.subr.bf16.mxu0 0
          %406 = vmatpush1.bf16.msra.mxu0 0
          %407 = vmatprep.subr.bf16.mxu0 0
          %408 = vmatpush1.bf16.msra.mxu0 %v388
          %409 = vmatprep.subr.bf16.mxu0 0
          %410 = vmatpush1.bf16.msra.mxu0 %v387
          %411 = vmatprep.subr.bf16.mxu0 0
          %412 = vmatpush2.bf16.msra.mxu0 0
          %413 = vmatprep.subr.bf16.mxu0 0
          %414 = vmatpush2.bf16.msra.mxu0 0
          %415 = vmatprep.subr.bf16.mxu0 0
          %416 = vmatpush2.bf16.msra.mxu0 0
          %417 = vmatprep.subr.bf16.mxu0 0
          %418 = vmatpush2.bf16.msra.mxu0 0
          %419 = vmatprep.subr.bf16.mxu0 0
          %420 = vmatpush2.bf16.msra.mxu0 0
          %421 = vmatprep.subr.bf16.mxu0 0
          %422 = vmatpush2.bf16.msra.mxu0 0
          %423 = vmatprep.subr.bf16.mxu0 0
          %424 = vmatpush2.bf16.msra.mxu0 0
          %425 = vmatprep.subr.bf16.mxu0 0
          %426 = vmatpush2.bf16.msra.mxu0 0
          %427 = vmatprep.mubr.bf16.mxu0 0
          %428 = vmatmul.mubr.bf16.gmra.mxu0 %v393
          %v429 = vpop.f32.mrf.mxu0
          %v430 = vadd.f32 0.0, %v429
          %v431 = vpop.f32.mrf.mxu0
          %v432 = vpop.f32.mrf.mxu0
          %v433 = vadd.f32 0.0, %v432
          %v434 = vpop.f32.mrf.mxu0
          %435 = vdwg.mxu0
          %v436 = vpack.c.bf16 %v433, %v430
          %v438 = vunpack.c.l.b16 %v436
          %v439 = vunpack.c.h.b16 %v436
          %v440 = vpack.c.b16 %v438, %v438
          %v441 = vpack.c.b16 %v439, %v439
          %s444 = sshra.s32 %s363, 3
          %s445 = sand.u32 %s363, 7
          %s446 = smul.addr %s444, 4
          %s447 = scalar_lea.vmem [#allocation2], %s446
          %vm448 = vcmask 257024
          %449 = vst.msk [vmem:[%s447] sm:$0xf] %vm448, %v440
          %450 = vst.msk [vmem:[%s447 + $0x4] sm:$0xf] %vm448, %v441
          %451 = vrot.lane.b32.xlu0 %v440, 96
          %v452 = vpop.permute.xlu0 %451
          %453 = vrot.lane.b32.xlu0 %v441, 96
          %v454 = vpop.permute.xlu0 %453
          %s457 = smul.addr %s444, 4
          %s458 = scalar_lea.vmem [#allocation3], %s457
          %459 = vst.msk [vmem:[%s458] sm:$0xf] %vm448, %v452
          %460 = vst.msk [vmem:[%s458 + $0x4] sm:$0xf] %vm448, %v454
        $region64: #{tpu_custom_call.1} parent=47 // pred_fallthru
          _
        %p461 = scmp.eq.s32.totalorder %s29, 1
        // Predicated region
        $region65: #{tpu_custom_call.1} parent=47 // pred_check
          %p462 = pneg %p461
        $region66: #{tpu_custom_call.1} parent=47 // pred_check_branch
          %464 = sbr.rel (%p462) target = $region68
        $region67: #{tpu_custom_call.1} parent=47 // pred_region
          %v465 = vld [vmem:[%s358] sm:$0xf]
          %v466 = vld [vmem:[%s358 + $0x4] sm:$0xf]
          %v467 = vunpack.c.l.bf16 %v465
          %v468 = vunpack.c.l.bf16 %v466
          %v469 = vld [vmem:[#allocation5] sm:$0xf]
          %v470 = vld [vmem:[#allocation5 + $0x4] sm:$0xf]
          %v471 = vld [vmem:[#allocation5 + $0x8] sm:$0xf]
          %v472 = vld [vmem:[#allocation5 + $0xc] sm:$0xf]
          %v475 = vunpack.c.l.b16 %v465
          %v476 = vunpack.c.l.b16 %v466
          %v477 = vpack.c.b16 %v476, %v475
          %v482 = vunpack.c.l.b16 %v469
          %v483 = vunpack.c.l.b16 %v470
          %v484 = vunpack.c.l.b16 %v471
          %v485 = vunpack.c.l.b16 %v472
          %v486 = vpack.c.b16 %v483, %v482
          %v487 = vpack.c.b16 %v485, %v484
          %vm490 = vcmask 261120
          %v492 = vsel %vm490, %v477, 0
          %494 = vmatprep.subr.bf16.mxu0 0
          %495 = vmatpush1.bf16.msra.mxu0 0
          %496 = vmatprep.subr.bf16.mxu0 0
          %497 = vmatpush1.bf16.msra.mxu0 0
          %498 = vmatprep.subr.bf16.mxu0 0
          %499 = vmatpush1.bf16.msra.mxu0 0
          %500 = vmatprep.subr.bf16.mxu0 0
          %501 = vmatpush1.bf16.msra.mxu0 0
          %502 = vmatprep.subr.bf16.mxu0 0
          %503 = vmatpush1.bf16.msra.mxu0 0
          %504 = vmatprep.subr.bf16.mxu0 0
          %505 = vmatpush1.bf16.msra.mxu0 0
          %506 = vmatprep.subr.bf16.mxu0 0
          %507 = vmatpush1.bf16.msra.mxu0 %v487
          %508 = vmatprep.subr.bf16.mxu0 0
          %509 = vmatpush1.bf16.msra.mxu0 %v486
          %510 = vmatprep.subr.bf16.mxu0 0
          %511 = vmatpush2.bf16.msra.mxu0 0
          %512 = vmatprep.subr.bf16.mxu0 0
          %513 = vmatpush2.bf16.msra.mxu0 0
          %514 = vmatprep.subr.bf16.mxu0 0
          %515 = vmatpush2.bf16.msra.mxu0 0
          %516 = vmatprep.subr.bf16.mxu0 0
          %517 = vmatpush2.bf16.msra.mxu0 0
          %518 = vmatprep.subr.bf16.mxu0 0
          %519 = vmatpush2.bf16.msra.mxu0 0
          %520 = vmatprep.subr.bf16.mxu0 0
          %521 = vmatpush2.bf16.msra.mxu0 0
          %522 = vmatprep.subr.bf16.mxu0 0
          %523 = vmatpush2.bf16.msra.mxu0 0
          %524 = vmatprep.subr.bf16.mxu0 0
          %525 = vmatpush2.bf16.msra.mxu0 0
          %526 = vmatprep.mubr.bf16.mxu0 0
          %527 = vmatmul.mubr.bf16.gmra.mxu0 %v492
          %v528 = vpop.f32.mrf.mxu0
          %v529 = vadd.f32 0.0, %v528
          %v530 = vpop.f32.mrf.mxu0
          %v531 = vpop.f32.mrf.mxu0
          %v532 = vadd.f32 0.0, %v531
          %v533 = vpop.f32.mrf.mxu0
          %534 = vdwg.mxu0
          %v535 = vpack.c.bf16 %v532, %v529
          %v536 = vld [vmem:[%s3] sm:$0xf]
          %v537 = vld [vmem:[%s3 + $0x4] sm:$0xf]
          %v538 = vld [vmem:[%s3 + $0x8] sm:$0xf]
          %v539 = vld [vmem:[%s3 + $0xc] sm:$0xf]
          %v540 = vld [vmem:[%s3 + $0x10] sm:$0xf]
          %v541 = vld [vmem:[%s3 + $0x14] sm:$0xf]
          %v542 = vld [vmem:[%s3 + $0x18] sm:$0xf]
          %v543 = vld [vmem:[%s3 + $0x1c] sm:$0xf]
          %v544 = vlaneseq
          %v545 = vshrl.u32 %v544, 7
          %v546 = vadd.s32 %v545, 8
          %v547 = vstv %s363
          %v548 = vadd.s32 %v547, %v545
          %v549 = vadd.s32 %v547, %v546
          %v550 = vld [vmem:[#allocation2] sm:$0xf]
          %v551 = vld [vmem:[#allocation2 + $0x4] sm:$0xf]
          %v552 = vld [vmem:[#allocation2 + $0x8] sm:$0xf]
          %v553 = vld [vmem:[#allocation2 + $0xc] sm:$0xf]
          %v554 = vld [vmem:[#allocation3] sm:$0xf]
          %v555 = vld [vmem:[#allocation3 + $0x4] sm:$0xf]
          %v556 = vld [vmem:[#allocation3 + $0x8] sm:$0xf]
          %v557 = vld [vmem:[#allocation3 + $0xc] sm:$0xf]
          %v566 = vunpack.c.l.b16 %v536
          %v567 = vunpack.c.l.b16 %v537
          %v568 = vunpack.c.l.b16 %v538
          %v569 = vunpack.c.l.b16 %v539
          %v570 = vunpack.c.l.b16 %v540
          %v571 = vunpack.c.l.b16 %v541
          %v572 = vunpack.c.l.b16 %v542
          %v573 = vunpack.c.l.b16 %v543
          %v574 = vpack.c.b16 %v567, %v566
          %v575 = vpack.c.b16 %v569, %v568
          %v576 = vpack.c.b16 %v571, %v570
          %v577 = vpack.c.b16 %v573, %v572
          %vm578 = vcmask 64512
          %v580 = vsel %vm578, %v535, 0
          %v583 = vsel %vm578, %v574, 0
          %v586 = vsel %vm578, %v575, 0
          %v589 = vsel %vm578, %v576, 0
          %v592 = vsel %vm578, %v577, 0
          %594 = vmatprep.subr.bf16.mxu0 0
          %595 = vmatpush1.bf16.xpose.msra.mxu0 0
          %596 = vmatprep.subr.bf16.mxu0 0
          %597 = vmatpush1.bf16.xpose.msra.mxu0 0
          %598 = vmatprep.subr.bf16.mxu0 0
          %599 = vmatpush1.bf16.xpose.msra.mxu0 0
          %600 = vmatprep.subr.bf16.mxu0 0
          %601 = vmatpush1.bf16.xpose.msra.mxu0 0
          %602 = vmatprep.subr.bf16.mxu0 0
          %603 = vmatpush1.bf16.xpose.msra.mxu0 %v592
          %604 = vmatprep.subr.bf16.mxu0 0
          %605 = vmatpush1.bf16.xpose.msra.mxu0 %v589
          %606 = vmatprep.subr.bf16.mxu0 0
          %607 = vmatpush1.bf16.xpose.msra.mxu0 %v586
          %608 = vmatprep.subr.bf16.mxu0 0
          %609 = vmatpush1.bf16.xpose.msra.mxu0 %v583
          %610 = vmatprep.subr.bf16.mxu0 0
          %611 = vmatpush2.bf16.xpose.msra.mxu0 0
          %612 = vmatprep.subr.bf16.mxu0 0
          %613 = vmatpush2.bf16.xpose.msra.mxu0 0
          %614 = vmatprep.subr.bf16.mxu0 0
          %615 = vmatpush2.bf16.xpose.msra.mxu0 0
          %616 = vmatprep.subr.bf16.mxu0 0
          %617 = vmatpush2.bf16.xpose.msra.mxu0 0
          %618 = vmatprep.subr.bf16.mxu0 0
          %619 = vmatpush2.bf16.xpose.msra.mxu0 0
          %620 = vmatprep.subr.bf16.mxu0 0
          %621 = vmatpush2.bf16.xpose.msra.mxu0 0
          %622 = vmatprep.subr.bf16.mxu0 0
          %623 = vmatpush2.bf16.xpose.msra.mxu0 0
          %624 = vmatprep.subr.bf16.mxu0 0
          %625 = vmatpush2.bf16.xpose.msra.mxu0 0
          %626 = vmatprep.mubr.bf16.mxu0 0
          %627 = vmatmul.mubr.bf16.gmra.mxu0 %v580
          %v628 = vpop.f32.mrf.mxu0
          %v629 = vadd.f32 0.0, %v628
          %v630 = vpop.f32.mrf.mxu0
          %v631 = vpop.f32.mrf.mxu0
          %v632 = vadd.f32 0.0, %v631
          %v633 = vpop.f32.mrf.mxu0
          %634 = vdwg.mxu0
          %637 = vrot.lane.b32.xlu0 %v629, 66
          %v638 = vpop.permute.xlu0 %637
          %639 = vrot.lane.b32.xlu0 %v632, 66
          %v640 = vpop.permute.xlu0 %639
          %643 = vrot.lane.b32.xlu0 %v629, 1
          %v644 = vpop.permute.xlu0 %643
          %645 = vrot.lane.b32.xlu0 %v632, 1
          %v646 = vpop.permute.xlu0 %645
          %vm649 = vcmask 7168
          %v650 = vsel %vm649, %v638, %v644
          %v651 = vsel %vm649, %v640, %v646
          %v652 = vand.u32 %v548, 1
          %v653 = vand.u32 %v549, 1
          %vm654 = vcmp.eq.s32.totalorder %v652, 1
          %vm655 = vcmp.eq.s32.totalorder %v653, 1
          %v656 = vsel %vm654, 1, 0
          %v657 = vsel %vm655, 1, 0
          %vm658 = vcmp.eq.s32.totalorder %v656, 1
          %vm659 = vcmp.eq.s32.totalorder %v657, 1
          %v660 = vsel %vm658, %v650, %v629
          %v661 = vsel %vm659, %v651, %v632
          %664 = vrot.lane.b32.xlu0 %v660, 67
          %v665 = vpop.permute.xlu0 %664
          %666 = vrot.lane.b32.xlu0 %v661, 67
          %v667 = vpop.permute.xlu0 %666
          %670 = vrot.lane.b32.xlu0 %v660, 2
          %v671 = vpop.permute.xlu0 %670
          %672 = vrot.lane.b32.xlu0 %v661, 2
          %v673 = vpop.permute.xlu0 %672
          %vm676 = vcmask 15360
          %v677 = vsel %vm676, %v665, %v671
          %v678 = vsel %vm676, %v667, %v673
          %v679 = vshra.s32 %v548, 1
          %v680 = vshra.s32 %v549, 1
          %v681 = vand.u32 %v679, 1
          %v682 = vand.u32 %v680, 1
          %vm683 = vcmp.eq.s32.totalorder %v681, 1
          %vm684 = vcmp.eq.s32.totalorder %v682, 1
          %v685 = vsel %vm683, 1, 0
          %v686 = vsel %vm684, 1, 0
          %vm687 = vcmp.eq.s32.totalorder %v685, 1
          %vm688 = vcmp.eq.s32.totalorder %v686, 1
          %v689 = vsel %vm687, %v677, %v660
          %v690 = vsel %vm688, %v678, %v661
          %693 = vrot.lane.b32.xlu0 %v689, 69
          %v694 = vpop.permute.xlu0 %693
          %695 = vrot.lane.b32.xlu0 %v690, 69
          %v696 = vpop.permute.xlu0 %695
          %699 = vrot.lane.b32.xlu0 %v689, 4
          %v700 = vpop.permute.xlu0 %699
          %701 = vrot.lane.b32.xlu0 %v690, 4
          %v702 = vpop.permute.xlu0 %701
          %vm705 = vcmask 31744
          %v706 = vsel %vm705, %v694, %v700
          %v707 = vsel %vm705, %v696, %v702
          %v708 = vshra.s32 %v548, 2
          %v709 = vshra.s32 %v549, 2
          %v710 = vand.u32 %v708, 1
          %v711 = vand.u32 %v709, 1
          %vm712 = vcmp.eq.s32.totalorder %v710, 1
          %vm713 = vcmp.eq.s32.totalorder %v711, 1
          %v714 = vsel %vm712, 1, 0
          %v715 = vsel %vm713, 1, 0
          %vm716 = vcmp.eq.s32.totalorder %v714, 1
          %vm717 = vcmp.eq.s32.totalorder %v715, 1
          %v718 = vsel %vm716, %v706, %v689
          %v719 = vsel %vm717, %v707, %v690
          %722 = vrot.lane.b32.xlu0 %v718, 73
          %v723 = vpop.permute.xlu0 %722
          %724 = vrot.lane.b32.xlu0 %v719, 73
          %v725 = vpop.permute.xlu0 %724
          %728 = vrot.lane.b32.xlu0 %v718, 8
          %v729 = vpop.permute.xlu0 %728
          %730 = vrot.lane.b32.xlu0 %v719, 8
          %v731 = vpop.permute.xlu0 %730
          %v734 = vsel %vm578, %v723, %v729
          %v735 = vsel %vm578, %v725, %v731
          %v736 = vshra.s32 %v548, 3
          %v737 = vshra.s32 %v549, 3
          %v738 = vand.u32 %v736, 1
          %v739 = vand.u32 %v737, 1
          %vm740 = vcmp.eq.s32.totalorder %v738, 1
          %vm741 = vcmp.eq.s32.totalorder %v739, 1
          %v742 = vsel %vm740, 1, 0
          %v743 = vsel %vm741, 1, 0
          %vm744 = vcmp.eq.s32.totalorder %v742, 1
          %vm745 = vcmp.eq.s32.totalorder %v743, 1
          %v746 = vsel %vm744, %v734, %v718
          %v747 = vsel %vm745, %v735, %v719
          %750 = vrot.lane.b32.xlu0 %v746, 81
          %v751 = vpop.permute.xlu0 %750
          %752 = vrot.lane.b32.xlu0 %v747, 81
          %v753 = vpop.permute.xlu0 %752
          %756 = vrot.lane.b32.xlu0 %v746, 16
          %v757 = vpop.permute.xlu0 %756
          %758 = vrot.lane.b32.xlu0 %v747, 16
          %v759 = vpop.permute.xlu0 %758
          %vm762 = vcmask 130048
          %v763 = vsel %vm762, %v751, %v757
          %v764 = vsel %vm762, %v753, %v759
          %v765 = vshra.s32 %v548, 4
          %v766 = vshra.s32 %v549, 4
          %v767 = vand.u32 %v765, 1
          %v768 = vand.u32 %v766, 1
          %vm769 = vcmp.eq.s32.totalorder %v767, 1
          %vm770 = vcmp.eq.s32.totalorder %v768, 1
          %v771 = vsel %vm769, 1, 0
          %v772 = vsel %vm770, 1, 0
          %vm773 = vcmp.eq.s32.totalorder %v771, 1
          %vm774 = vcmp.eq.s32.totalorder %v772, 1
          %v775 = vsel %vm773, %v763, %v746
          %v776 = vsel %vm774, %v764, %v747
          %v781 = vunpack.c.l.b16 %v550
          %v782 = vunpack.c.l.b16 %v551
          %v783 = vunpack.c.l.b16 %v552
          %v784 = vunpack.c.l.b16 %v553
          %v785 = vpack.c.b16 %v782, %v781
          %v786 = vpack.c.b16 %v784, %v783
          %789 = vrot.lane.b32.xlu0 %v775, 97
          %v790 = vpop.permute.xlu0 %789
          %791 = vrot.lane.b32.xlu0 %v776, 97
          %v792 = vpop.permute.xlu0 %791
          %v796 = vsel %vm578, %v785, 0
          %v799 = vsel %vm578, %v786, 0
          %801 = vmatprep.subr.bf16.mxu0 0
          %802 = vmatpush1.bf16.xpose.msra.mxu0 0
          %803 = vmatprep.subr.bf16.mxu0 0
          %804 = vmatpush1.bf16.xpose.msra.mxu0 0
          %805 = vmatprep.subr.bf16.mxu0 0
          %806 = vmatpush1.bf16.xpose.msra.mxu0 0
          %807 = vmatprep.subr.bf16.mxu0 0
          %808 = vmatpush1.bf16.xpose.msra.mxu0 0
          %809 = vmatprep.subr.bf16.mxu0 0
          %810 = vmatpush1.bf16.xpose.msra.mxu0 0
          %811 = vmatprep.subr.bf16.mxu0 0
          %812 = vmatpush1.bf16.xpose.msra.mxu0 0
          %813 = vmatprep.subr.bf16.mxu0 0
          %814 = vmatpush1.bf16.xpose.msra.mxu0 %v799
          %815 = vmatprep.subr.bf16.mxu0 0
          %816 = vmatpush1.bf16.xpose.msra.mxu0 %v796
          %817 = vmatprep.subr.bf16.mxu0 0
          %818 = vmatpush2.bf16.xpose.msra.mxu0 0
          %819 = vmatprep.subr.bf16.mxu0 0
          %820 = vmatpush2.bf16.xpose.msra.mxu0 0
          %821 = vmatprep.subr.bf16.mxu0 0
          %822 = vmatpush2.bf16.xpose.msra.mxu0 0
          %823 = vmatprep.subr.bf16.mxu0 0
          %824 = vmatpush2.bf16.xpose.msra.mxu0 0
          %825 = vmatprep.subr.bf16.mxu0 0
          %826 = vmatpush2.bf16.xpose.msra.mxu0 0
          %827 = vmatprep.subr.bf16.mxu0 0
          %828 = vmatpush2.bf16.xpose.msra.mxu0 0
          %829 = vmatprep.subr.bf16.mxu0 0
          %830 = vmatpush2.bf16.xpose.msra.mxu0 0
          %831 = vmatprep.subr.bf16.mxu0 0
          %832 = vmatpush2.bf16.xpose.msra.mxu0 0
          %833 = vmatprep.mubr.bf16.mxu0 0
          %834 = vmatmul.mubr.bf16.gmra.mxu0 %v580
          %v835 = vpop.f32.mrf.mxu0
          %v836 = vadd.f32 %v790, %v835
          %v837 = vpop.f32.mrf.mxu0
          %v838 = vpop.f32.mrf.mxu0
          %v839 = vadd.f32 %v792, %v838
          %v840 = vpop.f32.mrf.mxu0
          %841 = vdwg.mxu0
          %v842 = vsel %vm490, %v836, -inf
          %843 = vmax.xlane.f32.xlu0 %v842
          %v844 = vpop.xlane.xlu0 %843
          %v845 = vsel %vm490, %v839, -inf
          %846 = vmax.xlane.f32.xlu0 %v845
          %v847 = vpop.xlane.xlu0 %846
          %v848 = vsub.f32 %v836, %v844
          %v849 = vsub.f32 %v839, %v847
          %v850 = vmul.f32 %v848, 1.442695
          %v851 = vpow.pop %v850
          %v852 = vmul.f32 %v849, 1.442695
          %v853 = vpow.pop %v852
          %v854 = vsel %vm490, %v851, 0.0
          %855 = vadd.xlane.f32.xlu0 %v854
          %v856 = vpop.xlane.xlu0 %855
          %v857 = vsel %vm490, %v853, 0.0
          %858 = vadd.xlane.f32.xlu0 %v857
          %v859 = vpop.xlane.xlu0 %858
          %v860 = vrcp.pop %v856
          %v861 = vrcp.pop %v859
          %v862 = vmul.f32 %v851, %v860
          %v863 = vmul.f32 %v853, %v861
          %v864 = vpack.c.bf16 %v863, %v862
          %v869 = vunpack.c.l.b16 %v554
          %v870 = vunpack.c.l.b16 %v555
          %v871 = vunpack.c.l.b16 %v556
          %v872 = vunpack.c.l.b16 %v557
          %v873 = vpack.c.b16 %v870, %v869
          %v874 = vpack.c.b16 %v872, %v871
          %v878 = vsel %vm490, %v864, 0
          %880 = vmatprep.subr.bf16.mxu0 0
          %881 = vmatpush1.bf16.msra.mxu0 0
          %882 = vmatprep.subr.bf16.mxu0 0
          %883 = vmatpush1.bf16.msra.mxu0 0
          %884 = vmatprep.subr.bf16.mxu0 0
          %885 = vmatpush1.bf16.msra.mxu0 0
          %886 = vmatprep.subr.bf16.mxu0 0
          %887 = vmatpush1.bf16.msra.mxu0 0
          %888 = vmatprep.subr.bf16.mxu0 0
          %889 = vmatpush1.bf16.msra.mxu0 0
          %890 = vmatprep.subr.bf16.mxu0 0
          %891 = vmatpush1.bf16.msra.mxu0 0
          %892 = vmatprep.subr.bf16.mxu0 0
          %893 = vmatpush1.bf16.msra.mxu0 %v874
          %894 = vmatprep.subr.bf16.mxu0 0
          %895 = vmatpush1.bf16.msra.mxu0 %v873
          %896 = vmatprep.subr.bf16.mxu0 0
          %897 = vmatpush2.bf16.msra.mxu0 0
          %898 = vmatprep.subr.bf16.mxu0 0
          %899 = vmatpush2.bf16.msra.mxu0 0
          %900 = vmatprep.subr.bf16.mxu0 0
          %901 = vmatpush2.bf16.msra.mxu0 0
          %902 = vmatprep.subr.bf16.mxu0 0
          %903 = vmatpush2.bf16.msra.mxu0 0
          %904 = vmatprep.subr.bf16.mxu0 0
          %905 = vmatpush2.bf16.msra.mxu0 0
          %906 = vmatprep.subr.bf16.mxu0 0
          %907 = vmatpush2.bf16.msra.mxu0 0
          %908 = vmatprep.subr.bf16.mxu0 0
          %909 = vmatpush2.bf16.msra.mxu0 0
          %910 = vmatprep.subr.bf16.mxu0 0
          %911 = vmatpush2.bf16.msra.mxu0 0
          %912 = vmatprep.mubr.bf16.mxu0 0
          %913 = vmatmul.mubr.bf16.gmra.mxu0 %v878
          %v914 = vpop.f32.mrf.mxu0
          %v915 = vadd.f32 0.0, %v914
          %v916 = vpop.f32.mrf.mxu0
          %v917 = vpop.f32.mrf.mxu0
          %v918 = vadd.f32 0.0, %v917
          %v919 = vpop.f32.mrf.mxu0
          %920 = vdwg.mxu0
          %v921 = vpack.c.bf16 %v918, %v915
          %v923 = vunpack.c.l.b16 %v921
          %v924 = vunpack.c.h.b16 %v921
          %v925 = vpack.c.b16 %v923, %v923
          %v926 = vpack.c.b16 %v924, %v924
          %vm929 = vcmask 60416
          %930 = vst.msk [vmem:[#allocation4] sm:$0xf] %vm929, %v925
          %931 = vst.msk [vmem:[#allocation4 + $0x4] sm:$0xf] %vm929, %v926
          %v932 = vld [vmem:[#allocation2] sm:$0xf]
          %v933 = vld [vmem:[#allocation2 + $0x4] sm:$0xf]
          %v934 = vld [vmem:[#allocation2 + $0x8] sm:$0xf]
          %v935 = vld [vmem:[#allocation2 + $0xc] sm:$0xf]
          %v936 = vld [vmem:[#allocation3] sm:$0xf]
          %v937 = vld [vmem:[#allocation3 + $0x4] sm:$0xf]
          %v938 = vld [vmem:[#allocation3 + $0x8] sm:$0xf]
          %v939 = vld [vmem:[#allocation3 + $0xc] sm:$0xf]
          %941 = vrot.lane.b32.xlu0 %v535, 120
          %v942 = vpop.permute.xlu0 %941
          %v944 = vsel %vm578, %v942, 0
          %946 = vmatprep.subr.bf16.mxu0 0
          %947 = vmatpush1.bf16.xpose.msra.mxu0 0
          %948 = vmatprep.subr.bf16.mxu0 0
          %949 = vmatpush1.bf16.xpose.msra.mxu0 0
          %950 = vmatprep.subr.bf16.mxu0 0
          %951 = vmatpush1.bf16.xpose.msra.mxu0 0
          %952 = vmatprep.subr.bf16.mxu0 0
          %953 = vmatpush1.bf16.xpose.msra.mxu0 0
          %954 = vmatprep.subr.bf16.mxu0 0
          %955 = vmatpush1.bf16.xpose.msra.mxu0 %v592
          %956 = vmatprep.subr.bf16.mxu0 0
          %957 = vmatpush1.bf16.xpose.msra.mxu0 %v589
          %958 = vmatprep.subr.bf16.mxu0 0
          %959 = vmatpush1.bf16.xpose.msra.mxu0 %v586
          %960 = vmatprep.subr.bf16.mxu0 0
          %961 = vmatpush1.bf16.xpose.msra.mxu0 %v583
          %962 = vmatprep.subr.bf16.mxu0 0
          %963 = vmatpush2.bf16.xpose.msra.mxu0 0
          %964 = vmatprep.subr.bf16.mxu0 0
          %965 = vmatpush2.bf16.xpose.msra.mxu0 0
          %966 = vmatprep.subr.bf16.mxu0 0
          %967 = vmatpush2.bf16.xpose.msra.mxu0 0
          %968 = vmatprep.subr.bf16.mxu0 0
          %969 = vmatpush2.bf16.xpose.msra.mxu0 0
          %970 = vmatprep.subr.bf16.mxu0 0
          %971 = vmatpush2.bf16.xpose.msra.mxu0 0
          %972 = vmatprep.subr.bf16.mxu0 0
          %973 = vmatpush2.bf16.xpose.msra.mxu0 0
          %974 = vmatprep.subr.bf16.mxu0 0
          %975 = vmatpush2.bf16.xpose.msra.mxu0 0
          %976 = vmatprep.subr.bf16.mxu0 0
          %977 = vmatpush2.bf16.xpose.msra.mxu0 0
          %978 = vmatprep.mubr.bf16.mxu0 0
          %979 = vmatmul.mubr.bf16.gmra.mxu0 %v944
          %v980 = vpop.f32.mrf.mxu0
          %v981 = vadd.f32 0.0, %v980
          %v982 = vpop.f32.mrf.mxu0
          %v983 = vpop.f32.mrf.mxu0
          %v984 = vadd.f32 0.0, %v983
          %v985 = vpop.f32.mrf.mxu0
          %986 = vdwg.mxu0
          %989 = vrot.lane.b32.xlu0 %v981, 66
          %v990 = vpop.permute.xlu0 %989
          %991 = vrot.lane.b32.xlu0 %v984, 66
          %v992 = vpop.permute.xlu0 %991
          %995 = vrot.lane.b32.xlu0 %v981, 1
          %v996 = vpop.permute.xlu0 %995
          %997 = vrot.lane.b32.xlu0 %v984, 1
          %v998 = vpop.permute.xlu0 %997
          %v1001 = vsel %vm649, %v990, %v996
          %v1002 = vsel %vm649, %v992, %v998
          %v1003 = vsel %vm658, %v1001, %v981
          %v1004 = vsel %vm659, %v1002, %v984
          %1007 = vrot.lane.b32.xlu0 %v1003, 67
          %v1008 = vpop.permute.xlu0 %1007
          %1009 = vrot.lane.b32.xlu0 %v1004, 67
          %v1010 = vpop.permute.xlu0 %1009
          %1013 = vrot.lane.b32.xlu0 %v1003, 2
          %v1014 = vpop.permute.xlu0 %1013
          %1015 = vrot.lane.b32.xlu0 %v1004, 2
          %v1016 = vpop.permute.xlu0 %1015
          %v1019 = vsel %vm676, %v1008, %v1014
          %v1020 = vsel %vm676, %v1010, %v1016
          %v1021 = vsel %vm687, %v1019, %v1003
          %v1022 = vsel %vm688, %v1020, %v1004
          %1025 = vrot.lane.b32.xlu0 %v1021, 69
          %v1026 = vpop.permute.xlu0 %1025
          %1027 = vrot.lane.b32.xlu0 %v1022, 69
          %v1028 = vpop.permute.xlu0 %1027
          %1031 = vrot.lane.b32.xlu0 %v1021, 4
          %v1032 = vpop.permute.xlu0 %1031
          %1033 = vrot.lane.b32.xlu0 %v1022, 4
          %v1034 = vpop.permute.xlu0 %1033
          %v1037 = vsel %vm705, %v1026, %v1032
          %v1038 = vsel %vm705, %v1028, %v1034
          %v1039 = vsel %vm716, %v1037, %v1021
          %v1040 = vsel %vm717, %v1038, %v1022
          %1043 = vrot.lane.b32.xlu0 %v1039, 73
          %v1044 = vpop.permute.xlu0 %1043
          %1045 = vrot.lane.b32.xlu0 %v1040, 73
          %v1046 = vpop.permute.xlu0 %1045
          %1049 = vrot.lane.b32.xlu0 %v1039, 8
          %v1050 = vpop.permute.xlu0 %1049
          %1051 = vrot.lane.b32.xlu0 %v1040, 8
          %v1052 = vpop.permute.xlu0 %1051
          %v1055 = vsel %vm578, %v1044, %v1050
          %v1056 = vsel %vm578, %v1046, %v1052
          %v1057 = vsel %vm744, %v1055, %v1039
          %v1058 = vsel %vm745, %v1056, %v1040
          %1061 = vrot.lane.b32.xlu0 %v1057, 81
          %v1062 = vpop.permute.xlu0 %1061
          %1063 = vrot.lane.b32.xlu0 %v1058, 81
          %v1064 = vpop.permute.xlu0 %1063
          %1067 = vrot.lane.b32.xlu0 %v1057, 16
          %v1068 = vpop.permute.xlu0 %1067
          %1069 = vrot.lane.b32.xlu0 %v1058, 16
          %v1070 = vpop.permute.xlu0 %1069
          %v1073 = vsel %vm762, %v1062, %v1068
          %v1074 = vsel %vm762, %v1064, %v1070
          %v1075 = vsel %vm773, %v1073, %v1057
          %v1076 = vsel %vm774, %v1074, %v1058
          %v1081 = vunpack.c.l.b16 %v932
          %v1082 = vunpack.c.l.b16 %v933
          %v1083 = vunpack.c.l.b16 %v934
          %v1084 = vunpack.c.l.b16 %v935
          %v1085 = vpack.c.b16 %v1082, %v1081
          %v1086 = vpack.c.b16 %v1084, %v1083
          %1087 = vrot.lane.b32.xlu0 %v1085, 120
          %v1088 = vpop.permute.xlu0 %1087
          %1089 = vrot.lane.b32.xlu0 %v1086, 120
          %v1090 = vpop.permute.xlu0 %1089
          %1093 = vrot.lane.b32.xlu0 %v1075, 97
          %v1094 = vpop.permute.xlu0 %1093
          %1095 = vrot.lane.b32.xlu0 %v1076, 97
          %v1096 = vpop.permute.xlu0 %1095
          %v1100 = vsel %vm578, %v1088, 0
          %v1103 = vsel %vm578, %v1090, 0
          %1105 = vmatprep.subr.bf16.mxu0 0
          %1106 = vmatpush1.bf16.xpose.msra.mxu0 0
          %1107 = vmatprep.subr.bf16.mxu0 0
          %1108 = vmatpush1.bf16.xpose.msra.mxu0 0
          %1109 = vmatprep.subr.bf16.mxu0 0
          %1110 = vmatpush1.bf16.xpose.msra.mxu0 0
          %1111 = vmatprep.subr.bf16.mxu0 0
          %1112 = vmatpush1.bf16.xpose.msra.mxu0 0
          %1113 = vmatprep.subr.bf16.mxu0 0
          %1114 = vmatpush1.bf16.xpose.msra.mxu0 0
          %1115 = vmatprep.subr.bf16.mxu0 0
          %1116 = vmatpush1.bf16.xpose.msra.mxu0 0
          %1117 = vmatprep.subr.bf16.mxu0 0
          %1118 = vmatpush1.bf16.xpose.msra.mxu0 %v1103
          %1119 = vmatprep.subr.bf16.mxu0 0
          %1120 = vmatpush1.bf16.xpose.msra.mxu0 %v1100
          %1121 = vmatprep.subr.bf16.mxu0 0
          %1122 = vmatpush2.bf16.xpose.msra.mxu0 0
          %1123 = vmatprep.subr.bf16.mxu0 0
          %1124 = vmatpush2.bf16.xpose.msra.mxu0 0
          %1125 = vmatprep.subr.bf16.mxu0 0
          %1126 = vmatpush2.bf16.xpose.msra.mxu0 0
          %1127 = vmatprep.subr.bf16.mxu0 0
          %1128 = vmatpush2.bf16.xpose.msra.mxu0 0
          %1129 = vmatprep.subr.bf16.mxu0 0
          %1130 = vmatpush2.bf16.xpose.msra.mxu0 0
          %1131 = vmatprep.subr.bf16.mxu0 0
          %1132 = vmatpush2.bf16.xpose.msra.mxu0 0
          %1133 = vmatprep.subr.bf16.mxu0 0
          %1134 = vmatpush2.bf16.xpose.msra.mxu0 0
          %1135 = vmatprep.subr.bf16.mxu0 0
          %1136 = vmatpush2.bf16.xpose.msra.mxu0 0
          %1137 = vmatprep.mubr.bf16.mxu0 0
          %1138 = vmatmul.mubr.bf16.gmra.mxu0 %v944
          %v1139 = vpop.f32.mrf.mxu0
          %v1140 = vadd.f32 %v1094, %v1139
          %v1141 = vpop.f32.mrf.mxu0
          %v1142 = vpop.f32.mrf.mxu0
          %v1143 = vadd.f32 %v1096, %v1142
          %v1144 = vpop.f32.mrf.mxu0
          %1145 = vdwg.mxu0
          %v1146 = vsel %vm490, %v1140, -inf
          %1147 = vmax.xlane.f32.xlu0 %v1146
          %v1148 = vpop.xlane.xlu0 %1147
          %v1149 = vsel %vm490, %v1143, -inf
          %1150 = vmax.xlane.f32.xlu0 %v1149
          %v1151 = vpop.xlane.xlu0 %1150
          %v1152 = vsub.f32 %v1140, %v1148
          %v1153 = vsub.f32 %v1143, %v1151
          %v1154 = vmul.f32 %v1152, 1.442695
          %v1155 = vpow.pop %v1154
          %v1156 = vmul.f32 %v1153, 1.442695
          %v1157 = vpow.pop %v1156
          %v1158 = vsel %vm490, %v1155, 0.0
          %1159 = vadd.xlane.f32.xlu0 %v1158
          %v1160 = vpop.xlane.xlu0 %1159
          %v1161 = vsel %vm490, %v1157, 0.0
          %1162 = vadd.xlane.f32.xlu0 %v1161
          %v1163 = vpop.xlane.xlu0 %1162
          %v1164 = vrcp.pop %v1160
          %v1165 = vrcp.pop %v1163
          %v1166 = vmul.f32 %v1155, %v1164
          %v1167 = vmul.f32 %v1157, %v1165
          %v1168 = vpack.c.bf16 %v1167, %v1166
          %v1173 = vunpack.c.l.b16 %v936
          %v1174 = vunpack.c.l.b16 %v937
          %v1175 = vunpack.c.l.b16 %v938
          %v1176 = vunpack.c.l.b16 %v939
          %v1177 = vpack.c.b16 %v1174, %v1173
          %v1178 = vpack.c.b16 %v1176, %v1175
          %1179 = vrot.lane.b32.xlu0 %v1177, 120
          %v1180 = vpop.permute.xlu0 %1179
          %1181 = vrot.lane.b32.xlu0 %v1178, 120
          %v1182 = vpop.permute.xlu0 %1181
          %v1186 = vsel %vm490, %v1168, 0
          %1188 = vmatprep.subr.bf16.mxu0 0
          %1189 = vmatpush1.bf16.msra.mxu0 0
          %1190 = vmatprep.subr.bf16.mxu0 0
          %1191 = vmatpush1.bf16.msra.mxu0 0
          %1192 = vmatprep.subr.bf16.mxu0 0
          %1193 = vmatpush1.bf16.msra.mxu0 0
          %1194 = vmatprep.subr.bf16.mxu0 0
          %1195 = vmatpush1.bf16.msra.mxu0 0
          %1196 = vmatprep.subr.bf16.mxu0 0
          %1197 = vmatpush1.bf16.msra.mxu0 0
          %1198 = vmatprep.subr.bf16.mxu0 0
          %1199 = vmatpush1.bf16.msra.mxu0 0
          %1200 = vmatprep.subr.bf16.mxu0 0
          %1201 = vmatpush1.bf16.msra.mxu0 %v1182
          %1202 = vmatprep.subr.bf16.mxu0 0
          %1203 = vmatpush1.bf16.msra.mxu0 %v1180
          %1204 = vmatprep.subr.bf16.mxu0 0
          %1205 = vmatpush2.bf16.msra.mxu0 0
          %1206 = vmatprep.subr.bf16.mxu0 0
          %1207 = vmatpush2.bf16.msra.mxu0 0
          %1208 = vmatprep.subr.bf16.mxu0 0
          %1209 = vmatpush2.bf16.msra.mxu0 0
          %1210 = vmatprep.subr.bf16.mxu0 0
          %1211 = vmatpush2.bf16.msra.mxu0 0
          %1212 = vmatprep.subr.bf16.mxu0 0
          %1213 = vmatpush2.bf16.msra.mxu0 0
          %1214 = vmatprep.subr.bf16.mxu0 0
          %1215 = vmatpush2.bf16.msra.mxu0 0
          %1216 = vmatprep.subr.bf16.mxu0 0
          %1217 = vmatpush2.bf16.msra.mxu0 0
          %1218 = vmatprep.subr.bf16.mxu0 0
          %1219 = vmatpush2.bf16.msra.mxu0 0
          %1220 = vmatprep.mubr.bf16.mxu0 0
          %1221 = vmatmul.mubr.bf16.gmra.mxu0 %v1186
          %v1222 = vpop.f32.mrf.mxu0
          %v1223 = vadd.f32 0.0, %v1222
          %v1224 = vpop.f32.mrf.mxu0
          %v1225 = vpop.f32.mrf.mxu0
          %v1226 = vadd.f32 0.0, %v1225
          %v1227 = vpop.f32.mrf.mxu0
          %1228 = vdwg.mxu0
          %v1229 = vpack.c.bf16 %v1226, %v1223
          %v1231 = vunpack.c.l.b16 %v1229
          %v1232 = vunpack.c.h.b16 %v1229
          %v1233 = vpack.c.b16 %v1231, %v1231
          %v1234 = vpack.c.b16 %v1232, %v1232
          %1235 = vrot.lane.b32.xlu0 %v1233, 8
          %v1236 = vpop.permute.xlu0 %1235
          %1237 = vrot.lane.b32.xlu0 %v1234, 8
          %v1238 = vpop.permute.xlu0 %1237
          %vm1241 = vcmask 126016
          %1242 = vst.msk [vmem:[#allocation4] sm:$0xf] %vm1241, %v1236
          %1243 = vst.msk [vmem:[#allocation4 + $0x4] sm:$0xf] %vm1241, %v1238
          %v1244 = vld [vmem:[#allocation2] sm:$0xf]
          %v1245 = vld [vmem:[#allocation2 + $0x4] sm:$0xf]
          %v1246 = vld [vmem:[#allocation2 + $0x8] sm:$0xf]
          %v1247 = vld [vmem:[#allocation2 + $0xc] sm:$0xf]
          %v1248 = vld [vmem:[#allocation3] sm:$0xf]
          %v1249 = vld [vmem:[#allocation3 + $0x4] sm:$0xf]
          %v1250 = vld [vmem:[#allocation3 + $0x8] sm:$0xf]
          %v1251 = vld [vmem:[#allocation3 + $0xc] sm:$0xf]
          %1252 = vrot.lane.b32.xlu0 %v535, 112
          %v1253 = vpop.permute.xlu0 %1252
          %v1255 = vsel %vm578, %v1253, 0
          %1257 = vmatprep.subr.bf16.mxu0 0
          %1258 = vmatpush1.bf16.xpose.msra.mxu0 0
          %1259 = vmatprep.subr.bf16.mxu0 0
          %1260 = vmatpush1.bf16.xpose.msra.mxu0 0
          %1261 = vmatprep.subr.bf16.mxu0 0
          %1262 = vmatpush1.bf16.xpose.msra.mxu0 0
          %1263 = vmatprep.subr.bf16.mxu0 0
          %1264 = vmatpush1.bf16.xpose.msra.mxu0 0
          %1265 = vmatprep.subr.bf16.mxu0 0
          %1266 = vmatpush1.bf16.xpose.msra.mxu0 %v592
          %1267 = vmatprep.subr.bf16.mxu0 0
          %1268 = vmatpush1.bf16.xpose.msra.mxu0 %v589
          %1269 = vmatprep.subr.bf16.mxu0 0
          %1270 = vmatpush1.bf16.xpose.msra.mxu0 %v586
          %1271 = vmatprep.subr.bf16.mxu0 0
          %1272 = vmatpush1.bf16.xpose.msra.mxu0 %v583
          %1273 = vmatprep.subr.bf16.mxu0 0
          %1274 = vmatpush2.bf16.xpose.msra.mxu0 0
          %1275 = vmatprep.subr.bf16.mxu0 0
          %1276 = vmatpush2.bf16.xpose.msra.mxu0 0
          %1277 = vmatprep.subr.bf16.mxu0 0
          %1278 = vmatpush2.bf16.xpose.msra.mxu0 0
          %1279 = vmatprep.subr.bf16.mxu0 0
          %1280 = vmatpush2.bf16.xpose.msra.mxu0 0
          %1281 = vmatprep.subr.bf16.mxu0 0
          %1282 = vmatpush2.bf16.xpose.msra.mxu0 0
          %1283 = vmatprep.subr.bf16.mxu0 0
          %1284 = vmatpush2.bf16.xpose.msra.mxu0 0
          %1285 = vmatprep.subr.bf16.mxu0 0
          %1286 = vmatpush2.bf16.xpose.msra.mxu0 0
          %1287 = vmatprep.subr.bf16.mxu0 0
          %1288 = vmatpush2.bf16.xpose.msra.mxu0 0
          %1289 = vmatprep.mubr.bf16.mxu0 0
          %1290 = vmatmul.mubr.bf16.gmra.mxu0 %v1255
          %v1291 = vpop.f32.mrf.mxu0
          %v1292 = vadd.f32 0.0, %v1291
          %v1293 = vpop.f32.mrf.mxu0
          %v1294 = vpop.f32.mrf.mxu0
          %v1295 = vadd.f32 0.0, %v1294
          %v1296 = vpop.f32.mrf.mxu0
          %1297 = vdwg.mxu0
          %1300 = vrot.lane.b32.xlu0 %v1292, 66
          %v1301 = vpop.permute.xlu0 %1300
          %1302 = vrot.lane.b32.xlu0 %v1295, 66
          %v1303 = vpop.permute.xlu0 %1302
          %1306 = vrot.lane.b32.xlu0 %v1292, 1
          %v1307 = vpop.permute.xlu0 %1306
          %1308 = vrot.lane.b32.xlu0 %v1295, 1
          %v1309 = vpop.permute.xlu0 %1308
          %v1312 = vsel %vm649, %v1301, %v1307
          %v1313 = vsel %vm649, %v1303, %v1309
          %v1314 = vsel %vm658, %v1312, %v1292
          %v1315 = vsel %vm659, %v1313, %v1295
          %1318 = vrot.lane.b32.xlu0 %v1314, 67
          %v1319 = vpop.permute.xlu0 %1318
          %1320 = vrot.lane.b32.xlu0 %v1315, 67
          %v1321 = vpop.permute.xlu0 %1320
          %1324 = vrot.lane.b32.xlu0 %v1314, 2
          %v1325 = vpop.permute.xlu0 %1324
          %1326 = vrot.lane.b32.xlu0 %v1315, 2
          %v1327 = vpop.permute.xlu0 %1326
          %v1330 = vsel %vm676, %v1319, %v1325
          %v1331 = vsel %vm676, %v1321, %v1327
          %v1332 = vsel %vm687, %v1330, %v1314
          %v1333 = vsel %vm688, %v1331, %v1315
          %1336 = vrot.lane.b32.xlu0 %v1332, 69
          %v1337 = vpop.permute.xlu0 %1336
          %1338 = vrot.lane.b32.xlu0 %v1333, 69
          %v1339 = vpop.permute.xlu0 %1338
          %1342 = vrot.lane.b32.xlu0 %v1332, 4
          %v1343 = vpop.permute.xlu0 %1342
          %1344 = vrot.lane.b32.xlu0 %v1333, 4
          %v1345 = vpop.permute.xlu0 %1344
          %v1348 = vsel %vm705, %v1337, %v1343
          %v1349 = vsel %vm705, %v1339, %v1345
          %v1350 = vsel %vm716, %v1348, %v1332
          %v1351 = vsel %vm717, %v1349, %v1333
          %1354 = vrot.lane.b32.xlu0 %v1350, 73
          %v1355 = vpop.permute.xlu0 %1354
          %1356 = vrot.lane.b32.xlu0 %v1351, 73
          %v1357 = vpop.permute.xlu0 %1356
          %1360 = vrot.lane.b32.xlu0 %v1350, 8
          %v1361 = vpop.permute.xlu0 %1360
          %1362 = vrot.lane.b32.xlu0 %v1351, 8
          %v1363 = vpop.permute.xlu0 %1362
          %v1366 = vsel %vm578, %v1355, %v1361
          %v1367 = vsel %vm578, %v1357, %v1363
          %v1368 = vsel %vm744, %v1366, %v1350
          %v1369 = vsel %vm745, %v1367, %v1351
          %1372 = vrot.lane.b32.xlu0 %v1368, 81
          %v1373 = vpop.permute.xlu0 %1372
          %1374 = vrot.lane.b32.xlu0 %v1369, 81
          %v1375 = vpop.permute.xlu0 %1374
          %1378 = vrot.lane.b32.xlu0 %v1368, 16
          %v1379 = vpop.permute.xlu0 %1378
          %1380 = vrot.lane.b32.xlu0 %v1369, 16
          %v1381 = vpop.permute.xlu0 %1380
          %v1384 = vsel %vm762, %v1373, %v1379
          %v1385 = vsel %vm762, %v1375, %v1381
          %v1386 = vsel %vm773, %v1384, %v1368
          %v1387 = vsel %vm774, %v1385, %v1369
          %v1392 = vunpack.c.l.b16 %v1244
          %v1393 = vunpack.c.l.b16 %v1245
          %v1394 = vunpack.c.l.b16 %v1246
          %v1395 = vunpack.c.l.b16 %v1247
          %v1396 = vpack.c.b16 %v1393, %v1392
          %v1397 = vpack.c.b16 %v1395, %v1394
          %1398 = vrot.lane.b32.xlu0 %v1396, 112
          %v1399 = vpop.permute.xlu0 %1398
          %1400 = vrot.lane.b32.xlu0 %v1397, 112
          %v1401 = vpop.permute.xlu0 %1400
          %1404 = vrot.lane.b32.xlu0 %v1386, 97
          %v1405 = vpop.permute.xlu0 %1404
          %1406 = vrot.lane.b32.xlu0 %v1387, 97
          %v1407 = vpop.permute.xlu0 %1406
          %v1411 = vsel %vm578, %v1399, 0
          %v1414 = vsel %vm578, %v1401, 0
          %1416 = vmatprep.subr.bf16.mxu0 0
          %1417 = vmatpush1.bf16.xpose.msra.mxu0 0
          %1418 = vmatprep.subr.bf16.mxu0 0
          %1419 = vmatpush1.bf16.xpose.msra.mxu0 0
          %1420 = vmatprep.subr.bf16.mxu0 0
          %1421 = vmatpush1.bf16.xpose.msra.mxu0 0
          %1422 = vmatprep.subr.bf16.mxu0 0
          %1423 = vmatpush1.bf16.xpose.msra.mxu0 0
          %1424 = vmatprep.subr.bf16.mxu0 0
          %1425 = vmatpush1.bf16.xpose.msra.mxu0 0
          %1426 = vmatprep.subr.bf16.mxu0 0
          %1427 = vmatpush1.bf16.xpose.msra.mxu0 0
          %1428 = vmatprep.subr.bf16.mxu0 0
          %1429 = vmatpush1.bf16.xpose.msra.mxu0 %v1414
          %1430 = vmatprep.subr.bf16.mxu0 0
          %1431 = vmatpush1.bf16.xpose.msra.mxu0 %v1411
          %1432 = vmatprep.subr.bf16.mxu0 0
          %1433 = vmatpush2.bf16.xpose.msra.mxu0 0
          %1434 = vmatprep.subr.bf16.mxu0 0
          %1435 = vmatpush2.bf16.xpose.msra.mxu0 0
          %1436 = vmatprep.subr.bf16.mxu0 0
          %1437 = vmatpush2.bf16.xpose.msra.mxu0 0
          %1438 = vmatprep.subr.bf16.mxu0 0
          %1439 = vmatpush2.bf16.xpose.msra.mxu0 0
          %1440 = vmatprep.subr.bf16.mxu0 0
          %1441 = vmatpush2.bf16.xpose.msra.mxu0 0
          %1442 = vmatprep.subr.bf16.mxu0 0
          %1443 = vmatpush2.bf16.xpose.msra.mxu0 0
          %1444 = vmatprep.subr.bf16.mxu0 0
          %1445 = vmatpush2.bf16.xpose.msra.mxu0 0
          %1446 = vmatprep.subr.bf16.mxu0 0
          %1447 = vmatpush2.bf16.xpose.msra.mxu0 0
          %1448 = vmatprep.mubr.bf16.mxu0 0
          %1449 = vmatmul.mubr.bf16.gmra.mxu0 %v1255
          %v1450 = vpop.f32.mrf.mxu0
          %v1451 = vadd.f32 %v1405, %v1450
          %v1452 = vpop.f32.mrf.mxu0
          %v1453 = vpop.f32.mrf.mxu0
          %v1454 = vadd.f32 %v1407, %v1453
          %v1455 = vpop.f32.mrf.mxu0
          %1456 = vdwg.mxu0
          %v1457 = vsel %vm490, %v1451, -inf
          %1458 = vmax.xlane.f32.xlu0 %v1457
          %v1459 = vpop.xlane.xlu0 %1458
          %v1460 = vsel %vm490, %v1454, -inf
          %1461 = vmax.xlane.f32.xlu0 %v1460
          %v1462 = vpop.xlane.xlu0 %1461
          %v1463 = vsub.f32 %v1451, %v1459
          %v1464 = vsub.f32 %v1454, %v1462
          %v1465 = vmul.f32 %v1463, 1.442695
          %v1466 = vpow.pop %v1465
          %v1467 = vmul.f32 %v1464, 1.442695
          %v1468 = vpow.pop %v1467
          %v1469 = vsel %vm490, %v1466, 0.0
          %1470 = vadd.xlane.f32.xlu0 %v1469
          %v1471 = vpop.xlane.xlu0 %1470
          %v1472 = vsel %vm490, %v1468, 0.0
          %1473 = vadd.xlane.f32.xlu0 %v1472
          %v1474 = vpop.xlane.xlu0 %1473
          %v1475 = vrcp.pop %v1471
          %v1476 = vrcp.pop %v1474
          %v1477 = vmul.f32 %v1466, %v1475
          %v1478 = vmul.f32 %v1468, %v1476
          %v1479 = vpack.c.bf16 %v1478, %v1477
          %v1484 = vunpack.c.l.b16 %v1248
          %v1485 = vunpack.c.l.b16 %v1249
          %v1486 = vunpack.c.l.b16 %v1250
          %v1487 = vunpack.c.l.b16 %v1251
          %v1488 = vpack.c.b16 %v1485, %v1484
          %v1489 = vpack.c.b16 %v1487, %v1486
          %1490 = vrot.lane.b32.xlu0 %v1488, 112
          %v1491 = vpop.permute.xlu0 %1490
          %1492 = vrot.lane.b32.xlu0 %v1489, 112
          %v1493 = vpop.permute.xlu0 %1492
          %v1497 = vsel %vm490, %v1479, 0
          %1499 = vmatprep.subr.bf16.mxu0 0
          %1500 = vmatpush1.bf16.msra.mxu0 0
          %1501 = vmatprep.subr.bf16.mxu0 0
          %1502 = vmatpush1.bf16.msra.mxu0 0
          %1503 = vmatprep.subr.bf16.mxu0 0
          %1504 = vmatpush1.bf16.msra.mxu0 0
          %1505 = vmatprep.subr.bf16.mxu0 0
          %1506 = vmatpush1.bf16.msra.mxu0 0
          %1507 = vmatprep.subr.bf16.mxu0 0
          %1508 = vmatpush1.bf16.msra.mxu0 0
          %1509 = vmatprep.subr.bf16.mxu0 0
          %1510 = vmatpush1.bf16.msra.mxu0 0
          %1511 = vmatprep.subr.bf16.mxu0 0
          %1512 = vmatpush1.bf16.msra.mxu0 %v1493
          %1513 = vmatprep.subr.bf16.mxu0 0
          %1514 = vmatpush1.bf16.msra.mxu0 %v1491
          %1515 = vmatprep.subr.bf16.mxu0 0
          %1516 = vmatpush2.bf16.msra.mxu0 0
          %1517 = vmatprep.subr.bf16.mxu0 0
          %1518 = vmatpush2.bf16.msra.mxu0 0
          %1519 = vmatprep.subr.bf16.mxu0 0
          %1520 = vmatpush2.bf16.msra.mxu0 0
          %1521 = vmatprep.subr.bf16.mxu0 0
          %1522 = vmatpush2.bf16.msra.mxu0 0
          %1523 = vmatprep.subr.bf16.mxu0 0
          %1524 = vmatpush2.bf16.msra.mxu0 0
          %1525 = vmatprep.subr.bf16.mxu0 0
          %1526 = vmatpush2.bf16.msra.mxu0 0
          %1527 = vmatprep.subr.bf16.mxu0 0
          %1528 = vmatpush2.bf16.msra.mxu0 0
          %1529 = vmatprep.subr.bf16.mxu0 0
          %1530 = vmatpush2.bf16.msra.mxu0 0
          %1531 = vmatprep.mubr.bf16.mxu0 0
          %1532 = vmatmul.mubr.bf16.gmra.mxu0 %v1497
          %v1533 = vpop.f32.mrf.mxu0
          %v1534 = vadd.f32 0.0, %v1533
          %v1535 = vpop.f32.mrf.mxu0
          %v1536 = vpop.f32.mrf.mxu0
          %v1537 = vadd.f32 0.0, %v1536
          %v1538 = vpop.f32.mrf.mxu0
          %1539 = vdwg.mxu0
          %v1540 = vpack.c.bf16 %v1537, %v1534
          %v1542 = vunpack.c.l.b16 %v1540
          %v1543 = vunpack.c.h.b16 %v1540
          %v1544 = vpack.c.b16 %v1542, %v1542
          %v1545 = vpack.c.b16 %v1543, %v1543
          %1546 = vrot.lane.b32.xlu0 %v1544, 16
          %v1547 = vpop.permute.xlu0 %1546
          %1548 = vrot.lane.b32.xlu0 %v1545, 16
          %v1549 = vpop.permute.xlu0 %1548
          %vm1552 = vcmask 191616
          %1553 = vst.msk [vmem:[#allocation4] sm:$0xf] %vm1552, %v1547
          %1554 = vst.msk [vmem:[#allocation4 + $0x4] sm:$0xf] %vm1552, %v1549
          %v1555 = vld [vmem:[#allocation2] sm:$0xf]
          %v1556 = vld [vmem:[#allocation2 + $0x4] sm:$0xf]
          %v1557 = vld [vmem:[#allocation2 + $0x8] sm:$0xf]
          %v1558 = vld [vmem:[#allocation2 + $0xc] sm:$0xf]
          %v1559 = vld [vmem:[#allocation3] sm:$0xf]
          %v1560 = vld [vmem:[#allocation3 + $0x4] sm:$0xf]
          %v1561 = vld [vmem:[#allocation3 + $0x8] sm:$0xf]
          %v1562 = vld [vmem:[#allocation3 + $0xc] sm:$0xf]
          %1563 = vrot.lane.b32.xlu0 %v535, 104
          %v1564 = vpop.permute.xlu0 %1563
          %v1566 = vsel %vm578, %v1564, 0
          %1568 = vmatprep.subr.bf16.mxu0 0
          %1569 = vmatpush1.bf16.xpose.msra.mxu0 0
          %1570 = vmatprep.subr.bf16.mxu0 0
          %1571 = vmatpush1.bf16.xpose.msra.mxu0 0
          %1572 = vmatprep.subr.bf16.mxu0 0
          %1573 = vmatpush1.bf16.xpose.msra.mxu0 0
          %1574 = vmatprep.subr.bf16.mxu0 0
          %1575 = vmatpush1.bf16.xpose.msra.mxu0 0
          %1576 = vmatprep.subr.bf16.mxu0 0
          %1577 = vmatpush1.bf16.xpose.msra.mxu0 %v592
          %1578 = vmatprep.subr.bf16.mxu0 0
          %1579 = vmatpush1.bf16.xpose.msra.mxu0 %v589
          %1580 = vmatprep.subr.bf16.mxu0 0
          %1581 = vmatpush1.bf16.xpose.msra.mxu0 %v586
          %1582 = vmatprep.subr.bf16.mxu0 0
          %1583 = vmatpush1.bf16.xpose.msra.mxu0 %v583
          %1584 = vmatprep.subr.bf16.mxu0 0
          %1585 = vmatpush2.bf16.xpose.msra.mxu0 0
          %1586 = vmatprep.subr.bf16.mxu0 0
          %1587 = vmatpush2.bf16.xpose.msra.mxu0 0
          %1588 = vmatprep.subr.bf16.mxu0 0
          %1589 = vmatpush2.bf16.xpose.msra.mxu0 0
          %1590 = vmatprep.subr.bf16.mxu0 0
          %1591 = vmatpush2.bf16.xpose.msra.mxu0 0
          %1592 = vmatprep.subr.bf16.mxu0 0
          %1593 = vmatpush2.bf16.xpose.msra.mxu0 0
          %1594 = vmatprep.subr.bf16.mxu0 0
          %1595 = vmatpush2.bf16.xpose.msra.mxu0 0
          %1596 = vmatprep.subr.bf16.mxu0 0
          %1597 = vmatpush2.bf16.xpose.msra.mxu0 0
          %1598 = vmatprep.subr.bf16.mxu0 0
          %1599 = vmatpush2.bf16.xpose.msra.mxu0 0
          %1600 = vmatprep.mubr.bf16.mxu0 0
          %1601 = vmatmul.mubr.bf16.gmra.mxu0 %v1566
          %v1602 = vpop.f32.mrf.mxu0
          %v1603 = vadd.f32 0.0, %v1602
          %v1604 = vpop.f32.mrf.mxu0
          %v1605 = vpop.f32.mrf.mxu0
          %v1606 = vadd.f32 0.0, %v1605
          %v1607 = vpop.f32.mrf.mxu0
          %1608 = vdwg.mxu0
          %1611 = vrot.lane.b32.xlu0 %v1603, 66
          %v1612 = vpop.permute.xlu0 %1611
          %1613 = vrot.lane.b32.xlu0 %v1606, 66
          %v1614 = vpop.permute.xlu0 %1613
          %1617 = vrot.lane.b32.xlu0 %v1603, 1
          %v1618 = vpop.permute.xlu0 %1617
          %1619 = vrot.lane.b32.xlu0 %v1606, 1
          %v1620 = vpop.permute.xlu0 %1619
          %v1623 = vsel %vm649, %v1612, %v1618
          %v1624 = vsel %vm649, %v1614, %v1620
          %v1625 = vsel %vm658, %v1623, %v1603
          %v1626 = vsel %vm659, %v1624, %v1606
          %1629 = vrot.lane.b32.xlu0 %v1625, 67
          %v1630 = vpop.permute.xlu0 %1629
          %1631 = vrot.lane.b32.xlu0 %v1626, 67
          %v1632 = vpop.permute.xlu0 %1631
          %1635 = vrot.lane.b32.xlu0 %v1625, 2
          %v1636 = vpop.permute.xlu0 %1635
          %1637 = vrot.lane.b32.xlu0 %v1626, 2
          %v1638 = vpop.permute.xlu0 %1637
          %v1641 = vsel %vm676, %v1630, %v1636
          %v1642 = vsel %vm676, %v1632, %v1638
          %v1643 = vsel %vm687, %v1641, %v1625
          %v1644 = vsel %vm688, %v1642, %v1626
          %1647 = vrot.lane.b32.xlu0 %v1643, 69
          %v1648 = vpop.permute.xlu0 %1647
          %1649 = vrot.lane.b32.xlu0 %v1644, 69
          %v1650 = vpop.permute.xlu0 %1649
          %1653 = vrot.lane.b32.xlu0 %v1643, 4
          %v1654 = vpop.permute.xlu0 %1653
          %1655 = vrot.lane.b32.xlu0 %v1644, 4
          %v1656 = vpop.permute.xlu0 %1655
          %v1659 = vsel %vm705, %v1648, %v1654
          %v1660 = vsel %vm705, %v1650, %v1656
          %v1661 = vsel %vm716, %v1659, %v1643
          %v1662 = vsel %vm717, %v1660, %v1644
          %1665 = vrot.lane.b32.xlu0 %v1661, 73
          %v1666 = vpop.permute.xlu0 %1665
          %1667 = vrot.lane.b32.xlu0 %v1662, 73
          %v1668 = vpop.permute.xlu0 %1667
          %1671 = vrot.lane.b32.xlu0 %v1661, 8
          %v1672 = vpop.permute.xlu0 %1671
          %1673 = vrot.lane.b32.xlu0 %v1662, 8
          %v1674 = vpop.permute.xlu0 %1673
          %v1677 = vsel %vm578, %v1666, %v1672
          %v1678 = vsel %vm578, %v1668, %v1674
          %v1679 = vsel %vm744, %v1677, %v1661
          %v1680 = vsel %vm745, %v1678, %v1662
          %1683 = vrot.lane.b32.xlu0 %v1679, 81
          %v1684 = vpop.permute.xlu0 %1683
          %1685 = vrot.lane.b32.xlu0 %v1680, 81
          %v1686 = vpop.permute.xlu0 %1685
          %1689 = vrot.lane.b32.xlu0 %v1679, 16
          %v1690 = vpop.permute.xlu0 %1689
          %1691 = vrot.lane.b32.xlu0 %v1680, 16
          %v1692 = vpop.permute.xlu0 %1691
          %v1695 = vsel %vm762, %v1684, %v1690
          %v1696 = vsel %vm762, %v1686, %v1692
          %v1697 = vsel %vm773, %v1695, %v1679
          %v1698 = vsel %vm774, %v1696, %v1680
          %v1703 = vunpack.c.l.b16 %v1555
          %v1704 = vunpack.c.l.b16 %v1556
          %v1705 = vunpack.c.l.b16 %v1557
          %v1706 = vunpack.c.l.b16 %v1558
          %v1707 = vpack.c.b16 %v1704, %v1703
          %v1708 = vpack.c.b16 %v1706, %v1705
          %1709 = vrot.lane.b32.xlu0 %v1707, 104
          %v1710 = vpop.permute.xlu0 %1709
          %1711 = vrot.lane.b32.xlu0 %v1708, 104
          %v1712 = vpop.permute.xlu0 %1711
          %1715 = vrot.lane.b32.xlu0 %v1697, 97
          %v1716 = vpop.permute.xlu0 %1715
          %1717 = vrot.lane.b32.xlu0 %v1698, 97
          %v1718 = vpop.permute.xlu0 %1717
          %v1722 = vsel %vm578, %v1710, 0
          %v1725 = vsel %vm578, %v1712, 0
          %1727 = vmatprep.subr.bf16.mxu0 0
          %1728 = vmatpush1.bf16.xpose.msra.mxu0 0
          %1729 = vmatprep.subr.bf16.mxu0 0
          %1730 = vmatpush1.bf16.xpose.msra.mxu0 0
          %1731 = vmatprep.subr.bf16.mxu0 0
          %1732 = vmatpush1.bf16.xpose.msra.mxu0 0
          %1733 = vmatprep.subr.bf16.mxu0 0
          %1734 = vmatpush1.bf16.xpose.msra.mxu0 0
          %1735 = vmatprep.subr.bf16.mxu0 0
          %1736 = vmatpush1.bf16.xpose.msra.mxu0 0
          %1737 = vmatprep.subr.bf16.mxu0 0
          %1738 = vmatpush1.bf16.xpose.msra.mxu0 0
          %1739 = vmatprep.subr.bf16.mxu0 0
          %1740 = vmatpush1.bf16.xpose.msra.mxu0 %v1725
          %1741 = vmatprep.subr.bf16.mxu0 0
          %1742 = vmatpush1.bf16.xpose.msra.mxu0 %v1722
          %1743 = vmatprep.subr.bf16.mxu0 0
          %1744 = vmatpush2.bf16.xpose.msra.mxu0 0
          %1745 = vmatprep.subr.bf16.mxu0 0
          %1746 = vmatpush2.bf16.xpose.msra.mxu0 0
          %1747 = vmatprep.subr.bf16.mxu0 0
          %1748 = vmatpush2.bf16.xpose.msra.mxu0 0
          %1749 = vmatprep.subr.bf16.mxu0 0
          %1750 = vmatpush2.bf16.xpose.msra.mxu0 0
          %1751 = vmatprep.subr.bf16.mxu0 0
          %1752 = vmatpush2.bf16.xpose.msra.mxu0 0
          %1753 = vmatprep.subr.bf16.mxu0 0
          %1754 = vmatpush2.bf16.xpose.msra.mxu0 0
          %1755 = vmatprep.subr.bf16.mxu0 0
          %1756 = vmatpush2.bf16.xpose.msra.mxu0 0
          %1757 = vmatprep.subr.bf16.mxu0 0
          %1758 = vmatpush2.bf16.xpose.msra.mxu0 0
          %1759 = vmatprep.mubr.bf16.mxu0 0
          %1760 = vmatmul.mubr.bf16.gmra.mxu0 %v1566
          %v1761 = vpop.f32.mrf.mxu0
          %v1762 = vadd.f32 %v1716, %v1761
          %v1763 = vpop.f32.mrf.mxu0
          %v1764 = vpop.f32.mrf.mxu0
          %v1765 = vadd.f32 %v1718, %v1764
          %v1766 = vpop.f32.mrf.mxu0
          %1767 = vdwg.mxu0
          %v1768 = vsel %vm490, %v1762, -inf
          %1769 = vmax.xlane.f32.xlu0 %v1768
          %v1770 = vpop.xlane.xlu0 %1769
          %v1771 = vsel %vm490, %v1765, -inf
          %1772 = vmax.xlane.f32.xlu0 %v1771
          %v1773 = vpop.xlane.xlu0 %1772
          %v1774 = vsub.f32 %v1762, %v1770
          %v1775 = vsub.f32 %v1765, %v1773
          %v1776 = vmul.f32 %v1774, 1.442695
          %v1777 = vpow.pop %v1776
          %v1778 = vmul.f32 %v1775, 1.442695
          %v1779 = vpow.pop %v1778
          %v1780 = vsel %vm490, %v1777, 0.0
          %1781 = vadd.xlane.f32.xlu0 %v1780
          %v1782 = vpop.xlane.xlu0 %1781
          %v1783 = vsel %vm490, %v1779, 0.0
          %1784 = vadd.xlane.f32.xlu0 %v1783
          %v1785 = vpop.xlane.xlu0 %1784
          %v1786 = vrcp.pop %v1782
          %v1787 = vrcp.pop %v1785
          %v1788 = vmul.f32 %v1777, %v1786
          %v1789 = vmul.f32 %v1779, %v1787
          %v1790 = vpack.c.bf16 %v1789, %v1788
          %v1795 = vunpack.c.l.b16 %v1559
          %v1796 = vunpack.c.l.b16 %v1560
          %v1797 = vunpack.c.l.b16 %v1561
          %v1798 = vunpack.c.l.b16 %v1562
          %v1799 = vpack.c.b16 %v1796, %v1795
          %v1800 = vpack.c.b16 %v1798, %v1797
          %1801 = vrot.lane.b32.xlu0 %v1799, 104
          %v1802 = vpop.permute.xlu0 %1801
          %1803 = vrot.lane.b32.xlu0 %v1800, 104
          %v1804 = vpop.permute.xlu0 %1803
          %v1808 = vsel %vm490, %v1790, 0
          %1810 = vmatprep.subr.bf16.mxu0 0
          %1811 = vmatpush1.bf16.msra.mxu0 0
          %1812 = vmatprep.subr.bf16.mxu0 0
          %1813 = vmatpush1.bf16.msra.mxu0 0
          %1814 = vmatprep.subr.bf16.mxu0 0
          %1815 = vmatpush1.bf16.msra.mxu0 0
          %1816 = vmatprep.subr.bf16.mxu0 0
          %1817 = vmatpush1.bf16.msra.mxu0 0
          %1818 = vmatprep.subr.bf16.mxu0 0
          %1819 = vmatpush1.bf16.msra.mxu0 0
          %1820 = vmatprep.subr.bf16.mxu0 0
          %1821 = vmatpush1.bf16.msra.mxu0 0
          %1822 = vmatprep.subr.bf16.mxu0 0
          %1823 = vmatpush1.bf16.msra.mxu0 %v1804
          %1824 = vmatprep.subr.bf16.mxu0 0
          %1825 = vmatpush1.bf16.msra.mxu0 %v1802
          %1826 = vmatprep.subr.bf16.mxu0 0
          %1827 = vmatpush2.bf16.msra.mxu0 0
          %1828 = vmatprep.subr.bf16.mxu0 0
          %1829 = vmatpush2.bf16.msra.mxu0 0
          %1830 = vmatprep.subr.bf16.mxu0 0
          %1831 = vmatpush2.bf16.msra.mxu0 0
          %1832 = vmatprep.subr.bf16.mxu0 0
          %1833 = vmatpush2.bf16.msra.mxu0 0
          %1834 = vmatprep.subr.bf16.mxu0 0
          %1835 = vmatpush2.bf16.msra.mxu0 0
          %1836 = vmatprep.subr.bf16.mxu0 0
          %1837 = vmatpush2.bf16.msra.mxu0 0
          %1838 = vmatprep.subr.bf16.mxu0 0
          %1839 = vmatpush2.bf16.msra.mxu0 0
          %1840 = vmatprep.subr.bf16.mxu0 0
          %1841 = vmatpush2.bf16.msra.mxu0 0
          %1842 = vmatprep.mubr.bf16.mxu0 0
          %1843 = vmatmul.mubr.bf16.gmra.mxu0 %v1808
          %v1844 = vpop.f32.mrf.mxu0
          %v1845 = vadd.f32 0.0, %v1844
          %v1846 = vpop.f32.mrf.mxu0
          %v1847 = vpop.f32.mrf.mxu0
          %v1848 = vadd.f32 0.0, %v1847
          %v1849 = vpop.f32.mrf.mxu0
          %1850 = vdwg.mxu0
          %v1851 = vpack.c.bf16 %v1848, %v1845
          %v1853 = vunpack.c.l.b16 %v1851
          %v1854 = vunpack.c.h.b16 %v1851
          %v1855 = vpack.c.b16 %v1853, %v1853
          %v1856 = vpack.c.b16 %v1854, %v1854
          %1857 = vrot.lane.b32.xlu0 %v1855, 24
          %v1858 = vpop.permute.xlu0 %1857
          %1859 = vrot.lane.b32.xlu0 %v1856, 24
          %v1860 = vpop.permute.xlu0 %1859
          %vm1863 = vcmask 257216
          %1864 = vst.msk [vmem:[#allocation4] sm:$0xf] %vm1863, %v1858
          %1865 = vst.msk [vmem:[#allocation4 + $0x4] sm:$0xf] %vm1863, %v1860
          %v1866 = vld [vmem:[#allocation4] sm:$0xf]
          %v1867 = vld [vmem:[#allocation4 + $0x4] sm:$0xf]
          %v1868 = vld [vmem:[#allocation10] sm:$0xf]
          %v1869 = vld [vmem:[#allocation10 + $0x4] sm:$0xf]
          %v1870 = vld [vmem:[#allocation10 + $0x8] sm:$0xf]
          %v1871 = vld [vmem:[#allocation10 + $0xc] sm:$0xf]
          %v1874 = vunpack.c.l.b16 %v1866
          %v1875 = vunpack.c.l.b16 %v1867
          %v1876 = vpack.c.b16 %v1875, %v1874
          %v1881 = vunpack.c.l.b16 %v1868
          %v1882 = vunpack.c.l.b16 %v1869
          %v1883 = vunpack.c.l.b16 %v1870
          %v1884 = vunpack.c.l.b16 %v1871
          %v1885 = vpack.c.b16 %v1882, %v1881
          %v1886 = vpack.c.b16 %v1884, %v1883
          %v1890 = vsel %vm490, %v1876, 0
          %1892 = vmatprep.subr.bf16.mxu0 0
          %1893 = vmatpush1.bf16.msra.mxu0 0
          %1894 = vmatprep.subr.bf16.mxu0 0
          %1895 = vmatpush1.bf16.msra.mxu0 0
          %1896 = vmatprep.subr.bf16.mxu0 0
          %1897 = vmatpush1.bf16.msra.mxu0 0
          %1898 = vmatprep.subr.bf16.mxu0 0
          %1899 = vmatpush1.bf16.msra.mxu0 0
          %1900 = vmatprep.subr.bf16.mxu0 0
          %1901 = vmatpush1.bf16.msra.mxu0 0
          %1902 = vmatprep.subr.bf16.mxu0 0
          %1903 = vmatpush1.bf16.msra.mxu0 0
          %1904 = vmatprep.subr.bf16.mxu0 0
          %1905 = vmatpush1.bf16.msra.mxu0 %v1886
          %1906 = vmatprep.subr.bf16.mxu0 0
          %1907 = vmatpush1.bf16.msra.mxu0 %v1885
          %1908 = vmatprep.subr.bf16.mxu0 0
          %1909 = vmatpush2.bf16.msra.mxu0 0
          %1910 = vmatprep.subr.bf16.mxu0 0
          %1911 = vmatpush2.bf16.msra.mxu0 0
          %1912 = vmatprep.subr.bf16.mxu0 0
          %1913 = vmatpush2.bf16.msra.mxu0 0
          %1914 = vmatprep.subr.bf16.mxu0 0
          %1915 = vmatpush2.bf16.msra.mxu0 0
          %1916 = vmatprep.subr.bf16.mxu0 0
          %1917 = vmatpush2.bf16.msra.mxu0 0
          %1918 = vmatprep.subr.bf16.mxu0 0
          %1919 = vmatpush2.bf16.msra.mxu0 0
          %1920 = vmatprep.subr.bf16.mxu0 0
          %1921 = vmatpush2.bf16.msra.mxu0 0
          %1922 = vmatprep.subr.bf16.mxu0 0
          %1923 = vmatpush2.bf16.msra.mxu0 0
          %1924 = vmatprep.mubr.bf16.mxu0 0
          %1925 = vmatmul.mubr.bf16.gmra.mxu0 %v1890
          %v1926 = vpop.f32.mrf.mxu0
          %v1927 = vadd.f32 %v467, %v1926
          %v1928 = vpop.f32.mrf.mxu0
          %v1929 = vpop.f32.mrf.mxu0
          %v1930 = vadd.f32 %v468, %v1929
          %v1931 = vpop.f32.mrf.mxu0
          %1932 = vdwg.mxu0
          %v1933 = vsel %vm490, %v1927, 0.0
          %1934 = vadd.xlane.f32.xlu0 %v1933
          %v1935 = vpop.xlane.xlu0 %1934
          %v1936 = vsel %vm490, %v1930, 0.0
          %1937 = vadd.xlane.f32.xlu0 %v1936
          %v1938 = vpop.xlane.xlu0 %1937
          %v1939 = vrcp.pop 32.0
          %v1940 = vmul.f32 %v1935, %v1939
          %v1941 = vmul.f32 %v1938, %v1939
          %v1942 = vsub.f32 %v1927, %v1940
          %v1943 = vsub.f32 %v1930, %v1941
          %v1944 = vmul.f32 %v1942, %v1942
          %v1945 = vmul.f32 %v1943, %v1943
          %v1946 = vsel %vm490, %v1944, 0.0
          %1947 = vadd.xlane.f32.xlu0 %v1946
          %v1948 = vpop.xlane.xlu0 %1947
          %v1949 = vsel %vm490, %v1945, 0.0
          %1950 = vadd.xlane.f32.xlu0 %v1949
          %v1951 = vpop.xlane.xlu0 %1950
          %v1952 = vmul.f32 %v1948, %v1939
          %v1953 = vmul.f32 %v1951, %v1939
          %v1954 = vadd.f32 %v1952, 1e-05
          %v1955 = vadd.f32 %v1953, 1e-05
          %v1956 = vrsqrt.pop %v1954
          %v1957 = vrsqrt.pop %v1955
          %v1958 = vmul.f32 %v1942, %v1956
          %v1959 = vmul.f32 %v1943, %v1957
          %v1960 = vld [vmem:[%s5] sm:$0x1]
          %v1962 = vlaneseq
          %v1963 = vshrl.u32 %v1962, 7
          %v1964 = vsub.s32 0, %v1963
          %v1965 = vrot.slane %v1960, %v1964
          %v1967 = vmul.f32 %v1958, %v1965
          %v1968 = vmul.f32 %v1959, %v1965
          %v1969 = vld [vmem:[%s6] sm:$0x1]
          %v1971 = vlaneseq
          %v1972 = vshrl.u32 %v1971, 7
          %v1973 = vsub.s32 0, %v1972
          %v1974 = vrot.slane %v1969, %v1973
          %v1976 = vadd.f32 %v1967, %v1974
          %v1977 = vadd.f32 %v1968, %v1974
          %v1978 = vpack.c.bf16 %v1977, %v1976
          %v1980 = vunpack.c.l.b16 %v1978
          %v1981 = vunpack.c.h.b16 %v1978
          %v1982 = vpack.c.b16 %v1980, %v1980
          %v1983 = vpack.c.b16 %v1981, %v1981
          %vm1986 = vcmask 257024
          %1987 = vst.msk [vmem:[%s349] sm:$0xf] %vm1986, %v1982
          %1988 = vst.msk [vmem:[%s349 + $0x4] sm:$0xf] %vm1986, %v1983
        $region68: #{tpu_custom_call.1} parent=47 // pred_fallthru
          _
        %s1989 = sand.u32 %s208, 1
        %s1990 = scalar_lea.sflag [#allocation7], %s1989
        %s1991 = sand.u32 %s208, 1
        %s1992 = smul.addr %s1991, 8
        %s1993 = scalar_lea.vmem [#allocation11], %s1992
        // Predicated region
        $region69: #{tpu_custom_call.1} parent=47 // pred_check
          %p1994 = pneg %p218
        $region70: #{tpu_custom_call.1} parent=47 // pred_check_branch
          %1996 = sbr.rel (%p1994) target = $region72
        $region71: #{tpu_custom_call.1} parent=47 // pred_region
          %s1997 = smul.u32 %s30, %s29
          %s1998 = smul.u32 2, %s1997
          %s2000 = ssub.s32 128, 128
          %2001 = vsyncadd %s1990, %s2000
          %s2002 = smul.addr %s28, 4
          %s2003 = sadd.s32 %s1998, %s2002
          %s2004 = smul.addr %s2003, 64
          %s2005 = scalar_lea.hbm %s7, %s2004
          %s2006 = sshll.u32 %s1993, 4
          %s2007 = int_to_ptr.vmem [resolvable:$true] %s2006
          %2012 = dma.vmem_to_hbm [thread:$0]  %s2007, 128, %s2005, %s1990, 64, 64, 4
        $region72: #{tpu_custom_call.1} parent=47 // pred_fallthru
          _
      $region48: #{tpu_custom_call.1} parent=5 // pred_fallthru
        _
      %p2013 = scmp.le.s32.totalorder 2, %s18
      // Predicated region
      $region73: #{tpu_custom_call.1} parent=5 // pred_check
        %p2014 = pneg %p2013
      $region74: #{tpu_custom_call.1} parent=5 // pred_check_branch
        %2016 = sbr.rel (%p2014) target = $region76
      $region75: #{tpu_custom_call.1} parent=5 // pred_region
        %s2017 = ssub.s32 %s18, 2
        // Predicated region
        $region77: #{tpu_custom_call.1} parent=75 // pred_check
          %p2018 = pneg %p224
        $region78: #{tpu_custom_call.1} parent=75 // pred_check_branch
          %2020 = sbr.rel (%p2018) target = $region80
        $region79: #{tpu_custom_call.1} parent=75 // pred_region
          %s2021 = sand.u32 %s209, 1
          %s2022 = scalar_lea.sflag [#allocation7], %s2021
          %s2023 = sand.u32 %s209, 1
          %s2024 = smul.addr %s2023, 8
          %s2025 = scalar_lea.vmem [#allocation11], %s2024
          %2026 = dma.done %s2022, 128
        $region80: #{tpu_custom_call.1} parent=75 // pred_fallthru
          _
      $region76: #{tpu_custom_call.1} parent=5 // pred_fallthru
        _
    $region6: #{tpu_custom_call.1} parent=1 // loop_footer
      %s22 = sadd.s32 1, %s18
    $region7: #{tpu_custom_call.1} parent=1 // loop_footer_branch
      %17 = sbr.rel target = $region3
    $region8: #{tpu_custom_call.1} parent=1 // loop_exit
      _
    %2027 = vsyncpa [#allocation6], 1
    %s2028 = scalar_lea.sflag [#allocation6], 1
    %2029 = vsyncpa %s2028, 1
    %2030 = vsyncpa [#allocation9], 1
    %2031 = vsyncpa [#allocation7], 1
    %s2032 = scalar_lea.sflag [#allocation7], 1
    %2033 = vsyncpa %s2032, 1

</llo_original>
